<compile_context>
chip_gen: v7x
topology: tpu7x:2x2x1
jax: 0.10.0
libtpu: 0.0.40
codegen_flags: <defaults>
</compile_context>

<pallas_src>
import functools

import jax
import jax.numpy as jnp
from jax.experimental import pallas as pl
from jax.experimental.pallas import tpu as pltpu

DIM = 128          # stand-in for dim=1024 (lane-aligned)
FT_DIM = 256       # stand-in for resnet ft_dim=2048
NUM_HEADS = 8
C_HEAD = DIM // NUM_HEADS
NUM_LAYER = 4
ALPHA = 0.2        # LeakyReLU negative slope in the GAT layer
NEG_INF = -9e15

_VMEM_LIMIT = 48 * 1024 * 1024


def _pick_tile(n, target=256):
    """Largest row-tile <= target that divides n (multiple of 8 when tiling)."""
    if n <= target:
        return n
    for t in range(target, 7, -8):
        if n % t == 0:
            return t
    return n


# ---------------- fused feature-extractor stand-in + projection ----------------
def _fe_proj_kernel(x_ref, fw_ref, fb_ref, pw_ref, pb_ref, o_ref):
    feat = (jnp.dot(x_ref[...], fw_ref[...],
                    preferred_element_type=jnp.float32) + fb_ref[...])
    out = (jnp.dot(feat.astype(jnp.bfloat16), pw_ref[...],
                   preferred_element_type=jnp.float32) + pb_ref[...])
    o_ref[...] = out.astype(o_ref.dtype)


def fe_projection(x_flat, p):
    n, in_f = x_flat.shape
    tile = _pick_tile(n)
    return pl.pallas_call(
        _fe_proj_kernel,
        out_shape=jax.ShapeDtypeStruct((n, DIM), jnp.bfloat16),
        grid=(n // tile,),
        in_specs=[
            pl.BlockSpec((tile, in_f), lambda i: (i, 0)),     # node-row tile
            pl.BlockSpec((in_f, FT_DIM), lambda i: (0, 0)),   # fe weight (bf16)
            pl.BlockSpec((1, FT_DIM), lambda i: (0, 0)),
            pl.BlockSpec((FT_DIM, DIM), lambda i: (0, 0)),    # proj weight (bf16)
            pl.BlockSpec((1, DIM), lambda i: (0, 0)),
        ],
        out_specs=pl.BlockSpec((tile, DIM), lambda i: (i, 0)),
        compiler_params=pltpu.CompilerParams(
            dimension_semantics=("parallel",),
            vmem_limit_bytes=_VMEM_LIMIT),
    )(x_flat, p['fe_w'], p['fe_b'], p['proj_w'], p['proj_b'])


# ------------------------ fused 4-layer shared GAT ------------------------
def _gat_fused_kernel(x0_ref, adj_ref, wext_ref, bext_ref,
                      xseq_ref, attn_ref,
                      x_sc, proj_sc, esrc_sc, edstt_sc,
                      *, num_heads, c_head, alpha, num_layer, tile_n):
    layer = pl.program_id(0)
    rt = pl.program_id(1)
    dim = num_heads * c_head

    @pl.when(jnp.logical_and(layer == 0, rt == 0))
    def _():
        x_sc[...] = x0_ref[...]          # node features carried in VMEM

    @pl.when(rt == 0)
    def _():
        # one MXU matmul per layer gives proj AND per-head src/dst coefficients
        # (W_ext = [W | W@Asrc | W@Adst] precomputed in the wrapper).
        y = (jnp.dot(x_sc[...], wext_ref[...],
                     preferred_element_type=jnp.float32) + bext_ref[...])
        proj_sc[...] = y[:, :dim].astype(proj_sc.dtype)                 # bf16
        esrc_sc[...] = y[:, dim:dim + num_heads]                        # [N, H]
        edstt_sc[...] = jnp.transpose(                                  # one XLU
            y[:, dim + num_heads:dim + 2 * num_heads])                  # [H, N]

    row0 = pl.multiple_of(rt * tile_n, 8)
    # additive mask bias for this row tile, recomputed per layer (cheap VPU pass)
    mask_bias = jnp.where(adj_ref[...] > 0.0,
                          jnp.float32(0.0), jnp.float32(NEG_INF))       # [TN, N]
    e_src = esrc_sc[pl.ds(row0, tile_n), :]                             # [TN, H]
    e_dst_t = edstt_sc[...]                                             # [H, N]
    proj = proj_sc[...]                                                 # [N, DIM] bf16

    out_parts = []
    for h in range(num_heads):
        logits = e_src[:, h:h + 1] + e_dst_t[h:h + 1, :]                # [TN, N]
        logits = jnp.where(logits > 0, logits, alpha * logits)          # LeakyReLU
        masked = logits + mask_bias
        m = jnp.max(masked, axis=1, keepdims=True)                      # softmax(j)
        p = jnp.exp(masked - m)
        inv = pl.reciprocal(jnp.sum(p, axis=1, keepdims=True), approx=False)
        probs = p * inv                                                 # f32
        out_parts.append(jnp.dot(probs.astype(jnp.bfloat16),
                                 proj[:, h * c_head:(h + 1) * c_head],
                                 preferred_element_type=jnp.float32))   # [TN, C]

        # only the last layer's attention is returned by the reference module;
        # stored per-head so only one [TN, N] probs matrix stays live.
        @pl.when(layer == num_layer - 1)
        def _():
            attn_ref[h] = probs

    x_new = jnp.concatenate(out_parts, axis=1)                          # [TN, DIM]
    xseq_ref[0] = x_new.astype(xseq_ref.dtype)
    x_sc[pl.ds(row0, tile_n), :] = x_new.astype(x_sc.dtype)


def gat_stack(x0, adj, w_ext, b_ext):
    n = x0.shape[0]
    tile_n = _pick_tile(n)
    n_tiles = n // tile_n
    ext = w_ext.shape[1]
    kern = functools.partial(_gat_fused_kernel, num_heads=NUM_HEADS,
                             c_head=C_HEAD, alpha=ALPHA,
                             num_layer=NUM_LAYER, tile_n=tile_n)
    grid_spec = pltpu.PrefetchScalarGridSpec(
        num_scalar_prefetch=0,
        grid=(NUM_LAYER, n_tiles),
        in_specs=[
            pl.BlockSpec((n, DIM), lambda l, r: (0, 0)),          # x0 (bf16)
            pl.BlockSpec((tile_n, n), lambda l, r: (r, 0)),       # adj row tile
            pl.BlockSpec((DIM, ext), lambda l, r: (0, 0)),        # fused W (bf16)
            pl.BlockSpec((1, ext), lambda l, r: (0, 0)),          # fused b
        ],
        out_specs=(
            pl.BlockSpec((1, tile_n, DIM), lambda l, r: (l, r, 0)),      # x/layer
            pl.BlockSpec((NUM_HEADS, tile_n, n), lambda l, r: (0, r, 0)),  # attn
        ),
        scratch_shapes=[
            pltpu.VMEM((n, DIM), jnp.bfloat16),        # carried node features
            pltpu.VMEM((n, DIM), jnp.bfloat16),        # per-layer projection
            pltpu.VMEM((n, NUM_HEADS), jnp.float32),   # e_src
            pltpu.VMEM((NUM_HEADS, n), jnp.float32),   # e_dst^T (one transpose)
        ],
    )
    # TODO(synk): to mark the row axis "parallel" (v7x 2-TC sharding) the
    # projection would have to be hoisted into a per-layer pre-pass; the row
    # axis currently carries the shared proj computation at rt == 0.
    return pl.pallas_call(
        kern,
        out_shape=(jax.ShapeDtypeStruct((NUM_LAYER, n, DIM), jnp.bfloat16),
                   jax.ShapeDtypeStruct((NUM_HEADS, n, n), jnp.float32)),
        grid_spec=grid_spec,
        compiler_params=pltpu.CompilerParams(
            dimension_semantics=("arbitrary", "arbitrary"),
            vmem_limit_bytes=_VMEM_LIMIT),
    )(x0, adj, w_ext, b_ext)


# ------------------------- 2-layer LSTM + mean(0) -------------------------
def _lstm_jk_kernel(x_ref, wih0_ref, whh0_ref, b0_ref,
                    wih1_ref, whh1_ref, b1_ref, out_ref,
                    *, seq_len, hidden):
    tn = x_ref.shape[1]
    wih0, whh0 = wih0_ref[...], whh0_ref[...]      # bf16, hoisted out of loops
    wih1, whh1 = wih1_ref[...], whh1_ref[...]
    b0, b1 = b0_ref[...], b1_ref[...]              # f32 (bih + bhh pre-summed)

    def gates(g, c):
        i = jax.nn.sigmoid(g[:, 0:hidden])
        f = jax.nn.sigmoid(g[:, hidden:2 * hidden])
        gg = jnp.tanh(g[:, 2 * hidden:3 * hidden])
        o = jax.nn.sigmoid(g[:, 3 * hidden:4 * hidden])
        c_new = f * c + i * gg
        return o * jnp.tanh(c_new), c_new

    zero = jnp.zeros((tn, hidden), jnp.float32)

    # ---- LSTM layer 0: input-gate matmul batched over all T timesteps ----
    x_all = jnp.concatenate([x_ref[t] for t in range(seq_len)], axis=0)   # bf16
    gx0 = jnp.dot(x_all, wih0, preferred_element_type=jnp.float32) + b0   # [T*TN,4H]
    h0, c0 = zero, zero
    h0_steps = []
    for t in range(seq_len):          # seq_len = NUM_LAYER (4) -> unrolled
        g = (gx0[t * tn:(t + 1) * tn, :]
             + jnp.dot(h0.astype(jnp.bfloat16), whh0,
                       preferred_element_type=jnp.float32))
        h0, c0 = gates(g, c0)
        h0_steps.append(h0.astype(jnp.bfloat16))

    # ---- LSTM layer 1: its input sequence is now fully known -> batch too ----
    h0_seq = jnp.concatenate(h0_steps, axis=0)                            # [T*TN,H]
    gx1 = jnp.dot(h0_seq, wih1, preferred_element_type=jnp.float32) + b1
    h1, c1 = zero, zero
    acc = zero
    for t in range(seq_len):
        g = (gx1[t * tn:(t + 1) * tn, :]
             + jnp.dot(h1.astype(jnp.bfloat16), whh1,
                       preferred_element_type=jnp.float32))
        h1, c1 = gates(g, c1)
        acc = acc + h1
    out_ref[...] = acc * (1.0 / seq_len)


def lstm_jk(x_seq, p):
    l, n, d = x_seq.shape
    tile = _pick_tile(n)
    kern = functools.partial(_lstm_jk_kernel, seq_len=l, hidden=d)
    return pl.pallas_call(
        kern,
        out_shape=jax.ShapeDtypeStruct((n, d), jnp.float32),
        grid=(n // tile,),
        in_specs=[
            pl.BlockSpec((l, tile, d), lambda r: (0, r, 0)),    # node-row tile
            pl.BlockSpec((d, 4 * d), lambda r: (0, 0)),
            pl.BlockSpec((d, 4 * d), lambda r: (0, 0)),
            pl.BlockSpec((1, 4 * d), lambda r: (0, 0)),
            pl.BlockSpec((d, 4 * d), lambda r: (0, 0)),
            pl.BlockSpec((d, 4 * d), lambda r: (0, 0)),
            pl.BlockSpec((1, 4 * d), lambda r: (0, 0)),
        ],
        out_specs=pl.BlockSpec((tile, d), lambda r: (r, 0)),
        compiler_params=pltpu.CompilerParams(
            dimension_semantics=("parallel",),
            vmem_limit_bytes=_VMEM_LIMIT),
    )(x_seq, p['wih0'], p['whh0'], p['b0'], p['wih1'], p['whh1'], p['b1'])


# ------------------------------ parameters ------------------------------
def init_params(key):
    ks = jax.random.split(key, 16)
    s = 0.1
    p = {
        # stand-in feature extractor (see TODO in forward)
        'fe_w': jax.random.normal(ks[0], (3 * 16 * 16, FT_DIM)) * 0.02,
        'fe_b': jax.random.normal(ks[1], (1, FT_DIM)) * s,
        # self.projection = Linear(ft_dim, dim)
        'proj_w': jax.random.normal(ks[2], (FT_DIM, DIM)) * s,
        'proj_b': jax.random.normal(ks[3], (1, DIM)) * s,
        # shared GATLayer: Linear(dim, dim) + a[num_heads, 2*c_head]
        'gat_w': jax.random.normal(ks[4], (DIM, DIM)) * s,
        'gat_b': jax.random.normal(ks[5], (1, DIM)) * s,
        'a_src': jax.random.normal(ks[6], (NUM_HEADS, C_HEAD)) * s,
        'a_dst': jax.random.normal(ks[7], (NUM_HEADS, C_HEAD)) * s,
        # nn.LSTM(dim, dim, num_layers=2); weights pre-transposed, gate order i,f,g,o
        'wih0': jax.random.normal(ks[8], (DIM, 4 * DIM)) * s,
        'whh0': jax.random.normal(ks[9], (DIM, 4 * DIM)) * s,
        'bih0': jax.random.normal(ks[10], (1, 4 * DIM)) * s,
        'bhh0': jax.random.normal(ks[11], (1, 4 * DIM)) * s,
        'wih1': jax.random.normal(ks[12], (DIM, 4 * DIM)) * s,
        'whh1': jax.random.normal(ks[13], (DIM, 4 * DIM)) * s,
        'bih1': jax.random.normal(ks[14], (1, 4 * DIM)) * s,
        'bhh1': jax.random.normal(ks[15], (1, 4 * DIM)) * s,
    }
    return {k: v.astype(jnp.float32) for k, v in p.items()}


def _block_diag_a(a):
    """[H, C] per-head attention vector -> block-diagonal [H*C, H] so that
    proj @ A yields the per-head dot products in a single MXU matmul."""
    h, c = a.shape
    eye = jnp.eye(h, dtype=a.dtype)
    return (a[:, :, None] * eye[:, None, :]).reshape(h * c, h)


def prepare_params(params):
    """One-time (outside jit) weight preparation: bf16 matmul operands and the
    fused GAT weight W_ext = [W | W@Asrc | W@Adst] (folds a_src/a_dst dots
    into the projection matmul); LSTM biases pre-summed."""
    a_src = _block_diag_a(params['a_src'])          # [DIM, H]
    a_dst = _block_diag_a(params['a_dst'])
    w, b = params['gat_w'], params['gat_b']
    w_ext = jnp.concatenate([w, w @ a_src, w @ a_dst], axis=1)   # [DIM, DIM+2H]
    b_ext = jnp.concatenate([b, b @ a_src, b @ a_dst], axis=1)   # [1, DIM+2H]
    return {
        'fe_w': params['fe_w'].astype(jnp.bfloat16),
        'fe_b': params['fe_b'],
        'proj_w': params['proj_w'].astype(jnp.bfloat16),
        'proj_b': params['proj_b'],
        'w_ext': w_ext.astype(jnp.bfloat16),
        'b_ext': b_ext,
        'wih0': params['wih0'].astype(jnp.bfloat16),
        'whh0': params['whh0'].astype(jnp.bfloat16),
        'b0': params['bih0'] + params['bhh0'],
        'wih1': params['wih1'].astype(jnp.bfloat16),
        'whh1': params['whh1'].astype(jnp.bfloat16),
        'b1': params['bih1'] + params['bhh1'],
    }


# -------------------------------- forward --------------------------------
def feature_extractor_forward(patch, ct, adj, prep):
    del ct  # `ct` is unused in the reference forward()
    x_img = jnp.squeeze(patch)                           # [N, 3, H, W]  (NCHW)
    # TODO(synk): torchvision Resize(256)/CenterCrop(224) and the frozen
    # pretrained ResNet50 backbone have no clean Pallas equivalent; a
    # deterministic linear feature extractor (flatten -> Linear) stands in.
    n = x_img.shape[0]
    x_flat = x_img.reshape(n, -1).astype(jnp.bfloat16)
    x0 = fe_projection(x_flat, prep)                     # [N, DIM] bf16 (fe+proj fused)
    # nn.Dropout(0.2): eval-mode identity here.
    adj2d = jnp.squeeze(adj, axis=0)                     # [N, N]
    x_seq, attn = gat_stack(x0, adj2d, prep['w_ext'], prep['b_ext'])
    out = lstm_jk(x_seq, prep)                           # [N, DIM] f32
    return out, attn[None]                               # attn: [1, H, N, N]


if __name__ == "__main__":
    key = jax.random.PRNGKey(0)
    kp, kc, kparam = jax.random.split(key, 3)
    N = 8
    patch = jax.random.normal(kp, (1, N, 3, 16, 16), jnp.float32)
    ct = jax.random.normal(kc, (N, 4), jnp.float32)      # unused by forward
    # adjacency with self-loops + ring neighbours (deterministic 0/1 floats)
    idx = jnp.arange(N)
    d = jnp.abs(idx[:, None] - idx[None, :])
    adj = ((d <= 1) | (d == N - 1)).astype(jnp.float32)[None]   # [1, N, N]

    params = init_params(kparam)
    prep = prepare_params(params)
    fwd = jax.jit(lambda p_, c_, a_: feature_extractor_forward(p_, c_, a_, prep))
    out, attn = fwd(patch, ct, adj)
    jax.block_until_ready((out, attn))
    assert out.shape == (N, DIM), out.shape
    assert attn.shape == (1, NUM_HEADS, N, N), attn.shape
    assert bool(jnp.all(jnp.isfinite(out))) and bool(jnp.all(jnp.isfinite(attn)))
    # attention rows over existing edges must sum to ~1 (exact reciprocal used)
    assert bool(jnp.all(jnp.abs(jnp.sum(attn, axis=-1) - 1.0) < 1e-3))
    print("KERNEL_OK")
</pallas_src>

<mosaic_0001>
module attributes {stable_mosaic.version = 11 : i64} {
  func.func @_fe_proj_kernel(%arg0: i32, %arg1: memref<8x768xbf16, #tpu.memory_space<vmem>>, %arg2: memref<768x256xbf16, #tpu.memory_space<vmem>>, %arg3: memref<1x256xf32, #tpu.memory_space<vmem>>, %arg4: memref<256x128xbf16, #tpu.memory_space<vmem>>, %arg5: memref<1x128xf32, #tpu.memory_space<vmem>>, %arg6: memref<8x128xbf16, #tpu.memory_space<vmem>>) attributes {dimension_semantics = [#tpu.dimension_semantics<parallel>], iteration_bounds = array<i64: 1>, scalar_prefetch = 0 : i64, scratch_operands = 0 : i64, tpu.core_type = #tpu.core_type<tc>, window_params = [{transform_indices = @transform_0, window_bounds = array<i64: 8, 768>}, {pipeline_mode = #tpu.pipeline_mode<synchronous>, transform_indices = @transform_1, window_bounds = array<i64: 768, 256>}, {pipeline_mode = #tpu.pipeline_mode<synchronous>, transform_indices = @transform_2, window_bounds = array<i64: 1, 256>}, {pipeline_mode = #tpu.pipeline_mode<synchronous>, transform_indices = @transform_3, window_bounds = array<i64: 256, 128>}, {pipeline_mode = #tpu.pipeline_mode<synchronous>, transform_indices = @transform_4, window_bounds = array<i64: 1, 128>}, {transform_indices = @transform_5, window_bounds = array<i64: 8, 128>}]} {
    %c0 = arith.constant 0 : index
    %c0_0 = arith.constant 0 : index
    %0 = vector.load %arg1[%c0, %c0_0] : memref<8x768xbf16, #tpu.memory_space<vmem>>, vector<8x768xbf16>
    %c0_1 = arith.constant 0 : index
    %c0_2 = arith.constant 0 : index
    %1 = vector.load %arg2[%c0_1, %c0_2] : memref<768x256xbf16, #tpu.memory_space<vmem>>, vector<768x256xbf16>
    %cst = arith.constant dense<0.000000e+00> : vector<8x256xf32>
    %2 = tpu.matmul %0, %1, %cst {dimension_numbers = #tpu.dot_dimension_numbers<[1], [0], [0], [1], [0, 0, 1, 1], [], []>} : vector<8x768xbf16>, vector<768x256xbf16>, vector<8x256xf32> -> vector<8x256xf32>
    %c0_3 = arith.constant 0 : index
    %c0_4 = arith.constant 0 : index
    %3 = vector.load %arg3[%c0_3, %c0_4] : memref<1x256xf32, #tpu.memory_space<vmem>>, vector<1x256xf32>
    %4 = vector.broadcast %3 : vector<1x256xf32> to vector<8x256xf32>
    %5 = arith.addf %2, %4 : vector<8x256xf32>
    %6 = arith.truncf %5 : vector<8x256xf32> to vector<8x256xbf16>
    %c0_5 = arith.constant 0 : index
    %c0_6 = arith.constant 0 : index
    %7 = vector.load %arg4[%c0_5, %c0_6] : memref<256x128xbf16, #tpu.memory_space<vmem>>, vector<256x128xbf16>
    %cst_7 = arith.constant dense<0.000000e+00> : vector<8x128xf32>
    %8 = tpu.matmul %6, %7, %cst_7 {dimension_numbers = #tpu.dot_dimension_numbers<[1], [0], [0], [1], [0, 0, 1, 1], [], []>} : vector<8x256xbf16>, vector<256x128xbf16>, vector<8x128xf32> -> vector<8x128xf32>
    %c0_8 = arith.constant 0 : index
    %c0_9 = arith.constant 0 : index
    %9 = vector.load %arg5[%c0_8, %c0_9] : memref<1x128xf32, #tpu.memory_space<vmem>>, vector<1x128xf32>
    %10 = vector.broadcast %9 : vector<1x128xf32> to vector<8x128xf32>
    %11 = arith.addf %8, %10 : vector<8x128xf32>
    %12 = arith.truncf %11 : vector<8x128xf32> to vector<8x128xbf16>
    %c0_10 = arith.constant 0 : index
    %c0_11 = arith.constant 0 : index
    %13 = vector.load %arg6[%c0_10, %c0_11] : memref<8x128xbf16, #tpu.memory_space<vmem>>, vector<8x128xbf16>
    tpu.vector_store %arg6[%c0_10, %c0_11], %12 {strides = array<i32>} : memref<8x128xbf16, #tpu.memory_space<vmem>>, vector<8x128xbf16>,
    return
  }
  func.func @transform_0(%arg0: i32) -> (i32, i32) {
    %c0_i32 = arith.constant 0 : i32
    %c0_i32_0 = arith.constant 0 : i32
    return %arg0, %c0_i32 : i32, i32
  }
  func.func @transform_1(%arg0: i32) -> (i32, i32) {
    %c0_i32 = arith.constant 0 : i32
    %c0_i32_0 = arith.constant 0 : i32
    %c0_i32_1 = arith.constant 0 : i32
    return %c0_i32, %c0_i32_0 : i32, i32
  }
  func.func @transform_2(%arg0: i32) -> (i32, i32) {
    %c0_i32 = arith.constant 0 : i32
    %c0_i32_0 = arith.constant 0 : i32
    %c0_i32_1 = arith.constant 0 : i32
    return %c0_i32, %c0_i32_0 : i32, i32
  }
  func.func @transform_3(%arg0: i32) -> (i32, i32) {
    %c0_i32 = arith.constant 0 : i32
    %c0_i32_0 = arith.constant 0 : i32
    %c0_i32_1 = arith.constant 0 : i32
    return %c0_i32, %c0_i32_0 : i32, i32
  }
  func.func @transform_4(%arg0: i32) -> (i32, i32) {
    %c0_i32 = arith.constant 0 : i32
    %c0_i32_0 = arith.constant 0 : i32
    %c0_i32_1 = arith.constant 0 : i32
    return %c0_i32, %c0_i32_0 : i32, i32
  }
  func.func @transform_5(%arg0: i32) -> (i32, i32) {
    %c0_i32 = arith.constant 0 : i32
    %c0_i32_0 = arith.constant 0 : i32
    return %arg0, %c0_i32 : i32, i32
  }
}

module attributes {stable_mosaic.version = 11 : i64} {
  func.func @_gat_fused_kernel(%arg0: i32, %arg1: i32, %arg2: memref<8x128xbf16, #tpu.memory_space<vmem>>, %arg3: memref<8x8xf32, #tpu.memory_space<vmem>>, %arg4: memref<128x144xbf16, #tpu.memory_space<vmem>>, %arg5: memref<1x144xf32, #tpu.memory_space<vmem>>, %arg6: memref<1x8x128xbf16, #tpu.memory_space<vmem>>, %arg7: memref<8x8x8xf32, #tpu.memory_space<vmem>>, %arg8: memref<8x128xbf16, #tpu.memory_space<vmem>>, %arg9: memref<8x128xbf16, #tpu.memory_space<vmem>>, %arg10: memref<8x8xf32, #tpu.memory_space<vmem>>, %arg11: memref<8x8xf32, #tpu.memory_space<vmem>>) attributes {dimension_semantics = [#tpu.dimension_semantics<arbitrary>, #tpu.dimension_semantics<arbitrary>], iteration_bounds = array<i64: 4, 1>, scalar_prefetch = 0 : i64, scratch_operands = 4 : i64, tpu.core_type = #tpu.core_type<tc>, window_params = [{pipeline_mode = #tpu.pipeline_mode<synchronous>, transform_indices = @transform_0, window_bounds = array<i64: 8, 128>}, {transform_indices = @transform_1, window_bounds = array<i64: 8, 8>}, {pipeline_mode = #tpu.pipeline_mode<synchronous>, transform_indices = @transform_2, window_bounds = array<i64: 128, 144>}, {pipeline_mode = #tpu.pipeline_mode<synchronous>, transform_indices = @transform_3, window_bounds = array<i64: 1, 144>}, {transform_indices = @transform_4, window_bounds = array<i64: 1, 8, 128>}, {transform_indices = @transform_5, window_bounds = array<i64: 8, 8, 8>}]} {
    %c0_i32 = arith.constant 0 : i32
    %0 = arith.cmpi eq, %arg0, %c0_i32 : i32
    %c0_i32_0 = arith.constant 0 : i32
    %1 = arith.cmpi eq, %arg1, %c0_i32_0 : i32
    %2 = arith.andi %0, %1 : i1
    %3 = arith.extui %2 : i1 to i32
    %c0_i32_1 = arith.constant 0 : i32
    %4 = arith.cmpi ne, %3, %c0_i32_1 : i32
    scf.if %4 {
      %c0_71 = arith.constant 0 : index
      %c0_72 = arith.constant 0 : index
      %244 = vector.load %arg2[%c0_71, %c0_72] : memref<8x128xbf16, #tpu.memory_space<vmem>>, vector<8x128xbf16>
      %c0_73 = arith.constant 0 : index
      %c0_74 = arith.constant 0 : index
      %245 = vector.load %arg8[%c0_73, %c0_74] : memref<8x128xbf16, #tpu.memory_space<vmem>>, vector<8x128xbf16>
      tpu.vector_store %arg8[%c0_73, %c0_74], %244 {strides = array<i32>} : memref<8x128xbf16, #tpu.memory_space<vmem>>, vector<8x128xbf16>,
    } else {
    }
    %c0_i32_2 = arith.constant 0 : i32
    %5 = arith.cmpi eq, %arg1, %c0_i32_2 : i32
    %6 = arith.extui %5 : i1 to i32
    %c0_i32_3 = arith.constant 0 : i32
    %7 = arith.cmpi ne, %6, %c0_i32_3 : i32
    scf.if %7 {
      %c0_71 = arith.constant 0 : index
      %c0_72 = arith.constant 0 : index
      %244 = vector.load %arg8[%c0_71, %c0_72] : memref<8x128xbf16, #tpu.memory_space<vmem>>, vector<8x128xbf16>
      %c0_73 = arith.constant 0 : index
      %c0_74 = arith.constant 0 : index
      %245 = vector.load %arg4[%c0_73, %c0_74] : memref<128x144xbf16, #tpu.memory_space<vmem>>, vector<128x144xbf16>
      %cst_75 = arith.constant dense<0.000000e+00> : vector<8x144xf32>
      %246 = tpu.matmul %244, %245, %cst_75 {dimension_numbers = #tpu.dot_dimension_numbers<[1], [0], [0], [1], [0, 0, 1, 1], [], []>} : vector<8x128xbf16>, vector<128x144xbf16>, vector<8x144xf32> -> vector<8x144xf32>
      %c0_76 = arith.constant 0 : index
      %c0_77 = arith.constant 0 : index
      %247 = vector.load %arg5[%c0_76, %c0_77] : memref<1x144xf32, #tpu.memory_space<vmem>>, vector<1x144xf32>
      %248 = vector.broadcast %247 : vector<1x144xf32> to vector<8x144xf32>
      %249 = arith.addf %246, %248 : vector<8x144xf32>
      %250 = vector.extract_strided_slice %249 {offsets = [0, 0], sizes = [8, 128], strides = [1, 1]} : vector<8x144xf32> to vector<8x128xf32>
      %251 = arith.truncf %250 : vector<8x128xf32> to vector<8x128xbf16>
      %c0_78 = arith.constant 0 : index
      %c0_79 = arith.constant 0 : index
      %252 = vector.load %arg9[%c0_78, %c0_79] : memref<8x128xbf16, #tpu.memory_space<vmem>>, vector<8x128xbf16>
      tpu.vector_store %arg9[%c0_78, %c0_79], %251 {strides = array<i32>} : memref<8x128xbf16, #tpu.memory_space<vmem>>, vector<8x128xbf16>,
      %253 = vector.extract_strided_slice %249 {offsets = [0, 128], sizes = [8, 8], strides = [1, 1]} : vector<8x144xf32> to vector<8x8xf32>
      %c0_80 = arith.constant 0 : index
      %c0_81 = arith.constant 0 : index
      %254 = vector.load %arg10[%c0_80, %c0_81] : memref<8x8xf32, #tpu.memory_space<vmem>>, vector<8x8xf32>
      tpu.vector_store %arg10[%c0_80, %c0_81], %253 {strides = array<i32>} : memref<8x8xf32, #tpu.memory_space<vmem>>, vector<8x8xf32>,
      %255 = vector.extract_strided_slice %249 {offsets = [0, 136], sizes = [8, 8], strides = [1, 1]} : vector<8x144xf32> to vector<8x8xf32>
      %256 = tpu.transpose %255, [1, 0] : vector<8x8xf32> -> vector<8x8xf32>
      %c0_82 = arith.constant 0 : index
      %c0_83 = arith.constant 0 : index
      %257 = vector.load %arg11[%c0_82, %c0_83] : memref<8x8xf32, #tpu.memory_space<vmem>>, vector<8x8xf32>
      tpu.vector_store %arg11[%c0_82, %c0_83], %256 {strides = array<i32>} : memref<8x8xf32, #tpu.memory_space<vmem>>, vector<8x8xf32>,
    } else {
    }
    %c8_i32 = arith.constant 8 : i32
    %8 = arith.muli %arg1, %c8_i32 : i32
    %9 = tpu.assume_multiple %8, 8 : i32
    %c0 = arith.constant 0 : index
    %c0_4 = arith.constant 0 : index
    %10 = vector.load %arg3[%c0, %c0_4] : memref<8x8xf32, #tpu.memory_space<vmem>>, vector<8x8xf32>
    %cst = arith.constant 0.000000e+00 : f32
    %11 = vector.broadcast %cst : f32 to vector<8x8xf32>
    %12 = arith.cmpf ogt, %10, %11 : vector<8x8xf32>
    %cst_5 = arith.constant 0.000000e+00 : f32
    %cst_6 = arith.constant -9.000000e+15 : f32
    %13 = vector.broadcast %cst_5 : f32 to vector<8x8xf32>
    %14 = vector.broadcast %cst_6 : f32 to vector<8x8xf32>
    %15 = arith.select %12, %13, %14 : vector<8x8xi1>, vector<8x8xf32>
    %16 = arith.index_cast %9 : i32 to index
    %c0_7 = arith.constant 0 : index
    %17 = vector.load %arg10[%16, %c0_7] : memref<8x8xf32, #tpu.memory_space<vmem>>, vector<8x8xf32>
    %c0_8 = arith.constant 0 : index
    %c0_9 = arith.constant 0 : index
    %18 = vector.load %arg11[%c0_8, %c0_9] : memref<8x8xf32, #tpu.memory_space<vmem>>, vector<8x8xf32>
    %c0_10 = arith.constant 0 : index
    %c0_11 = arith.constant 0 : index
    %19 = vector.load %arg9[%c0_10, %c0_11] : memref<8x128xbf16, #tpu.memory_space<vmem>>, vector<8x128xbf16>
    %20 = vector.extract_strided_slice %17 {offsets = [0, 0], sizes = [8, 1], strides = [1, 1]} : vector<8x8xf32> to vector<8x1xf32>
    %21 = vector.extract_strided_slice %18 {offsets = [0, 0], sizes = [1, 8], strides = [1, 1]} : vector<8x8xf32> to vector<1x8xf32>
    %22 = vector.broadcast %20 : vector<8x1xf32> to vector<8x8xf32>
    %23 = vector.broadcast %21 : vector<1x8xf32> to vector<8x8xf32>
    %24 = arith.addf %22, %23 : vector<8x8xf32>
    %cst_12 = arith.constant 0.000000e+00 : f32
    %25 = vector.broadcast %cst_12 : f32 to vector<8x8xf32>
    %26 = arith.cmpf ogt, %24, %25 : vector<8x8xf32>
    %cst_13 = arith.constant 2.000000e-01 : f32
    %27 = vector.broadcast %cst_13 : f32 to vector<8x8xf32>
    %28 = arith.mulf %27, %24 : vector<8x8xf32>
    %29 = arith.select %26, %24, %28 : vector<8x8xi1>, vector<8x8xf32>
    %30 = arith.addf %29, %15 : vector<8x8xf32>
    %cst_14 = arith.constant dense<0xFF800000> : vector<8xf32>
    %31 = vector.multi_reduction <maximumf>, %30, %cst_14 [1] : vector<8x8xf32> to vector<8xf32>
    %32 = vector.shape_cast %31 : vector<8xf32> to vector<8x1xf32>
    %33 = vector.broadcast %32 : vector<8x1xf32> to vector<8x8xf32>
    %34 = arith.subf %30, %33 : vector<8x8xf32>
    %35 = math.exp %34 : vector<8x8xf32>
    %cst_15 = arith.constant dense<0.000000e+00> : vector<8xf32>
    %36 = vector.multi_reduction <add>, %35, %cst_15 [1] : vector<8x8xf32> to vector<8xf32>
    %37 = vector.shape_cast %36 : vector<8xf32> to vector<8x1xf32>
    %38 = tpu.reciprocal %37 : vector<8x1xf32> -> vector<8x1xf32>
    %39 = vector.broadcast %38 : vector<8x1xf32> to vector<8x8xf32>
    %40 = arith.mulf %35, %39 : vector<8x8xf32>
    %41 = arith.truncf %40 : vector<8x8xf32> to vector<8x8xbf16>
    %42 = vector.extract_strided_slice %19 {offsets = [0, 0], sizes = [8, 16], strides = [1, 1]} : vector<8x128xbf16> to vector<8x16xbf16>
    %cst_16 = arith.constant dense<0.000000e+00> : vector<8x16xf32>
    %43 = tpu.matmul %41, %42, %cst_16 {dimension_numbers = #tpu.dot_dimension_numbers<[1], [0], [0], [1], [0, 0, 1, 1], [], []>} : vector<8x8xbf16>, vector<8x16xbf16>, vector<8x16xf32> -> vector<8x16xf32>
    %c3_i32 = arith.constant 3 : i32
    %44 = arith.cmpi eq, %arg0, %c3_i32 : i32
    %45 = arith.extui %44 : i1 to i32
    %c0_i32_17 = arith.constant 0 : i32
    %46 = arith.cmpi ne, %45, %c0_i32_17 : i32
    scf.if %46 {
      %c0_71 = arith.constant 0 : index
      %c0_72 = arith.constant 0 : index
      %c0_73 = arith.constant 0 : index
      %244 = vector.load %arg7[%c0_71, %c0_72, %c0_73] : memref<8x8x8xf32, #tpu.memory_space<vmem>>, vector<1x8x8xf32>
      %245 = vector.shape_cast %244 : vector<1x8x8xf32> to vector<8x8xf32>
      %246 = vector.shape_cast %40 : vector<8x8xf32> to vector<1x8x8xf32>
      tpu.vector_store %arg7[%c0_71, %c0_72, %c0_73], %246 {strides = array<i32>} : memref<8x8x8xf32, #tpu.memory_space<vmem>>, vector<1x8x8xf32>,
    } else {
    }
    %47 = vector.extract_strided_slice %17 {offsets = [0, 1], sizes = [8, 1], strides = [1, 1]} : vector<8x8xf32> to vector<8x1xf32>
    %48 = vector.extract_strided_slice %18 {offsets = [1, 0], sizes = [1, 8], strides = [1, 1]} : vector<8x8xf32> to vector<1x8xf32>
    %49 = vector.broadcast %47 : vector<8x1xf32> to vector<8x8xf32>
    %50 = vector.broadcast %48 : vector<1x8xf32> to vector<8x8xf32>
    %51 = arith.addf %49, %50 : vector<8x8xf32>
    %cst_18 = arith.constant 0.000000e+00 : f32
    %52 = vector.broadcast %cst_18 : f32 to vector<8x8xf32>
    %53 = arith.cmpf ogt, %51, %52 : vector<8x8xf32>
    %cst_19 = arith.constant 2.000000e-01 : f32
    %54 = vector.broadcast %cst_19 : f32 to vector<8x8xf32>
    %55 = arith.mulf %54, %51 : vector<8x8xf32>
    %56 = arith.select %53, %51, %55 : vector<8x8xi1>, vector<8x8xf32>
    %57 = arith.addf %56, %15 : vector<8x8xf32>
    %cst_20 = arith.constant dense<0xFF800000> : vector<8xf32>
    %58 = vector.multi_reduction <maximumf>, %57, %cst_20 [1] : vector<8x8xf32> to vector<8xf32>
    %59 = vector.shape_cast %58 : vector<8xf32> to vector<8x1xf32>
    %60 = vector.broadcast %59 : vector<8x1xf32> to vector<8x8xf32>
    %61 = arith.subf %57, %60 : vector<8x8xf32>
    %62 = math.exp %61 : vector<8x8xf32>
    %cst_21 = arith.constant dense<0.000000e+00> : vector<8xf32>
    %63 = vector.multi_reduction <add>, %62, %cst_21 [1] : vector<8x8xf32> to vector<8xf32>
    %64 = vector.shape_cast %63 : vector<8xf32> to vector<8x1xf32>
    %65 = tpu.reciprocal %64 : vector<8x1xf32> -> vector<8x1xf32>
    %66 = vector.broadcast %65 : vector<8x1xf32> to vector<8x8xf32>
    %67 = arith.mulf %62, %66 : vector<8x8xf32>
    %68 = arith.truncf %67 : vector<8x8xf32> to vector<8x8xbf16>
    %69 = vector.extract_strided_slice %19 {offsets = [0, 16], sizes = [8, 16], strides = [1, 1]} : vector<8x128xbf16> to vector<8x16xbf16>
    %cst_22 = arith.constant dense<0.000000e+00> : vector<8x16xf32>
    %70 = tpu.matmul %68, %69, %cst_22 {dimension_numbers = #tpu.dot_dimension_numbers<[1], [0], [0], [1], [0, 0, 1, 1], [], []>} : vector<8x8xbf16>, vector<8x16xbf16>, vector<8x16xf32> -> vector<8x16xf32>
    %c3_i32_23 = arith.constant 3 : i32
    %71 = arith.cmpi eq, %arg0, %c3_i32_23 : i32
    %72 = arith.extui %71 : i1 to i32
    %c0_i32_24 = arith.constant 0 : i32
    %73 = arith.cmpi ne, %72, %c0_i32_24 : i32
    scf.if %73 {
      %c1 = arith.constant 1 : index
      %c0_71 = arith.constant 0 : index
      %c0_72 = arith.constant 0 : index
      %244 = vector.load %arg7[%c1, %c0_71, %c0_72] : memref<8x8x8xf32, #tpu.memory_space<vmem>>, vector<1x8x8xf32>
      %245 = vector.shape_cast %244 : vector<1x8x8xf32> to vector<8x8xf32>
      %246 = vector.shape_cast %67 : vector<8x8xf32> to vector<1x8x8xf32>
      tpu.vector_store %arg7[%c1, %c0_71, %c0_72], %246 {strides = array<i32>} : memref<8x8x8xf32, #tpu.memory_space<vmem>>, vector<1x8x8xf32>,
    } else {
    }
    %74 = vector.extract_strided_slice %17 {offsets = [0, 2], sizes = [8, 1], strides = [1, 1]} : vector<8x8xf32> to vector<8x1xf32>
    %75 = vector.extract_strided_slice %18 {offsets = [2, 0], sizes = [1, 8], strides = [1, 1]} : vector<8x8xf32> to vector<1x8xf32>
    %76 = vector.broadcast %74 : vector<8x1xf32> to vector<8x8xf32>
    %77 = vector.broadcast %75 : vector<1x8xf32> to vector<8x8xf32>
    %78 = arith.addf %76, %77 : vector<8x8xf32>
    %cst_25 = arith.constant 0.000000e+00 : f32
    %79 = vector.broadcast %cst_25 : f32 to vector<8x8xf32>
    %80 = arith.cmpf ogt, %78, %79 : vector<8x8xf32>
    %cst_26 = arith.constant 2.000000e-01 : f32
    %81 = vector.broadcast %cst_26 : f32 to vector<8x8xf32>
    %82 = arith.mulf %81, %78 : vector<8x8xf32>
    %83 = arith.select %80, %78, %82 : vector<8x8xi1>, vector<8x8xf32>
    %84 = arith.addf %83, %15 : vector<8x8xf32>
    %cst_27 = arith.constant dense<0xFF800000> : vector<8xf32>
    %85 = vector.multi_reduction <maximumf>, %84, %cst_27 [1] : vector<8x8xf32> to vector<8xf32>
    %86 = vector.shape_cast %85 : vector<8xf32> to vector<8x1xf32>
    %87 = vector.broadcast %86 : vector<8x1xf32> to vector<8x8xf32>
    %88 = arith.subf %84, %87 : vector<8x8xf32>
    %89 = math.exp %88 : vector<8x8xf32>
    %cst_28 = arith.constant dense<0.000000e+00> : vector<8xf32>
    %90 = vector.multi_reduction <add>, %89, %cst_28 [1] : vector<8x8xf32> to vector<8xf32>
    %91 = vector.shape_cast %90 : vector<8xf32> to vector<8x1xf32>
    %92 = tpu.reciprocal %91 : vector<8x1xf32> -> vector<8x1xf32>
    %93 = vector.broadcast %92 : vector<8x1xf32> to vector<8x8xf32>
    %94 = arith.mulf %89, %93 : vector<8x8xf32>
    %95 = arith.truncf %94 : vector<8x8xf32> to vector<8x8xbf16>
    %96 = vector.extract_strided_slice %19 {offsets = [0, 32], sizes = [8, 16], strides = [1, 1]} : vector<8x128xbf16> to vector<8x16xbf16>
    %cst_29 = arith.constant dense<0.000000e+00> : vector<8x16xf32>
    %97 = tpu.matmul %95, %96, %cst_29 {dimension_numbers = #tpu.dot_dimension_numbers<[1], [0], [0], [1], [0, 0, 1, 1], [], []>} : vector<8x8xbf16>, vector<8x16xbf16>, vector<8x16xf32> -> vector<8x16xf32>
    %c3_i32_30 = arith.constant 3 : i32
    %98 = arith.cmpi eq, %arg0, %c3_i32_30 : i32
    %99 = arith.extui %98 : i1 to i32
    %c0_i32_31 = arith.constant 0 : i32
    %100 = arith.cmpi ne, %99, %c0_i32_31 : i32
    scf.if %100 {
      %c2 = arith.constant 2 : index
      %c0_71 = arith.constant 0 : index
      %c0_72 = arith.constant 0 : index
      %244 = vector.load %arg7[%c2, %c0_71, %c0_72] : memref<8x8x8xf32, #tpu.memory_space<vmem>>, vector<1x8x8xf32>
      %245 = vector.shape_cast %244 : vector<1x8x8xf32> to vector<8x8xf32>
      %246 = vector.shape_cast %94 : vector<8x8xf32> to vector<1x8x8xf32>
      tpu.vector_store %arg7[%c2, %c0_71, %c0_72], %246 {strides = array<i32>} : memref<8x8x8xf32, #tpu.memory_space<vmem>>, vector<1x8x8xf32>,
    } else {
    }
    %101 = vector.extract_strided_slice %17 {offsets = [0, 3], sizes = [8, 1], strides = [1, 1]} : vector<8x8xf32> to vector<8x1xf32>
    %102 = vector.extract_strided_slice %18 {offsets = [3, 0], sizes = [1, 8], strides = [1, 1]} : vector<8x8xf32> to vector<1x8xf32>
    %103 = vector.broadcast %101 : vector<8x1xf32> to vector<8x8xf32>
    %104 = vector.broadcast %102 : vector<1x8xf32> to vector<8x8xf32>
    %105 = arith.addf %103, %104 : vector<8x8xf32>
    %cst_32 = arith.constant 0.000000e+00 : f32
    %106 = vector.broadcast %cst_32 : f32 to vector<8x8xf32>
    %107 = arith.cmpf ogt, %105, %106 : vector<8x8xf32>
    %cst_33 = arith.constant 2.000000e-01 : f32
    %108 = vector.broadcast %cst_33 : f32 to vector<8x8xf32>
    %109 = arith.mulf %108, %105 : vector<8x8xf32>
    %110 = arith.select %107, %105, %109 : vector<8x8xi1>, vector<8x8xf32>
    %111 = arith.addf %110, %15 : vector<8x8xf32>
    %cst_34 = arith.constant dense<0xFF800000> : vector<8xf32>
    %112 = vector.multi_reduction <maximumf>, %111, %cst_34 [1] : vector<8x8xf32> to vector<8xf32>
    %113 = vector.shape_cast %112 : vector<8xf32> to vector<8x1xf32>
    %114 = vector.broadcast %113 : vector<8x1xf32> to vector<8x8xf32>
    %115 = arith.subf %111, %114 : vector<8x8xf32>
    %116 = math.exp %115 : vector<8x8xf32>
    %cst_35 = arith.constant dense<0.000000e+00> : vector<8xf32>
    %117 = vector.multi_reduction <add>, %116, %cst_35 [1] : vector<8x8xf32> to vector<8xf32>
    %118 = vector.shape_cast %117 : vector<8xf32> to vector<8x1xf32>
    %119 = tpu.reciprocal %118 : vector<8x1xf32> -> vector<8x1xf32>
    %120 = vector.broadcast %119 : vector<8x1xf32> to vector<8x8xf32>
    %121 = arith.mulf %116, %120 : vector<8x8xf32>
    %122 = arith.truncf %121 : vector<8x8xf32> to vector<8x8xbf16>
    %123 = vector.extract_strided_slice %19 {offsets = [0, 48], sizes = [8, 16], strides = [1, 1]} : vector<8x128xbf16> to vector<8x16xbf16>
    %cst_36 = arith.constant dense<0.000000e+00> : vector<8x16xf32>
    %124 = tpu.matmul %122, %123, %cst_36 {dimension_numbers = #tpu.dot_dimension_numbers<[1], [0], [0], [1], [0, 0, 1, 1], [], []>} : vector<8x8xbf16>, vector<8x16xbf16>, vector<8x16xf32> -> vector<8x16xf32>
    %c3_i32_37 = arith.constant 3 : i32
    %125 = arith.cmpi eq, %arg0, %c3_i32_37 : i32
    %126 = arith.extui %125 : i1 to i32
    %c0_i32_38 = arith.constant 0 : i32
    %127 = arith.cmpi ne, %126, %c0_i32_38 : i32
    scf.if %127 {
      %c3 = arith.constant 3 : index
      %c0_71 = arith.constant 0 : index
      %c0_72 = arith.constant 0 : index
      %244 = vector.load %arg7[%c3, %c0_71, %c0_72] : memref<8x8x8xf32, #tpu.memory_space<vmem>>, vector<1x8x8xf32>
      %245 = vector.shape_cast %244 : vector<1x8x8xf32> to vector<8x8xf32>
      %246 = vector.shape_cast %121 : vector<8x8xf32> to vector<1x8x8xf32>
      tpu.vector_store %arg7[%c3, %c0_71, %c0_72], %246 {strides = array<i32>} : memref<8x8x8xf32, #tpu.memory_space<vmem>>, vector<1x8x8xf32>,
    } else {
    }
    %128 = vector.extract_strided_slice %17 {offsets = [0, 4], sizes = [8, 1], strides = [1, 1]} : vector<8x8xf32> to vector<8x1xf32>
    %129 = vector.extract_strided_slice %18 {offsets = [4, 0], sizes = [1, 8], strides = [1, 1]} : vector<8x8xf32> to vector<1x8xf32>
    %130 = vector.broadcast %128 : vector<8x1xf32> to vector<8x8xf32>
    %131 = vector.broadcast %129 : vector<1x8xf32> to vector<8x8xf32>
    %132 = arith.addf %130, %131 : vector<8x8xf32>
    %cst_39 = arith.constant 0.000000e+00 : f32
    %133 = vector.broadcast %cst_39 : f32 to vector<8x8xf32>
    %134 = arith.cmpf ogt, %132, %133 : vector<8x8xf32>
    %cst_40 = arith.constant 2.000000e-01 : f32
    %135 = vector.broadcast %cst_40 : f32 to vector<8x8xf32>
    %136 = arith.mulf %135, %132 : vector<8x8xf32>
    %137 = arith.select %134, %132, %136 : vector<8x8xi1>, vector<8x8xf32>
    %138 = arith.addf %137, %15 : vector<8x8xf32>
    %cst_41 = arith.constant dense<0xFF800000> : vector<8xf32>
    %139 = vector.multi_reduction <maximumf>, %138, %cst_41 [1] : vector<8x8xf32> to vector<8xf32>
    %140 = vector.shape_cast %139 : vector<8xf32> to vector<8x1xf32>
    %141 = vector.broadcast %140 : vector<8x1xf32> to vector<8x8xf32>
    %142 = arith.subf %138, %141 : vector<8x8xf32>
    %143 = math.exp %142 : vector<8x8xf32>
    %cst_42 = arith.constant dense<0.000000e+00> : vector<8xf32>
    %144 = vector.multi_reduction <add>, %143, %cst_42 [1] : vector<8x8xf32> to vector<8xf32>
    %145 = vector.shape_cast %144 : vector<8xf32> to vector<8x1xf32>
    %146 = tpu.reciprocal %145 : vector<8x1xf32> -> vector<8x1xf32>
    %147 = vector.broadcast %146 : vector<8x1xf32> to vector<8x8xf32>
    %148 = arith.mulf %143, %147 : vector<8x8xf32>
    %149 = arith.truncf %148 : vector<8x8xf32> to vector<8x8xbf16>
    %150 = vector.extract_strided_slice %19 {offsets = [0, 64], sizes = [8, 16], strides = [1, 1]} : vector<8x128xbf16> to vector<8x16xbf16>
    %cst_43 = arith.constant dense<0.000000e+00> : vector<8x16xf32>
    %151 = tpu.matmul %149, %150, %cst_43 {dimension_numbers = #tpu.dot_dimension_numbers<[1], [0], [0], [1], [0, 0, 1, 1], [], []>} : vector<8x8xbf16>, vector<8x16xbf16>, vector<8x16xf32> -> vector<8x16xf32>
    %c3_i32_44 = arith.constant 3 : i32
    %152 = arith.cmpi eq, %arg0, %c3_i32_44 : i32
    %153 = arith.extui %152 : i1 to i32
    %c0_i32_45 = arith.constant 0 : i32
    %154 = arith.cmpi ne, %153, %c0_i32_45 : i32
    scf.if %154 {
      %c4 = arith.constant 4 : index
      %c0_71 = arith.constant 0 : index
      %c0_72 = arith.constant 0 : index
      %244 = vector.load %arg7[%c4, %c0_71, %c0_72] : memref<8x8x8xf32, #tpu.memory_space<vmem>>, vector<1x8x8xf32>
      %245 = vector.shape_cast %244 : vector<1x8x8xf32> to vector<8x8xf32>
      %246 = vector.shape_cast %148 : vector<8x8xf32> to vector<1x8x8xf32>
      tpu.vector_store %arg7[%c4, %c0_71, %c0_72], %246 {strides = array<i32>} : memref<8x8x8xf32, #tpu.memory_space<vmem>>, vector<1x8x8xf32>,
    } else {
    }
    %155 = vector.extract_strided_slice %17 {offsets = [0, 5], sizes = [8, 1], strides = [1, 1]} : vector<8x8xf32> to vector<8x1xf32>
    %156 = vector.extract_strided_slice %18 {offsets = [5, 0], sizes = [1, 8], strides = [1, 1]} : vector<8x8xf32> to vector<1x8xf32>
    %157 = vector.broadcast %155 : vector<8x1xf32> to vector<8x8xf32>
    %158 = vector.broadcast %156 : vector<1x8xf32> to vector<8x8xf32>
    %159 = arith.addf %157, %158 : vector<8x8xf32>
    %cst_46 = arith.constant 0.000000e+00 : f32
    %160 = vector.broadcast %cst_46 : f32 to vector<8x8xf32>
    %161 = arith.cmpf ogt, %159, %160 : vector<8x8xf32>
    %cst_47 = arith.constant 2.000000e-01 : f32
    %162 = vector.broadcast %cst_47 : f32 to vector<8x8xf32>
    %163 = arith.mulf %162, %159 : vector<8x8xf32>
    %164 = arith.select %161, %159, %163 : vector<8x8xi1>, vector<8x8xf32>
    %165 = arith.addf %164, %15 : vector<8x8xf32>
    %cst_48 = arith.constant dense<0xFF800000> : vector<8xf32>
    %166 = vector.multi_reduction <maximumf>, %165, %cst_48 [1] : vector<8x8xf32> to vector<8xf32>
    %167 = vector.shape_cast %166 : vector<8xf32> to vector<8x1xf32>
    %168 = vector.broadcast %167 : vector<8x1xf32> to vector<8x8xf32>
    %169 = arith.subf %165, %168 : vector<8x8xf32>
    %170 = math.exp %169 : vector<8x8xf32>
    %cst_49 = arith.constant dense<0.000000e+00> : vector<8xf32>
    %171 = vector.multi_reduction <add>, %170, %cst_49 [1] : vector<8x8xf32> to vector<8xf32>
    %172 = vector.shape_cast %171 : vector<8xf32> to vector<8x1xf32>
    %173 = tpu.reciprocal %172 : vector<8x1xf32> -> vector<8x1xf32>
    %174 = vector.broadcast %173 : vector<8x1xf32> to vector<8x8xf32>
    %175 = arith.mulf %170, %174 : vector<8x8xf32>
    %176 = arith.truncf %175 : vector<8x8xf32> to vector<8x8xbf16>
    %177 = vector.extract_strided_slice %19 {offsets = [0, 80], sizes = [8, 16], strides = [1, 1]} : vector<8x128xbf16> to vector<8x16xbf16>
    %cst_50 = arith.constant dense<0.000000e+00> : vector<8x16xf32>
    %178 = tpu.matmul %176, %177, %cst_50 {dimension_numbers = #tpu.dot_dimension_numbers<[1], [0], [0], [1], [0, 0, 1, 1], [], []>} : vector<8x8xbf16>, vector<8x16xbf16>, vector<8x16xf32> -> vector<8x16xf32>
    %c3_i32_51 = arith.constant 3 : i32
    %179 = arith.cmpi eq, %arg0, %c3_i32_51 : i32
    %180 = arith.extui %179 : i1 to i32
    %c0_i32_52 = arith.constant 0 : i32
    %181 = arith.cmpi ne, %180, %c0_i32_52 : i32
    scf.if %181 {
      %c5 = arith.constant 5 : index
      %c0_71 = arith.constant 0 : index
      %c0_72 = arith.constant 0 : index
      %244 = vector.load %arg7[%c5, %c0_71, %c0_72] : memref<8x8x8xf32, #tpu.memory_space<vmem>>, vector<1x8x8xf32>
      %245 = vector.shape_cast %244 : vector<1x8x8xf32> to vector<8x8xf32>
      %246 = vector.shape_cast %175 : vector<8x8xf32> to vector<1x8x8xf32>
      tpu.vector_store %arg7[%c5, %c0_71, %c0_72], %246 {strides = array<i32>} : memref<8x8x8xf32, #tpu.memory_space<vmem>>, vector<1x8x8xf32>,
    } else {
    }
    %182 = vector.extract_strided_slice %17 {offsets = [0, 6], sizes = [8, 1], strides = [1, 1]} : vector<8x8xf32> to vector<8x1xf32>
    %183 = vector.extract_strided_slice %18 {offsets = [6, 0], sizes = [1, 8], strides = [1, 1]} : vector<8x8xf32> to vector<1x8xf32>
    %184 = vector.broadcast %182 : vector<8x1xf32> to vector<8x8xf32>
    %185 = vector.broadcast %183 : vector<1x8xf32> to vector<8x8xf32>
    %186 = arith.addf %184, %185 : vector<8x8xf32>
    %cst_53 = arith.constant 0.000000e+00 : f32
    %187 = vector.broadcast %cst_53 : f32 to vector<8x8xf32>
    %188 = arith.cmpf ogt, %186, %187 : vector<8x8xf32>
    %cst_54 = arith.constant 2.000000e-01 : f32
    %189 = vector.broadcast %cst_54 : f32 to vector<8x8xf32>
    %190 = arith.mulf %189, %186 : vector<8x8xf32>
    %191 = arith.select %188, %186, %190 : vector<8x8xi1>, vector<8x8xf32>
    %192 = arith.addf %191, %15 : vector<8x8xf32>
    %cst_55 = arith.constant dense<0xFF800000> : vector<8xf32>
    %193 = vector.multi_reduction <maximumf>, %192, %cst_55 [1] : vector<8x8xf32> to vector<8xf32>
    %194 = vector.shape_cast %193 : vector<8xf32> to vector<8x1xf32>
    %195 = vector.broadcast %194 : vector<8x1xf32> to vector<8x8xf32>
    %196 = arith.subf %192, %195 : vector<8x8xf32>
    %197 = math.exp %196 : vector<8x8xf32>
    %cst_56 = arith.constant dense<0.000000e+00> : vector<8xf32>
    %198 = vector.multi_reduction <add>, %197, %cst_56 [1] : vector<8x8xf32> to vector<8xf32>
    %199 = vector.shape_cast %198 : vector<8xf32> to vector<8x1xf32>
    %200 = tpu.reciprocal %199 : vector<8x1xf32> -> vector<8x1xf32>
    %201 = vector.broadcast %200 : vector<8x1xf32> to vector<8x8xf32>
    %202 = arith.mulf %197, %201 : vector<8x8xf32>
    %203 = arith.truncf %202 : vector<8x8xf32> to vector<8x8xbf16>
    %204 = vector.extract_strided_slice %19 {offsets = [0, 96], sizes = [8, 16], strides = [1, 1]} : vector<8x128xbf16> to vector<8x16xbf16>
    %cst_57 = arith.constant dense<0.000000e+00> : vector<8x16xf32>
    %205 = tpu.matmul %203, %204, %cst_57 {dimension_numbers = #tpu.dot_dimension_numbers<[1], [0], [0], [1], [0, 0, 1, 1], [], []>} : vector<8x8xbf16>, vector<8x16xbf16>, vector<8x16xf32> -> vector<8x16xf32>
    %c3_i32_58 = arith.constant 3 : i32
    %206 = arith.cmpi eq, %arg0, %c3_i32_58 : i32
    %207 = arith.extui %206 : i1 to i32
    %c0_i32_59 = arith.constant 0 : i32
    %208 = arith.cmpi ne, %207, %c0_i32_59 : i32
    scf.if %208 {
      %c6 = arith.constant 6 : index
      %c0_71 = arith.constant 0 : index
      %c0_72 = arith.constant 0 : index
      %244 = vector.load %arg7[%c6, %c0_71, %c0_72] : memref<8x8x8xf32, #tpu.memory_space<vmem>>, vector<1x8x8xf32>
      %245 = vector.shape_cast %244 : vector<1x8x8xf32> to vector<8x8xf32>
      %246 = vector.shape_cast %202 : vector<8x8xf32> to vector<1x8x8xf32>
      tpu.vector_store %arg7[%c6, %c0_71, %c0_72], %246 {strides = array<i32>} : memref<8x8x8xf32, #tpu.memory_space<vmem>>, vector<1x8x8xf32>,
    } else {
    }
    %209 = vector.extract_strided_slice %17 {offsets = [0, 7], sizes = [8, 1], strides = [1, 1]} : vector<8x8xf32> to vector<8x1xf32>
    %210 = vector.extract_strided_slice %18 {offsets = [7, 0], sizes = [1, 8], strides = [1, 1]} : vector<8x8xf32> to vector<1x8xf32>
    %211 = vector.broadcast %209 : vector<8x1xf32> to vector<8x8xf32>
    %212 = vector.broadcast %210 : vector<1x8xf32> to vector<8x8xf32>
    %213 = arith.addf %211, %212 : vector<8x8xf32>
    %cst_60 = arith.constant 0.000000e+00 : f32
    %214 = vector.broadcast %cst_60 : f32 to vector<8x8xf32>
    %215 = arith.cmpf ogt, %213, %214 : vector<8x8xf32>
    %cst_61 = arith.constant 2.000000e-01 : f32
    %216 = vector.broadcast %cst_61 : f32 to vector<8x8xf32>
    %217 = arith.mulf %216, %213 : vector<8x8xf32>
    %218 = arith.select %215, %213, %217 : vector<8x8xi1>, vector<8x8xf32>
    %219 = arith.addf %218, %15 : vector<8x8xf32>
    %cst_62 = arith.constant dense<0xFF800000> : vector<8xf32>
    %220 = vector.multi_reduction <maximumf>, %219, %cst_62 [1] : vector<8x8xf32> to vector<8xf32>
    %221 = vector.shape_cast %220 : vector<8xf32> to vector<8x1xf32>
    %222 = vector.broadcast %221 : vector<8x1xf32> to vector<8x8xf32>
    %223 = arith.subf %219, %222 : vector<8x8xf32>
    %224 = math.exp %223 : vector<8x8xf32>
    %cst_63 = arith.constant dense<0.000000e+00> : vector<8xf32>
    %225 = vector.multi_reduction <add>, %224, %cst_63 [1] : vector<8x8xf32> to vector<8xf32>
    %226 = vector.shape_cast %225 : vector<8xf32> to vector<8x1xf32>
    %227 = tpu.reciprocal %226 : vector<8x1xf32> -> vector<8x1xf32>
    %228 = vector.broadcast %227 : vector<8x1xf32> to vector<8x8xf32>
    %229 = arith.mulf %224, %228 : vector<8x8xf32>
    %230 = arith.truncf %229 : vector<8x8xf32> to vector<8x8xbf16>
    %231 = vector.extract_strided_slice %19 {offsets = [0, 112], sizes = [8, 16], strides = [1, 1]} : vector<8x128xbf16> to vector<8x16xbf16>
    %cst_64 = arith.constant dense<0.000000e+00> : vector<8x16xf32>
    %232 = tpu.matmul %230, %231, %cst_64 {dimension_numbers = #tpu.dot_dimension_numbers<[1], [0], [0], [1], [0, 0, 1, 1], [], []>} : vector<8x8xbf16>, vector<8x16xbf16>, vector<8x16xf32> -> vector<8x16xf32>
    %c3_i32_65 = arith.constant 3 : i32
    %233 = arith.cmpi eq, %arg0, %c3_i32_65 : i32
    %234 = arith.extui %233 : i1 to i32
    %c0_i32_66 = arith.constant 0 : i32
    %235 = arith.cmpi ne, %234, %c0_i32_66 : i32
    scf.if %235 {
      %c7 = arith.constant 7 : index
      %c0_71 = arith.constant 0 : index
      %c0_72 = arith.constant 0 : index
      %244 = vector.load %arg7[%c7, %c0_71, %c0_72] : memref<8x8x8xf32, #tpu.memory_space<vmem>>, vector<1x8x8xf32>
      %245 = vector.shape_cast %244 : vector<1x8x8xf32> to vector<8x8xf32>
      %246 = vector.shape_cast %229 : vector<8x8xf32> to vector<1x8x8xf32>
      tpu.vector_store %arg7[%c7, %c0_71, %c0_72], %246 {strides = array<i32>} : memref<8x8x8xf32, #tpu.memory_space<vmem>>, vector<1x8x8xf32>,
    } else {
    }
    %236 = tpu.concatenate %43, %70, %97, %124, %151, %178, %205, %232 in 1 : vector<8x16xf32>, vector<8x16xf32>, vector<8x16xf32>, vector<8x16xf32>, vector<8x16xf32>, vector<8x16xf32>, vector<8x16xf32>, vector<8x16xf32> -> vector<8x128xf32>
    %237 = arith.truncf %236 : vector<8x128xf32> to vector<8x128xbf16>
    %c0_67 = arith.constant 0 : index
    %c0_68 = arith.constant 0 : index
    %c0_69 = arith.constant 0 : index
    %238 = vector.load %arg6[%c0_67, %c0_68, %c0_69] : memref<1x8x128xbf16, #tpu.memory_space<vmem>>, vector<1x8x128xbf16>
    %239 = vector.shape_cast %238 : vector<1x8x128xbf16> to vector<8x128xbf16>
    %240 = vector.shape_cast %237 : vector<8x128xbf16> to vector<1x8x128xbf16>
    tpu.vector_store %arg6[%c0_67, %c0_68, %c0_69], %240 {strides = array<i32>} : memref<1x8x128xbf16, #tpu.memory_space<vmem>>, vector<1x8x128xbf16>,
    %241 = arith.truncf %236 : vector<8x128xf32> to vector<8x128xbf16>
    %242 = arith.index_cast %9 : i32 to index
    %c0_70 = arith.constant 0 : index
    %243 = vector.load %arg8[%242, %c0_70] : memref<8x128xbf16, #tpu.memory_space<vmem>>, vector<8x128xbf16>
    tpu.vector_store %arg8[%242, %c0_70], %241 {strides = array<i32>} : memref<8x128xbf16, #tpu.memory_space<vmem>>, vector<8x128xbf16>,
    return
  }
  func.func @transform_0(%arg0: i32, %arg1: i32) -> (i32, i32) {
    %c0_i32 = arith.constant 0 : i32
    %c0_i32_0 = arith.constant 0 : i32
    %c0_i32_1 = arith.constant 0 : i32
    return %c0_i32, %c0_i32_0 : i32, i32
  }
  func.func @transform_1(%arg0: i32, %arg1: i32) -> (i32, i32) {
    %c0_i32 = arith.constant 0 : i32
    %c0_i32_0 = arith.constant 0 : i32
    return %arg1, %c0_i32 : i32, i32
  }
  func.func @transform_2(%arg0: i32, %arg1: i32) -> (i32, i32) {
    %c0_i32 = arith.constant 0 : i32
    %c0_i32_0 = arith.constant 0 : i32
    %c0_i32_1 = arith.constant 0 : i32
    return %c0_i32, %c0_i32_0 : i32, i32
  }
  func.func @transform_3(%arg0: i32, %arg1: i32) -> (i32, i32) {
    %c0_i32 = arith.constant 0 : i32
    %c0_i32_0 = arith.constant 0 : i32
    %c0_i32_1 = arith.constant 0 : i32
    return %c0_i32, %c0_i32_0 : i32, i32
  }
  func.func @transform_4(%arg0: i32, %arg1: i32) -> (i32, i32, i32) {
    %c0_i32 = arith.constant 0 : i32
    %c0_i32_0 = arith.constant 0 : i32
    return %arg0, %arg1, %c0_i32 : i32, i32, i32
  }
  func.func @transform_5(%arg0: i32, %arg1: i32) -> (i32, i32, i32) {
    %c0_i32 = arith.constant 0 : i32
    %c0_i32_0 = arith.constant 0 : i32
    %c0_i32_1 = arith.constant 0 : i32
    return %c0_i32, %arg1, %c0_i32_0 : i32, i32, i32
  }
}

module attributes {stable_mosaic.version = 11 : i64} {
  func.func @_lstm_jk_kernel(%arg0: i32, %arg1: memref<4x8x128xbf16, #tpu.memory_space<vmem>>, %arg2: memref<128x512xbf16, #tpu.memory_space<vmem>>, %arg3: memref<128x512xbf16, #tpu.memory_space<vmem>>, %arg4: memref<1x512xf32, #tpu.memory_space<vmem>>, %arg5: memref<128x512xbf16, #tpu.memory_space<vmem>>, %arg6: memref<128x512xbf16, #tpu.memory_space<vmem>>, %arg7: memref<1x512xf32, #tpu.memory_space<vmem>>, %arg8: memref<8x128xf32, #tpu.memory_space<vmem>>) attributes {dimension_semantics = [#tpu.dimension_semantics<parallel>], iteration_bounds = array<i64: 1>, scalar_prefetch = 0 : i64, scratch_operands = 0 : i64, tpu.core_type = #tpu.core_type<tc>, window_params = [{transform_indices = @transform_0, window_bounds = array<i64: 4, 8, 128>}, {pipeline_mode = #tpu.pipeline_mode<synchronous>, transform_indices = @transform_1, window_bounds = array<i64: 128, 512>}, {pipeline_mode = #tpu.pipeline_mode<synchronous>, transform_indices = @transform_2, window_bounds = array<i64: 128, 512>}, {pipeline_mode = #tpu.pipeline_mode<synchronous>, transform_indices = @transform_3, window_bounds = array<i64: 1, 512>}, {pipeline_mode = #tpu.pipeline_mode<synchronous>, transform_indices = @transform_4, window_bounds = array<i64: 128, 512>}, {pipeline_mode = #tpu.pipeline_mode<synchronous>, transform_indices = @transform_5, window_bounds = array<i64: 128, 512>}, {pipeline_mode = #tpu.pipeline_mode<synchronous>, transform_indices = @transform_6, window_bounds = array<i64: 1, 512>}, {transform_indices = @transform_7, window_bounds = array<i64: 8, 128>}]} {
    %c0 = arith.constant 0 : index
    %c0_0 = arith.constant 0 : index
    %0 = vector.load %arg2[%c0, %c0_0] : memref<128x512xbf16, #tpu.memory_space<vmem>>, vector<128x512xbf16>
    %c0_1 = arith.constant 0 : index
    %c0_2 = arith.constant 0 : index
    %1 = vector.load %arg3[%c0_1, %c0_2] : memref<128x512xbf16, #tpu.memory_space<vmem>>, vector<128x512xbf16>
    %c0_3 = arith.constant 0 : index
    %c0_4 = arith.constant 0 : index
    %2 = vector.load %arg5[%c0_3, %c0_4] : memref<128x512xbf16, #tpu.memory_space<vmem>>, vector<128x512xbf16>
    %c0_5 = arith.constant 0 : index
    %c0_6 = arith.constant 0 : index
    %3 = vector.load %arg6[%c0_5, %c0_6] : memref<128x512xbf16, #tpu.memory_space<vmem>>, vector<128x512xbf16>
    %c0_7 = arith.constant 0 : index
    %c0_8 = arith.constant 0 : index
    %4 = vector.load %arg4[%c0_7, %c0_8] : memref<1x512xf32, #tpu.memory_space<vmem>>, vector<1x512xf32>
    %c0_9 = arith.constant 0 : index
    %c0_10 = arith.constant 0 : index
    %5 = vector.load %arg7[%c0_9, %c0_10] : memref<1x512xf32, #tpu.memory_space<vmem>>, vector<1x512xf32>
    %cst = arith.constant 0.000000e+00 : f32
    %6 = vector.broadcast %cst : f32 to vector<8x128xf32>
    %c0_11 = arith.constant 0 : index
    %c0_12 = arith.constant 0 : index
    %c0_13 = arith.constant 0 : index
    %7 = vector.load %arg1[%c0_11, %c0_12, %c0_13] : memref<4x8x128xbf16, #tpu.memory_space<vmem>>, vector<1x8x128xbf16>
    %8 = vector.shape_cast %7 : vector<1x8x128xbf16> to vector<8x128xbf16>
    %c1 = arith.constant 1 : index
    %c0_14 = arith.constant 0 : index
    %c0_15 = arith.constant 0 : index
    %9 = vector.load %arg1[%c1, %c0_14, %c0_15] : memref<4x8x128xbf16, #tpu.memory_space<vmem>>, vector<1x8x128xbf16>
    %10 = vector.shape_cast %9 : vector<1x8x128xbf16> to vector<8x128xbf16>
    %c2 = arith.constant 2 : index
    %c0_16 = arith.constant 0 : index
    %c0_17 = arith.constant 0 : index
    %11 = vector.load %arg1[%c2, %c0_16, %c0_17] : memref<4x8x128xbf16, #tpu.memory_space<vmem>>, vector<1x8x128xbf16>
    %12 = vector.shape_cast %11 : vector<1x8x128xbf16> to vector<8x128xbf16>
    %c3 = arith.constant 3 : index
    %c0_18 = arith.constant 0 : index
    %c0_19 = arith.constant 0 : index
    %13 = vector.load %arg1[%c3, %c0_18, %c0_19] : memref<4x8x128xbf16, #tpu.memory_space<vmem>>, vector<1x8x128xbf16>
    %14 = vector.shape_cast %13 : vector<1x8x128xbf16> to vector<8x128xbf16>
    %15 = tpu.concatenate %8, %10, %12, %14 in 0 : vector<8x128xbf16>, vector<8x128xbf16>, vector<8x128xbf16>, vector<8x128xbf16> -> vector<32x128xbf16>
    %cst_20 = arith.constant dense<0.000000e+00> : vector<32x512xf32>
    %16 = tpu.matmul %15, %0, %cst_20 {dimension_numbers = #tpu.dot_dimension_numbers<[1], [0], [0], [1], [0, 0, 1, 1], [], []>} : vector<32x128xbf16>, vector<128x512xbf16>, vector<32x512xf32> -> vector<32x512xf32>
    %17 = vector.broadcast %4 : vector<1x512xf32> to vector<32x512xf32>
    %18 = arith.addf %16, %17 : vector<32x512xf32>
    %19 = vector.extract_strided_slice %18 {offsets = [0, 0], sizes = [8, 512], strides = [1, 1]} : vector<32x512xf32> to vector<8x512xf32>
    %20 = arith.truncf %6 : vector<8x128xf32> to vector<8x128xbf16>
    %cst_21 = arith.constant dense<0.000000e+00> : vector<8x512xf32>
    %21 = tpu.matmul %20, %1, %cst_21 {dimension_numbers = #tpu.dot_dimension_numbers<[1], [0], [0], [1], [0, 0, 1, 1], [], []>} : vector<8x128xbf16>, vector<128x512xbf16>, vector<8x512xf32> -> vector<8x512xf32>
    %22 = arith.addf %19, %21 : vector<8x512xf32>
    %23 = vector.extract_strided_slice %22 {offsets = [0, 0], sizes = [8, 128], strides = [1, 1]} : vector<8x512xf32> to vector<8x128xf32>
    %24 = arith.negf %23 : vector<8x128xf32>
    %25 = math.exp %24 : vector<8x128xf32>
    %cst_22 = arith.constant 1.000000e+00 : f32
    %26 = vector.broadcast %cst_22 : f32 to vector<8x128xf32>
    %27 = arith.addf %26, %25 : vector<8x128xf32>
    %28 = arith.divf %26, %27 : vector<8x128xf32>
    %29 = vector.extract_strided_slice %22 {offsets = [0, 128], sizes = [8, 128], strides = [1, 1]} : vector<8x512xf32> to vector<8x128xf32>
    %30 = arith.negf %29 : vector<8x128xf32>
    %31 = math.exp %30 : vector<8x128xf32>
    %cst_23 = arith.constant 1.000000e+00 : f32
    %32 = vector.broadcast %cst_23 : f32 to vector<8x128xf32>
    %33 = arith.addf %32, %31 : vector<8x128xf32>
    %34 = arith.divf %32, %33 : vector<8x128xf32>
    %35 = vector.extract_strided_slice %22 {offsets = [0, 256], sizes = [8, 128], strides = [1, 1]} : vector<8x512xf32> to vector<8x128xf32>
    %36 = math.tanh %35 : vector<8x128xf32>
    %37 = vector.extract_strided_slice %22 {offsets = [0, 384], sizes = [8, 128], strides = [1, 1]} : vector<8x512xf32> to vector<8x128xf32>
    %38 = arith.negf %37 : vector<8x128xf32>
    %39 = math.exp %38 : vector<8x128xf32>
    %cst_24 = arith.constant 1.000000e+00 : f32
    %40 = vector.broadcast %cst_24 : f32 to vector<8x128xf32>
    %41 = arith.addf %40, %39 : vector<8x128xf32>
    %42 = arith.divf %40, %41 : vector<8x128xf32>
    %43 = arith.mulf %34, %6 : vector<8x128xf32>
    %44 = arith.mulf %28, %36 : vector<8x128xf32>
    %45 = arith.addf %43, %44 : vector<8x128xf32>
    %46 = math.tanh %45 : vector<8x128xf32>
    %47 = arith.mulf %42, %46 : vector<8x128xf32>
    %48 = arith.truncf %47 : vector<8x128xf32> to vector<8x128xbf16>
    %49 = vector.extract_strided_slice %18 {offsets = [8, 0], sizes = [8, 512], strides = [1, 1]} : vector<32x512xf32> to vector<8x512xf32>
    %50 = arith.truncf %47 : vector<8x128xf32> to vector<8x128xbf16>
    %cst_25 = arith.constant dense<0.000000e+00> : vector<8x512xf32>
    %51 = tpu.matmul %50, %1, %cst_25 {dimension_numbers = #tpu.dot_dimension_numbers<[1], [0], [0], [1], [0, 0, 1, 1], [], []>} : vector<8x128xbf16>, vector<128x512xbf16>, vector<8x512xf32> -> vector<8x512xf32>
    %52 = arith.addf %49, %51 : vector<8x512xf32>
    %53 = vector.extract_strided_slice %52 {offsets = [0, 0], sizes = [8, 128], strides = [1, 1]} : vector<8x512xf32> to vector<8x128xf32>
    %54 = arith.negf %53 : vector<8x128xf32>
    %55 = math.exp %54 : vector<8x128xf32>
    %cst_26 = arith.constant 1.000000e+00 : f32
    %56 = vector.broadcast %cst_26 : f32 to vector<8x128xf32>
    %57 = arith.addf %56, %55 : vector<8x128xf32>
    %58 = arith.divf %56, %57 : vector<8x128xf32>
    %59 = vector.extract_strided_slice %52 {offsets = [0, 128], sizes = [8, 128], strides = [1, 1]} : vector<8x512xf32> to vector<8x128xf32>
    %60 = arith.negf %59 : vector<8x128xf32>
    %61 = math.exp %60 : vector<8x128xf32>
    %cst_27 = arith.constant 1.000000e+00 : f32
    %62 = vector.broadcast %cst_27 : f32 to vector<8x128xf32>
    %63 = arith.addf %62, %61 : vector<8x128xf32>
    %64 = arith.divf %62, %63 : vector<8x128xf32>
    %65 = vector.extract_strided_slice %52 {offsets = [0, 256], sizes = [8, 128], strides = [1, 1]} : vector<8x512xf32> to vector<8x128xf32>
    %66 = math.tanh %65 : vector<8x128xf32>
    %67 = vector.extract_strided_slice %52 {offsets = [0, 384], sizes = [8, 128], strides = [1, 1]} : vector<8x512xf32> to vector<8x128xf32>
    %68 = arith.negf %67 : vector<8x128xf32>
    %69 = math.exp %68 : vector<8x128xf32>
    %cst_28 = arith.constant 1.000000e+00 : f32
    %70 = vector.broadcast %cst_28 : f32 to vector<8x128xf32>
    %71 = arith.addf %70, %69 : vector<8x128xf32>
    %72 = arith.divf %70, %71 : vector<8x128xf32>
    %73 = arith.mulf %64, %45 : vector<8x128xf32>
    %74 = arith.mulf %58, %66 : vector<8x128xf32>
    %75 = arith.addf %73, %74 : vector<8x128xf32>
    %76 = math.tanh %75 : vector<8x128xf32>
    %77 = arith.mulf %72, %76 : vector<8x128xf32>
    %78 = arith.truncf %77 : vector<8x128xf32> to vector<8x128xbf16>
    %79 = vector.extract_strided_slice %18 {offsets = [16, 0], sizes = [8, 512], strides = [1, 1]} : vector<32x512xf32> to vector<8x512xf32>
    %80 = arith.truncf %77 : vector<8x128xf32> to vector<8x128xbf16>
    %cst_29 = arith.constant dense<0.000000e+00> : vector<8x512xf32>
    %81 = tpu.matmul %80, %1, %cst_29 {dimension_numbers = #tpu.dot_dimension_numbers<[1], [0], [0], [1], [0, 0, 1, 1], [], []>} : vector<8x128xbf16>, vector<128x512xbf16>, vector<8x512xf32> -> vector<8x512xf32>
    %82 = arith.addf %79, %81 : vector<8x512xf32>
    %83 = vector.extract_strided_slice %82 {offsets = [0, 0], sizes = [8, 128], strides = [1, 1]} : vector<8x512xf32> to vector<8x128xf32>
    %84 = arith.negf %83 : vector<8x128xf32>
    %85 = math.exp %84 : vector<8x128xf32>
    %cst_30 = arith.constant 1.000000e+00 : f32
    %86 = vector.broadcast %cst_30 : f32 to vector<8x128xf32>
    %87 = arith.addf %86, %85 : vector<8x128xf32>
    %88 = arith.divf %86, %87 : vector<8x128xf32>
    %89 = vector.extract_strided_slice %82 {offsets = [0, 128], sizes = [8, 128], strides = [1, 1]} : vector<8x512xf32> to vector<8x128xf32>
    %90 = arith.negf %89 : vector<8x128xf32>
    %91 = math.exp %90 : vector<8x128xf32>
    %cst_31 = arith.constant 1.000000e+00 : f32
    %92 = vector.broadcast %cst_31 : f32 to vector<8x128xf32>
    %93 = arith.addf %92, %91 : vector<8x128xf32>
    %94 = arith.divf %92, %93 : vector<8x128xf32>
    %95 = vector.extract_strided_slice %82 {offsets = [0, 256], sizes = [8, 128], strides = [1, 1]} : vector<8x512xf32> to vector<8x128xf32>
    %96 = math.tanh %95 : vector<8x128xf32>
    %97 = vector.extract_strided_slice %82 {offsets = [0, 384], sizes = [8, 128], strides = [1, 1]} : vector<8x512xf32> to vector<8x128xf32>
    %98 = arith.negf %97 : vector<8x128xf32>
    %99 = math.exp %98 : vector<8x128xf32>
    %cst_32 = arith.constant 1.000000e+00 : f32
    %100 = vector.broadcast %cst_32 : f32 to vector<8x128xf32>
    %101 = arith.addf %100, %99 : vector<8x128xf32>
    %102 = arith.divf %100, %101 : vector<8x128xf32>
    %103 = arith.mulf %94, %75 : vector<8x128xf32>
    %104 = arith.mulf %88, %96 : vector<8x128xf32>
    %105 = arith.addf %103, %104 : vector<8x128xf32>
    %106 = math.tanh %105 : vector<8x128xf32>
    %107 = arith.mulf %102, %106 : vector<8x128xf32>
    %108 = arith.truncf %107 : vector<8x128xf32> to vector<8x128xbf16>
    %109 = vector.extract_strided_slice %18 {offsets = [24, 0], sizes = [8, 512], strides = [1, 1]} : vector<32x512xf32> to vector<8x512xf32>
    %110 = arith.truncf %107 : vector<8x128xf32> to vector<8x128xbf16>
    %cst_33 = arith.constant dense<0.000000e+00> : vector<8x512xf32>
    %111 = tpu.matmul %110, %1, %cst_33 {dimension_numbers = #tpu.dot_dimension_numbers<[1], [0], [0], [1], [0, 0, 1, 1], [], []>} : vector<8x128xbf16>, vector<128x512xbf16>, vector<8x512xf32> -> vector<8x512xf32>
    %112 = arith.addf %109, %111 : vector<8x512xf32>
    %113 = vector.extract_strided_slice %112 {offsets = [0, 0], sizes = [8, 128], strides = [1, 1]} : vector<8x512xf32> to vector<8x128xf32>
    %114 = arith.negf %113 : vector<8x128xf32>
    %115 = math.exp %114 : vector<8x128xf32>
    %cst_34 = arith.constant 1.000000e+00 : f32
    %116 = vector.broadcast %cst_34 : f32 to vector<8x128xf32>
    %117 = arith.addf %116, %115 : vector<8x128xf32>
    %118 = arith.divf %116, %117 : vector<8x128xf32>
    %119 = vector.extract_strided_slice %112 {offsets = [0, 128], sizes = [8, 128], strides = [1, 1]} : vector<8x512xf32> to vector<8x128xf32>
    %120 = arith.negf %119 : vector<8x128xf32>
    %121 = math.exp %120 : vector<8x128xf32>
    %cst_35 = arith.constant 1.000000e+00 : f32
    %122 = vector.broadcast %cst_35 : f32 to vector<8x128xf32>
    %123 = arith.addf %122, %121 : vector<8x128xf32>
    %124 = arith.divf %122, %123 : vector<8x128xf32>
    %125 = vector.extract_strided_slice %112 {offsets = [0, 256], sizes = [8, 128], strides = [1, 1]} : vector<8x512xf32> to vector<8x128xf32>
    %126 = math.tanh %125 : vector<8x128xf32>
    %127 = vector.extract_strided_slice %112 {offsets = [0, 384], sizes = [8, 128], strides = [1, 1]} : vector<8x512xf32> to vector<8x128xf32>
    %128 = arith.negf %127 : vector<8x128xf32>
    %129 = math.exp %128 : vector<8x128xf32>
    %cst_36 = arith.constant 1.000000e+00 : f32
    %130 = vector.broadcast %cst_36 : f32 to vector<8x128xf32>
    %131 = arith.addf %130, %129 : vector<8x128xf32>
    %132 = arith.divf %130, %131 : vector<8x128xf32>
    %133 = arith.mulf %124, %105 : vector<8x128xf32>
    %134 = arith.mulf %118, %126 : vector<8x128xf32>
    %135 = arith.addf %133, %134 : vector<8x128xf32>
    %136 = math.tanh %135 : vector<8x128xf32>
    %137 = arith.mulf %132, %136 : vector<8x128xf32>
    %138 = arith.truncf %137 : vector<8x128xf32> to vector<8x128xbf16>
    %139 = tpu.concatenate %48, %78, %108, %138 in 0 : vector<8x128xbf16>, vector<8x128xbf16>, vector<8x128xbf16>, vector<8x128xbf16> -> vector<32x128xbf16>
    %cst_37 = arith.constant dense<0.000000e+00> : vector<32x512xf32>
    %140 = tpu.matmul %139, %2, %cst_37 {dimension_numbers = #tpu.dot_dimension_numbers<[1], [0], [0], [1], [0, 0, 1, 1], [], []>} : vector<32x128xbf16>, vector<128x512xbf16>, vector<32x512xf32> -> vector<32x512xf32>
    %141 = vector.broadcast %5 : vector<1x512xf32> to vector<32x512xf32>
    %142 = arith.addf %140, %141 : vector<32x512xf32>
    %143 = vector.extract_strided_slice %142 {offsets = [0, 0], sizes = [8, 512], strides = [1, 1]} : vector<32x512xf32> to vector<8x512xf32>
    %144 = arith.truncf %6 : vector<8x128xf32> to vector<8x128xbf16>
    %cst_38 = arith.constant dense<0.000000e+00> : vector<8x512xf32>
    %145 = tpu.matmul %144, %3, %cst_38 {dimension_numbers = #tpu.dot_dimension_numbers<[1], [0], [0], [1], [0, 0, 1, 1], [], []>} : vector<8x128xbf16>, vector<128x512xbf16>, vector<8x512xf32> -> vector<8x512xf32>
    %146 = arith.addf %143, %145 : vector<8x512xf32>
    %147 = vector.extract_strided_slice %146 {offsets = [0, 0], sizes = [8, 128], strides = [1, 1]} : vector<8x512xf32> to vector<8x128xf32>
    %148 = arith.negf %147 : vector<8x128xf32>
    %149 = math.exp %148 : vector<8x128xf32>
    %cst_39 = arith.constant 1.000000e+00 : f32
    %150 = vector.broadcast %cst_39 : f32 to vector<8x128xf32>
    %151 = arith.addf %150, %149 : vector<8x128xf32>
    %152 = arith.divf %150, %151 : vector<8x128xf32>
    %153 = vector.extract_strided_slice %146 {offsets = [0, 128], sizes = [8, 128], strides = [1, 1]} : vector<8x512xf32> to vector<8x128xf32>
    %154 = arith.negf %153 : vector<8x128xf32>
    %155 = math.exp %154 : vector<8x128xf32>
    %cst_40 = arith.constant 1.000000e+00 : f32
    %156 = vector.broadcast %cst_40 : f32 to vector<8x128xf32>
    %157 = arith.addf %156, %155 : vector<8x128xf32>
    %158 = arith.divf %156, %157 : vector<8x128xf32>
    %159 = vector.extract_strided_slice %146 {offsets = [0, 256], sizes = [8, 128], strides = [1, 1]} : vector<8x512xf32> to vector<8x128xf32>
    %160 = math.tanh %159 : vector<8x128xf32>
    %161 = vector.extract_strided_slice %146 {offsets = [0, 384], sizes = [8, 128], strides = [1, 1]} : vector<8x512xf32> to vector<8x128xf32>
    %162 = arith.negf %161 : vector<8x128xf32>
    %163 = math.exp %162 : vector<8x128xf32>
    %cst_41 = arith.constant 1.000000e+00 : f32
    %164 = vector.broadcast %cst_41 : f32 to vector<8x128xf32>
    %165 = arith.addf %164, %163 : vector<8x128xf32>
    %166 = arith.divf %164, %165 : vector<8x128xf32>
    %167 = arith.mulf %158, %6 : vector<8x128xf32>
    %168 = arith.mulf %152, %160 : vector<8x128xf32>
    %169 = arith.addf %167, %168 : vector<8x128xf32>
    %170 = math.tanh %169 : vector<8x128xf32>
    %171 = arith.mulf %166, %170 : vector<8x128xf32>
    %172 = arith.addf %6, %171 : vector<8x128xf32>
    %173 = vector.extract_strided_slice %142 {offsets = [8, 0], sizes = [8, 512], strides = [1, 1]} : vector<32x512xf32> to vector<8x512xf32>
    %174 = arith.truncf %171 : vector<8x128xf32> to vector<8x128xbf16>
    %cst_42 = arith.constant dense<0.000000e+00> : vector<8x512xf32>
    %175 = tpu.matmul %174, %3, %cst_42 {dimension_numbers = #tpu.dot_dimension_numbers<[1], [0], [0], [1], [0, 0, 1, 1], [], []>} : vector<8x128xbf16>, vector<128x512xbf16>, vector<8x512xf32> -> vector<8x512xf32>
    %176 = arith.addf %173, %175 : vector<8x512xf32>
    %177 = vector.extract_strided_slice %176 {offsets = [0, 0], sizes = [8, 128], strides = [1, 1]} : vector<8x512xf32> to vector<8x128xf32>
    %178 = arith.negf %177 : vector<8x128xf32>
    %179 = math.exp %178 : vector<8x128xf32>
    %cst_43 = arith.constant 1.000000e+00 : f32
    %180 = vector.broadcast %cst_43 : f32 to vector<8x128xf32>
    %181 = arith.addf %180, %179 : vector<8x128xf32>
    %182 = arith.divf %180, %181 : vector<8x128xf32>
    %183 = vector.extract_strided_slice %176 {offsets = [0, 128], sizes = [8, 128], strides = [1, 1]} : vector<8x512xf32> to vector<8x128xf32>
    %184 = arith.negf %183 : vector<8x128xf32>
    %185 = math.exp %184 : vector<8x128xf32>
    %cst_44 = arith.constant 1.000000e+00 : f32
    %186 = vector.broadcast %cst_44 : f32 to vector<8x128xf32>
    %187 = arith.addf %186, %185 : vector<8x128xf32>
    %188 = arith.divf %186, %187 : vector<8x128xf32>
    %189 = vector.extract_strided_slice %176 {offsets = [0, 256], sizes = [8, 128], strides = [1, 1]} : vector<8x512xf32> to vector<8x128xf32>
    %190 = math.tanh %189 : vector<8x128xf32>
    %191 = vector.extract_strided_slice %176 {offsets = [0, 384], sizes = [8, 128], strides = [1, 1]} : vector<8x512xf32> to vector<8x128xf32>
    %192 = arith.negf %191 : vector<8x128xf32>
    %193 = math.exp %192 : vector<8x128xf32>
    %cst_45 = arith.constant 1.000000e+00 : f32
    %194 = vector.broadcast %cst_45 : f32 to vector<8x128xf32>
    %195 = arith.addf %194, %193 : vector<8x128xf32>
    %196 = arith.divf %194, %195 : vector<8x128xf32>
    %197 = arith.mulf %188, %169 : vector<8x128xf32>
    %198 = arith.mulf %182, %190 : vector<8x128xf32>
    %199 = arith.addf %197, %198 : vector<8x128xf32>
    %200 = math.tanh %199 : vector<8x128xf32>
    %201 = arith.mulf %196, %200 : vector<8x128xf32>
    %202 = arith.addf %172, %201 : vector<8x128xf32>
    %203 = vector.extract_strided_slice %142 {offsets = [16, 0], sizes = [8, 512], strides = [1, 1]} : vector<32x512xf32> to vector<8x512xf32>
    %204 = arith.truncf %201 : vector<8x128xf32> to vector<8x128xbf16>
    %cst_46 = arith.constant dense<0.000000e+00> : vector<8x512xf32>
    %205 = tpu.matmul %204, %3, %cst_46 {dimension_numbers = #tpu.dot_dimension_numbers<[1], [0], [0], [1], [0, 0, 1, 1], [], []>} : vector<8x128xbf16>, vector<128x512xbf16>, vector<8x512xf32> -> vector<8x512xf32>
    %206 = arith.addf %203, %205 : vector<8x512xf32>
    %207 = vector.extract_strided_slice %206 {offsets = [0, 0], sizes = [8, 128], strides = [1, 1]} : vector<8x512xf32> to vector<8x128xf32>
    %208 = arith.negf %207 : vector<8x128xf32>
    %209 = math.exp %208 : vector<8x128xf32>
    %cst_47 = arith.constant 1.000000e+00 : f32
    %210 = vector.broadcast %cst_47 : f32 to vector<8x128xf32>
    %211 = arith.addf %210, %209 : vector<8x128xf32>
    %212 = arith.divf %210, %211 : vector<8x128xf32>
    %213 = vector.extract_strided_slice %206 {offsets = [0, 128], sizes = [8, 128], strides = [1, 1]} : vector<8x512xf32> to vector<8x128xf32>
    %214 = arith.negf %213 : vector<8x128xf32>
    %215 = math.exp %214 : vector<8x128xf32>
    %cst_48 = arith.constant 1.000000e+00 : f32
    %216 = vector.broadcast %cst_48 : f32 to vector<8x128xf32>
    %217 = arith.addf %216, %215 : vector<8x128xf32>
    %218 = arith.divf %216, %217 : vector<8x128xf32>
    %219 = vector.extract_strided_slice %206 {offsets = [0, 256], sizes = [8, 128], strides = [1, 1]} : vector<8x512xf32> to vector<8x128xf32>
    %220 = math.tanh %219 : vector<8x128xf32>
    %221 = vector.extract_strided_slice %206 {offsets = [0, 384], sizes = [8, 128], strides = [1, 1]} : vector<8x512xf32> to vector<8x128xf32>
    %222 = arith.negf %221 : vector<8x128xf32>
    %223 = math.exp %222 : vector<8x128xf32>
    %cst_49 = arith.constant 1.000000e+00 : f32
    %224 = vector.broadcast %cst_49 : f32 to vector<8x128xf32>
    %225 = arith.addf %224, %223 : vector<8x128xf32>
    %226 = arith.divf %224, %225 : vector<8x128xf32>
    %227 = arith.mulf %218, %199 : vector<8x128xf32>
    %228 = arith.mulf %212, %220 : vector<8x128xf32>
    %229 = arith.addf %227, %228 : vector<8x128xf32>
    %230 = math.tanh %229 : vector<8x128xf32>
    %231 = arith.mulf %226, %230 : vector<8x128xf32>
    %232 = arith.addf %202, %231 : vector<8x128xf32>
    %233 = vector.extract_strided_slice %142 {offsets = [24, 0], sizes = [8, 512], strides = [1, 1]} : vector<32x512xf32> to vector<8x512xf32>
    %234 = arith.truncf %231 : vector<8x128xf32> to vector<8x128xbf16>
    %cst_50 = arith.constant dense<0.000000e+00> : vector<8x512xf32>
    %235 = tpu.matmul %234, %3, %cst_50 {dimension_numbers = #tpu.dot_dimension_numbers<[1], [0], [0], [1], [0, 0, 1, 1], [], []>} : vector<8x128xbf16>, vector<128x512xbf16>, vector<8x512xf32> -> vector<8x512xf32>
    %236 = arith.addf %233, %235 : vector<8x512xf32>
    %237 = vector.extract_strided_slice %236 {offsets = [0, 0], sizes = [8, 128], strides = [1, 1]} : vector<8x512xf32> to vector<8x128xf32>
    %238 = arith.negf %237 : vector<8x128xf32>
    %239 = math.exp %238 : vector<8x128xf32>
    %cst_51 = arith.constant 1.000000e+00 : f32
    %240 = vector.broadcast %cst_51 : f32 to vector<8x128xf32>
    %241 = arith.addf %240, %239 : vector<8x128xf32>
    %242 = arith.divf %240, %241 : vector<8x128xf32>
    %243 = vector.extract_strided_slice %236 {offsets = [0, 128], sizes = [8, 128], strides = [1, 1]} : vector<8x512xf32> to vector<8x128xf32>
    %244 = arith.negf %243 : vector<8x128xf32>
    %245 = math.exp %244 : vector<8x128xf32>
    %cst_52 = arith.constant 1.000000e+00 : f32
    %246 = vector.broadcast %cst_52 : f32 to vector<8x128xf32>
    %247 = arith.addf %246, %245 : vector<8x128xf32>
    %248 = arith.divf %246, %247 : vector<8x128xf32>
    %249 = vector.extract_strided_slice %236 {offsets = [0, 256], sizes = [8, 128], strides = [1, 1]} : vector<8x512xf32> to vector<8x128xf32>
    %250 = math.tanh %249 : vector<8x128xf32>
    %251 = vector.extract_strided_slice %236 {offsets = [0, 384], sizes = [8, 128], strides = [1, 1]} : vector<8x512xf32> to vector<8x128xf32>
    %252 = arith.negf %251 : vector<8x128xf32>
    %253 = math.exp %252 : vector<8x128xf32>
    %cst_53 = arith.constant 1.000000e+00 : f32
    %254 = vector.broadcast %cst_53 : f32 to vector<8x128xf32>
    %255 = arith.addf %254, %253 : vector<8x128xf32>
    %256 = arith.divf %254, %255 : vector<8x128xf32>
    %257 = arith.mulf %248, %229 : vector<8x128xf32>
    %258 = arith.mulf %242, %250 : vector<8x128xf32>
    %259 = arith.addf %257, %258 : vector<8x128xf32>
    %260 = math.tanh %259 : vector<8x128xf32>
    %261 = arith.mulf %256, %260 : vector<8x128xf32>
    %262 = arith.addf %232, %261 : vector<8x128xf32>
    %cst_54 = arith.constant 2.500000e-01 : f32
    %263 = vector.broadcast %cst_54 : f32 to vector<8x128xf32>
    %264 = arith.mulf %262, %263 : vector<8x128xf32>
    %c0_55 = arith.constant 0 : index
    %c0_56 = arith.constant 0 : index
    %265 = vector.load %arg8[%c0_55, %c0_56] : memref<8x128xf32, #tpu.memory_space<vmem>>, vector<8x128xf32>
    tpu.vector_store %arg8[%c0_55, %c0_56], %264 {strides = array<i32>} : memref<8x128xf32, #tpu.memory_space<vmem>>, vector<8x128xf32>,
    return
  }
  func.func @transform_0(%arg0: i32) -> (i32, i32, i32) {
    %c0_i32 = arith.constant 0 : i32
    %c0_i32_0 = arith.constant 0 : i32
    %c0_i32_1 = arith.constant 0 : i32
    return %c0_i32, %arg0, %c0_i32_0 : i32, i32, i32
  }
  func.func @transform_1(%arg0: i32) -> (i32, i32) {
    %c0_i32 = arith.constant 0 : i32
    %c0_i32_0 = arith.constant 0 : i32
    %c0_i32_1 = arith.constant 0 : i32
    return %c0_i32, %c0_i32_0 : i32, i32
  }
  func.func @transform_2(%arg0: i32) -> (i32, i32) {
    %c0_i32 = arith.constant 0 : i32
    %c0_i32_0 = arith.constant 0 : i32
    %c0_i32_1 = arith.constant 0 : i32
    return %c0_i32, %c0_i32_0 : i32, i32
  }
  func.func @transform_3(%arg0: i32) -> (i32, i32) {
    %c0_i32 = arith.constant 0 : i32
    %c0_i32_0 = arith.constant 0 : i32
    %c0_i32_1 = arith.constant 0 : i32
    return %c0_i32, %c0_i32_0 : i32, i32
  }
  func.func @transform_4(%arg0: i32) -> (i32, i32) {
    %c0_i32 = arith.constant 0 : i32
    %c0_i32_0 = arith.constant 0 : i32
    %c0_i32_1 = arith.constant 0 : i32
    return %c0_i32, %c0_i32_0 : i32, i32
  }
  func.func @transform_5(%arg0: i32) -> (i32, i32) {
    %c0_i32 = arith.constant 0 : i32
    %c0_i32_0 = arith.constant 0 : i32
    %c0_i32_1 = arith.constant 0 : i32
    return %c0_i32, %c0_i32_0 : i32, i32
  }
  func.func @transform_6(%arg0: i32) -> (i32, i32) {
    %c0_i32 = arith.constant 0 : i32
    %c0_i32_0 = arith.constant 0 : i32
    %c0_i32_1 = arith.constant 0 : i32
    return %c0_i32, %c0_i32_0 : i32, i32
  }
  func.func @transform_7(%arg0: i32) -> (i32, i32) {
    %c0_i32 = arith.constant 0 : i32
    %c0_i32_0 = arith.constant 0 : i32
    return %arg0, %c0_i32 : i32, i32
  }
}

</mosaic_0001>

<llo_original>
// kernel: _lambda_.3
$region0: #{_lambda_.3}
  #allocation0 [shape = 'u32[]', space=smem, size = 0x4, offset = 0x4, fixed_abs, tag = 'smem constant byte address 0x4 - core index']
  #allocation1 [shape = 'u32[144,128]{1,0:T(1,128)}', space=vmem, size = 0x12000, scoped, tag = 'internal scratch']
  %s0 = inlined_call_operand.vmem [shape: bf16[8,768], index: 0, kind: input, shape index: {}]
  %s1 = inlined_call_operand.vmem [shape: bf16[768,256], index: 1, kind: input, shape index: {}]
  %s2 = inlined_call_operand.vmem [shape: f32[1,256], index: 2, kind: input, shape index: {}]
  %s3 = inlined_call_operand.vmem [shape: bf16[256,128], index: 3, kind: input, shape index: {}]
  %s4 = inlined_call_operand.vmem [shape: f32[1,128], index: 4, kind: input, shape index: {}]
  %s5 = inlined_call_operand.vmem [shape: bf16[8,128], index: 5, kind: output, shape index: {}]
  %s6 = sld [smem:[#allocation0]]
  $region30: #{_lambda_.3} parent=0
    _
  %s8 = ssub.s32 1, %s6
  %s9 = scalar_select 0, %s8, %s6
  // Predicated region
  $region2: #{_lambda_.3} parent=0 // pred_check
    _
  $region3: #{_lambda_.3} parent=0 // pred_check_branch
    %11 = sbr.rel (0) target = $region5
  $region4: #{_lambda_.3} parent=0 // pred_region
    _
  $region5: #{_lambda_.3} parent=0 // pred_fallthru
    _
  // Predicated region
  $region6: #{_lambda_.3} parent=0 // pred_check
    _
  $region7: #{_lambda_.3} parent=0 // pred_check_branch
    %13 = sbr.rel (0) target = $region9
  $region8: #{_lambda_.3} parent=0 // pred_region
    _
  $region9: #{_lambda_.3} parent=0 // pred_fallthru
    _
  // Predicated region
  $region10: #{_lambda_.3} parent=0 // pred_check
    _
  $region11: #{_lambda_.3} parent=0 // pred_check_branch
    %15 = sbr.rel (0) target = $region13
  $region12: #{_lambda_.3} parent=0 // pred_region
    _
  $region13: #{_lambda_.3} parent=0 // pred_fallthru
    _
  // Predicated region
  $region14: #{_lambda_.3} parent=0 // pred_check
    _
  $region15: #{_lambda_.3} parent=0 // pred_check_branch
    %17 = sbr.rel (0) target = $region17
  $region16: #{_lambda_.3} parent=0 // pred_region
    _
  $region17: #{_lambda_.3} parent=0 // pred_fallthru
    _
  // Predicated region
  $region18: #{_lambda_.3} parent=0 // pred_check
    _
  $region19: #{_lambda_.3} parent=0 // pred_check_branch
    %19 = sbr.rel (0) target = $region21
  $region20: #{_lambda_.3} parent=0 // pred_region
    _
  $region21: #{_lambda_.3} parent=0 // pred_fallthru
    _
  %v21 = vld [vmem:[%s0] sm:$0xff]
  %v22 = vld [vmem:[%s0 + $0x8] sm:$0xff]
  %v23 = vld [vmem:[%s0 + $0x10] sm:$0xff]
  %v24 = vld [vmem:[%s1] sm:$0xff]
  %v25 = vld [vmem:[%s1 + $0x8] sm:$0xff]
  %v26 = vld [vmem:[%s1 + $0x10] sm:$0xff]
  %v27 = vld [vmem:[%s1 + $0x18] sm:$0xff]
  %v28 = vld [vmem:[%s1 + $0x20] sm:$0xff]
  %v29 = vld [vmem:[%s1 + $0x28] sm:$0xff]
  %v30 = vld [vmem:[%s1 + $0x30] sm:$0xff]
  %v31 = vld [vmem:[%s1 + $0x38] sm:$0xff]
  %v32 = vld [vmem:[%s1 + $0x40] sm:$0xff]
  %v33 = vld [vmem:[%s1 + $0x48] sm:$0xff]
  %v34 = vld [vmem:[%s1 + $0x50] sm:$0xff]
  %v35 = vld [vmem:[%s1 + $0x58] sm:$0xff]
  %v36 = vld [vmem:[%s1 + $0x60] sm:$0xff]
  %v37 = vld [vmem:[%s1 + $0x68] sm:$0xff]
  %v38 = vld [vmem:[%s1 + $0x70] sm:$0xff]
  %v39 = vld [vmem:[%s1 + $0x78] sm:$0xff]
  %v40 = vld [vmem:[%s1 + $0x80] sm:$0xff]
  %v41 = vld [vmem:[%s1 + $0x88] sm:$0xff]
  %v42 = vld [vmem:[%s1 + $0x90] sm:$0xff]
  %v43 = vld [vmem:[%s1 + $0x98] sm:$0xff]
  %v44 = vld [vmem:[%s1 + $0xa0] sm:$0xff]
  %v45 = vld [vmem:[%s1 + $0xa8] sm:$0xff]
  %v46 = vld [vmem:[%s1 + $0xb0] sm:$0xff]
  %v47 = vld [vmem:[%s1 + $0xb8] sm:$0xff]
  %v48 = vld [vmem:[%s1 + $0xc0] sm:$0xff]
  %v49 = vld [vmem:[%s1 + $0xc8] sm:$0xff]
  %v50 = vld [vmem:[%s1 + $0xd0] sm:$0xff]
  %v51 = vld [vmem:[%s1 + $0xd8] sm:$0xff]
  %v52 = vld [vmem:[%s1 + $0xe0] sm:$0xff]
  %v53 = vld [vmem:[%s1 + $0xe8] sm:$0xff]
  %v54 = vld [vmem:[%s1 + $0xf0] sm:$0xff]
  %v55 = vld [vmem:[%s1 + $0xf8] sm:$0xff]
  %v56 = vld [vmem:[%s1 + $0x100] sm:$0xff]
  %v57 = vld [vmem:[%s1 + $0x108] sm:$0xff]
  %v58 = vld [vmem:[%s1 + $0x110] sm:$0xff]
  %v59 = vld [vmem:[%s1 + $0x118] sm:$0xff]
  %v60 = vld [vmem:[%s1 + $0x120] sm:$0xff]
  %v61 = vld [vmem:[%s1 + $0x128] sm:$0xff]
  %v62 = vld [vmem:[%s1 + $0x130] sm:$0xff]
  %v63 = vld [vmem:[%s1 + $0x138] sm:$0xff]
  %v64 = vld [vmem:[%s1 + $0x140] sm:$0xff]
  %v65 = vld [vmem:[%s1 + $0x148] sm:$0xff]
  %v66 = vld [vmem:[%s1 + $0x150] sm:$0xff]
  %v67 = vld [vmem:[%s1 + $0x158] sm:$0xff]
  %v68 = vld [vmem:[%s1 + $0x160] sm:$0xff]
  %v69 = vld [vmem:[%s1 + $0x168] sm:$0xff]
  %v70 = vld [vmem:[%s1 + $0x170] sm:$0xff]
  %v71 = vld [vmem:[%s1 + $0x178] sm:$0xff]
  %v72 = vld [vmem:[%s1 + $0x180] sm:$0xff]
  %v73 = vld [vmem:[%s1 + $0x188] sm:$0xff]
  %v74 = vld [vmem:[%s1 + $0x190] sm:$0xff]
  %v75 = vld [vmem:[%s1 + $0x198] sm:$0xff]
  %v76 = vld [vmem:[%s1 + $0x1a0] sm:$0xff]
  %v77 = vld [vmem:[%s1 + $0x1a8] sm:$0xff]
  %v78 = vld [vmem:[%s1 + $0x1b0] sm:$0xff]
  %v79 = vld [vmem:[%s1 + $0x1b8] sm:$0xff]
  %v80 = vld [vmem:[%s1 + $0x1c0] sm:$0xff]
  %v81 = vld [vmem:[%s1 + $0x1c8] sm:$0xff]
  %v82 = vld [vmem:[%s1 + $0x1d0] sm:$0xff]
  %v83 = vld [vmem:[%s1 + $0x1d8] sm:$0xff]
  %v84 = vld [vmem:[%s1 + $0x1e0] sm:$0xff]
  %v85 = vld [vmem:[%s1 + $0x1e8] sm:$0xff]
  %v86 = vld [vmem:[%s1 + $0x1f0] sm:$0xff]
  %v87 = vld [vmem:[%s1 + $0x1f8] sm:$0xff]
  %v88 = vld [vmem:[%s1 + $0x200] sm:$0xff]
  %v89 = vld [vmem:[%s1 + $0x208] sm:$0xff]
  %v90 = vld [vmem:[%s1 + $0x210] sm:$0xff]
  %v91 = vld [vmem:[%s1 + $0x218] sm:$0xff]
  %v92 = vld [vmem:[%s1 + $0x220] sm:$0xff]
  %v93 = vld [vmem:[%s1 + $0x228] sm:$0xff]
  %v94 = vld [vmem:[%s1 + $0x230] sm:$0xff]
  %v95 = vld [vmem:[%s1 + $0x238] sm:$0xff]
  %v96 = vld [vmem:[%s1 + $0x240] sm:$0xff]
  %v97 = vld [vmem:[%s1 + $0x248] sm:$0xff]
  %v98 = vld [vmem:[%s1 + $0x250] sm:$0xff]
  %v99 = vld [vmem:[%s1 + $0x258] sm:$0xff]
  %v100 = vld [vmem:[%s1 + $0x260] sm:$0xff]
  %v101 = vld [vmem:[%s1 + $0x268] sm:$0xff]
  %v102 = vld [vmem:[%s1 + $0x270] sm:$0xff]
  %v103 = vld [vmem:[%s1 + $0x278] sm:$0xff]
  %v104 = vld [vmem:[%s1 + $0x280] sm:$0xff]
  %v105 = vld [vmem:[%s1 + $0x288] sm:$0xff]
  %v106 = vld [vmem:[%s1 + $0x290] sm:$0xff]
  %v107 = vld [vmem:[%s1 + $0x298] sm:$0xff]
  %v108 = vld [vmem:[%s1 + $0x2a0] sm:$0xff]
  %v109 = vld [vmem:[%s1 + $0x2a8] sm:$0xff]
  %v110 = vld [vmem:[%s1 + $0x2b0] sm:$0xff]
  %v111 = vld [vmem:[%s1 + $0x2b8] sm:$0xff]
  %v112 = vld [vmem:[%s1 + $0x2c0] sm:$0xff]
  %v113 = vld [vmem:[%s1 + $0x2c8] sm:$0xff]
  %v114 = vld [vmem:[%s1 + $0x2d0] sm:$0xff]
  %v115 = vld [vmem:[%s1 + $0x2d8] sm:$0xff]
  %v116 = vld [vmem:[%s1 + $0x2e0] sm:$0xff]
  %v117 = vld [vmem:[%s1 + $0x2e8] sm:$0xff]
  %v118 = vld [vmem:[%s1 + $0x2f0] sm:$0xff]
  %v119 = vld [vmem:[%s1 + $0x2f8] sm:$0xff]
  %v120 = vld [vmem:[%s2] sm:$0x3]
  %v122 = vlaneseq
  %v123 = vshrl.u32 %v122, 7
  %v124 = vsub.s32 0, %v123
  %v125 = vrot.slane %v120, %v124
  %v126 = vlaneseq
  %v127 = vshrl.u32 %v126, 7
  %v128 = vsub.s32 1, %v127
  %v129 = vrot.slane %v120, %v128
  %v135 = vunpack.c.l.b16 %v21
  %v136 = vunpack.c.h.b16 %v21
  %v137 = vunpack.c.l.b16 %v22
  %v138 = vunpack.c.h.b16 %v22
  %v139 = vunpack.c.l.b16 %v23
  %v140 = vunpack.c.h.b16 %v23
  %v141 = vpack.c.b16 %v135, %v135
  %v142 = vpack.c.b16 %v136, %v136
  %v143 = vpack.c.b16 %v137, %v137
  %v144 = vpack.c.b16 %v138, %v138
  %v145 = vpack.c.b16 %v139, %v139
  %v146 = vpack.c.b16 %v140, %v140
  %v249 = vunpack.c.l.b16 %v24
  %v250 = vunpack.c.h.b16 %v24
  %v251 = vunpack.c.l.b16 %v25
  %v252 = vunpack.c.h.b16 %v25
  %v253 = vunpack.c.l.b16 %v26
  %v254 = vunpack.c.h.b16 %v26
  %v255 = vunpack.c.l.b16 %v27
  %v256 = vunpack.c.h.b16 %v27
  %v257 = vunpack.c.l.b16 %v28
  %v258 = vunpack.c.h.b16 %v28
  %v259 = vunpack.c.l.b16 %v29
  %v260 = vunpack.c.h.b16 %v29
  %v261 = vunpack.c.l.b16 %v30
  %v262 = vunpack.c.h.b16 %v30
  %v263 = vunpack.c.l.b16 %v31
  %v264 = vunpack.c.h.b16 %v31
  %v265 = vunpack.c.l.b16 %v32
  %v266 = vunpack.c.h.b16 %v32
  %v267 = vunpack.c.l.b16 %v33
  %v268 = vunpack.c.h.b16 %v33
  %v269 = vunpack.c.l.b16 %v34
  %v270 = vunpack.c.h.b16 %v34
  %v271 = vunpack.c.l.b16 %v35
  %v272 = vunpack.c.h.b16 %v35
  %v273 = vunpack.c.l.b16 %v36
  %v274 = vunpack.c.h.b16 %v36
  %v275 = vunpack.c.l.b16 %v37
  %v276 = vunpack.c.h.b16 %v37
  %v277 = vunpack.c.l.b16 %v38
  %v278 = vunpack.c.h.b16 %v38
  %v279 = vunpack.c.l.b16 %v39
  %v280 = vunpack.c.h.b16 %v39
  %v281 = vunpack.c.l.b16 %v40
  %v282 = vunpack.c.h.b16 %v40
  %v283 = vunpack.c.l.b16 %v41
  %v284 = vunpack.c.h.b16 %v41
  %v285 = vunpack.c.l.b16 %v42
  %v286 = vunpack.c.h.b16 %v42
  %v287 = vunpack.c.l.b16 %v43
  %v288 = vunpack.c.h.b16 %v43
  %v289 = vunpack.c.l.b16 %v44
  %v290 = vunpack.c.h.b16 %v44
  %v291 = vunpack.c.l.b16 %v45
  %v292 = vunpack.c.h.b16 %v45
  %v293 = vunpack.c.l.b16 %v46
  %v294 = vunpack.c.h.b16 %v46
  %v295 = vunpack.c.l.b16 %v47
  %v296 = vunpack.c.h.b16 %v47
  %v297 = vunpack.c.l.b16 %v48
  %v298 = vunpack.c.h.b16 %v48
  %v299 = vunpack.c.l.b16 %v49
  %v300 = vunpack.c.h.b16 %v49
  %v301 = vunpack.c.l.b16 %v50
  %v302 = vunpack.c.h.b16 %v50
  %v303 = vunpack.c.l.b16 %v51
  %v304 = vunpack.c.h.b16 %v51
  %v305 = vunpack.c.l.b16 %v52
  %v306 = vunpack.c.h.b16 %v52
  %v307 = vunpack.c.l.b16 %v53
  %v308 = vunpack.c.h.b16 %v53
  %v309 = vunpack.c.l.b16 %v54
  %v310 = vunpack.c.h.b16 %v54
  %v311 = vunpack.c.l.b16 %v55
  %v312 = vunpack.c.h.b16 %v55
  %v313 = vunpack.c.l.b16 %v56
  %v314 = vunpack.c.h.b16 %v56
  %v315 = vunpack.c.l.b16 %v57
  %v316 = vunpack.c.h.b16 %v57
  %v317 = vunpack.c.l.b16 %v58
  %v318 = vunpack.c.h.b16 %v58
  %v319 = vunpack.c.l.b16 %v59
  %v320 = vunpack.c.h.b16 %v59
  %v321 = vunpack.c.l.b16 %v60
  %v322 = vunpack.c.h.b16 %v60
  %v323 = vunpack.c.l.b16 %v61
  %v324 = vunpack.c.h.b16 %v61
  %v325 = vunpack.c.l.b16 %v62
  %v326 = vunpack.c.h.b16 %v62
  %v327 = vunpack.c.l.b16 %v63
  %v328 = vunpack.c.h.b16 %v63
  %v329 = vunpack.c.l.b16 %v64
  %v330 = vunpack.c.h.b16 %v64
  %v331 = vunpack.c.l.b16 %v65
  %v332 = vunpack.c.h.b16 %v65
  %v333 = vunpack.c.l.b16 %v66
  %v334 = vunpack.c.h.b16 %v66
  %v335 = vunpack.c.l.b16 %v67
  %v336 = vunpack.c.h.b16 %v67
  %v337 = vunpack.c.l.b16 %v68
  %v338 = vunpack.c.h.b16 %v68
  %v339 = vunpack.c.l.b16 %v69
  %v340 = vunpack.c.h.b16 %v69
  %v341 = vunpack.c.l.b16 %v70
  %v342 = vunpack.c.h.b16 %v70
  %v343 = vunpack.c.l.b16 %v71
  %v344 = vunpack.c.h.b16 %v71
  %v345 = vunpack.c.l.b16 %v72
  %v346 = vunpack.c.h.b16 %v72
  %v347 = vunpack.c.l.b16 %v73
  %v348 = vunpack.c.h.b16 %v73
  %v349 = vunpack.c.l.b16 %v74
  %v350 = vunpack.c.h.b16 %v74
  %v351 = vunpack.c.l.b16 %v75
  %v352 = vunpack.c.h.b16 %v75
  %v353 = vunpack.c.l.b16 %v76
  %v354 = vunpack.c.h.b16 %v76
  %v355 = vunpack.c.l.b16 %v77
  %v356 = vunpack.c.h.b16 %v77
  %v357 = vunpack.c.l.b16 %v78
  %v358 = vunpack.c.h.b16 %v78
  %v359 = vunpack.c.l.b16 %v79
  %v360 = vunpack.c.h.b16 %v79
  %v361 = vunpack.c.l.b16 %v80
  %v362 = vunpack.c.h.b16 %v80
  %v363 = vunpack.c.l.b16 %v81
  %v364 = vunpack.c.h.b16 %v81
  %v365 = vunpack.c.l.b16 %v82
  %v366 = vunpack.c.h.b16 %v82
  %v367 = vunpack.c.l.b16 %v83
  %v368 = vunpack.c.h.b16 %v83
  %v369 = vunpack.c.l.b16 %v84
  %v370 = vunpack.c.h.b16 %v84
  %v371 = vunpack.c.l.b16 %v85
  %v372 = vunpack.c.h.b16 %v85
  %v373 = vunpack.c.l.b16 %v86
  %v374 = vunpack.c.h.b16 %v86
  %v375 = vunpack.c.l.b16 %v87
  %v376 = vunpack.c.h.b16 %v87
  %v377 = vunpack.c.l.b16 %v88
  %v378 = vunpack.c.h.b16 %v88
  %v379 = vunpack.c.l.b16 %v89
  %v380 = vunpack.c.h.b16 %v89
  %v381 = vunpack.c.l.b16 %v90
  %v382 = vunpack.c.h.b16 %v90
  %v383 = vunpack.c.l.b16 %v91
  %v384 = vunpack.c.h.b16 %v91
  %v385 = vunpack.c.l.b16 %v92
  %v386 = vunpack.c.h.b16 %v92
  %v387 = vunpack.c.l.b16 %v93
  %v388 = vunpack.c.h.b16 %v93
  %v389 = vunpack.c.l.b16 %v94
  %v390 = vunpack.c.h.b16 %v94
  %v391 = vunpack.c.l.b16 %v95
  %v392 = vunpack.c.h.b16 %v95
  %v393 = vunpack.c.l.b16 %v96
  %v394 = vunpack.c.h.b16 %v96
  %v395 = vunpack.c.l.b16 %v97
  %v396 = vunpack.c.h.b16 %v97
  %v397 = vunpack.c.l.b16 %v98
  %v398 = vunpack.c.h.b16 %v98
  %v399 = vunpack.c.l.b16 %v99
  %v400 = vunpack.c.h.b16 %v99
  %v401 = vunpack.c.l.b16 %v100
  %v402 = vunpack.c.h.b16 %v100
  %v403 = vunpack.c.l.b16 %v101
  %v404 = vunpack.c.h.b16 %v101
  %v405 = vunpack.c.l.b16 %v102
  %v406 = vunpack.c.h.b16 %v102
  %v407 = vunpack.c.l.b16 %v103
  %v408 = vunpack.c.h.b16 %v103
  %v409 = vunpack.c.l.b16 %v104
  %v410 = vunpack.c.h.b16 %v104
  %v411 = vunpack.c.l.b16 %v105
  %v412 = vunpack.c.h.b16 %v105
  %v413 = vunpack.c.l.b16 %v106
  %v414 = vunpack.c.h.b16 %v106
  %v415 = vunpack.c.l.b16 %v107
  %v416 = vunpack.c.h.b16 %v107
  %v417 = vunpack.c.l.b16 %v108
  %v418 = vunpack.c.h.b16 %v108
  %v419 = vunpack.c.l.b16 %v109
  %v420 = vunpack.c.h.b16 %v109
  %v421 = vunpack.c.l.b16 %v110
  %v422 = vunpack.c.h.b16 %v110
  %v423 = vunpack.c.l.b16 %v111
  %v424 = vunpack.c.h.b16 %v111
  %v425 = vunpack.c.l.b16 %v112
  %v426 = vunpack.c.h.b16 %v112
  %v427 = vunpack.c.l.b16 %v113
  %v428 = vunpack.c.h.b16 %v113
  %v429 = vunpack.c.l.b16 %v114
  %v430 = vunpack.c.h.b16 %v114
  %v431 = vunpack.c.l.b16 %v115
  %v432 = vunpack.c.h.b16 %v115
  %v433 = vunpack.c.l.b16 %v116
  %v434 = vunpack.c.h.b16 %v116
  %v435 = vunpack.c.l.b16 %v117
  %v436 = vunpack.c.h.b16 %v117
  %v437 = vunpack.c.l.b16 %v118
  %v438 = vunpack.c.h.b16 %v118
  %v439 = vunpack.c.l.b16 %v119
  %v440 = vunpack.c.h.b16 %v119
  %v441 = vpack.c.b16 %v251, %v249
  %v442 = vpack.c.b16 %v252, %v250
  %v443 = vpack.c.b16 %v255, %v253
  %v444 = vpack.c.b16 %v256, %v254
  %v445 = vpack.c.b16 %v259, %v257
  %v446 = vpack.c.b16 %v260, %v258
  %v447 = vpack.c.b16 %v263, %v261
  %v448 = vpack.c.b16 %v264, %v262
  %v449 = vpack.c.b16 %v267, %v265
  %v450 = vpack.c.b16 %v268, %v266
  %v451 = vpack.c.b16 %v271, %v269
  %v452 = vpack.c.b16 %v272, %v270
  %v453 = vpack.c.b16 %v275, %v273
  %v454 = vpack.c.b16 %v276, %v274
  %v455 = vpack.c.b16 %v279, %v277
  %v456 = vpack.c.b16 %v280, %v278
  %v457 = vpack.c.b16 %v283, %v281
  %v458 = vpack.c.b16 %v284, %v282
  %v459 = vpack.c.b16 %v287, %v285
  %v460 = vpack.c.b16 %v288, %v286
  %v461 = vpack.c.b16 %v291, %v289
  %v462 = vpack.c.b16 %v292, %v290
  %v463 = vpack.c.b16 %v295, %v293
  %v464 = vpack.c.b16 %v296, %v294
  %v465 = vpack.c.b16 %v299, %v297
  %v466 = vpack.c.b16 %v300, %v298
  %v467 = vpack.c.b16 %v303, %v301
  %v468 = vpack.c.b16 %v304, %v302
  %v469 = vpack.c.b16 %v307, %v305
  %v470 = vpack.c.b16 %v308, %v306
  %v471 = vpack.c.b16 %v311, %v309
  %v472 = vpack.c.b16 %v312, %v310
  %v473 = vpack.c.b16 %v315, %v313
  %v474 = vpack.c.b16 %v316, %v314
  %v475 = vpack.c.b16 %v319, %v317
  %v476 = vpack.c.b16 %v320, %v318
  %v477 = vpack.c.b16 %v323, %v321
  %v478 = vpack.c.b16 %v324, %v322
  %v479 = vpack.c.b16 %v327, %v325
  %v480 = vpack.c.b16 %v328, %v326
  %v481 = vpack.c.b16 %v331, %v329
  %v482 = vpack.c.b16 %v332, %v330
  %v483 = vpack.c.b16 %v335, %v333
  %v484 = vpack.c.b16 %v336, %v334
  %v485 = vpack.c.b16 %v339, %v337
  %v486 = vpack.c.b16 %v340, %v338
  %v487 = vpack.c.b16 %v343, %v341
  %v488 = vpack.c.b16 %v344, %v342
  %v489 = vpack.c.b16 %v347, %v345
  %v490 = vpack.c.b16 %v348, %v346
  %v491 = vpack.c.b16 %v351, %v349
  %v492 = vpack.c.b16 %v352, %v350
  %v493 = vpack.c.b16 %v355, %v353
  %v494 = vpack.c.b16 %v356, %v354
  %v495 = vpack.c.b16 %v359, %v357
  %v496 = vpack.c.b16 %v360, %v358
  %v497 = vpack.c.b16 %v363, %v361
  %v498 = vpack.c.b16 %v364, %v362
  %v499 = vpack.c.b16 %v367, %v365
  %v500 = vpack.c.b16 %v368, %v366
  %v501 = vpack.c.b16 %v371, %v369
  %v502 = vpack.c.b16 %v372, %v370
  %v503 = vpack.c.b16 %v375, %v373
  %v504 = vpack.c.b16 %v376, %v374
  %v505 = vpack.c.b16 %v379, %v377
  %v506 = vpack.c.b16 %v380, %v378
  %v507 = vpack.c.b16 %v383, %v381
  %v508 = vpack.c.b16 %v384, %v382
  %v509 = vpack.c.b16 %v387, %v385
  %v510 = vpack.c.b16 %v388, %v386
  %v511 = vpack.c.b16 %v391, %v389
  %v512 = vpack.c.b16 %v392, %v390
  %v513 = vpack.c.b16 %v395, %v393
  %v514 = vpack.c.b16 %v396, %v394
  %v515 = vpack.c.b16 %v399, %v397
  %v516 = vpack.c.b16 %v400, %v398
  %v517 = vpack.c.b16 %v403, %v401
  %v518 = vpack.c.b16 %v404, %v402
  %v519 = vpack.c.b16 %v407, %v405
  %v520 = vpack.c.b16 %v408, %v406
  %v521 = vpack.c.b16 %v411, %v409
  %v522 = vpack.c.b16 %v412, %v410
  %v523 = vpack.c.b16 %v415, %v413
  %v524 = vpack.c.b16 %v416, %v414
  %v525 = vpack.c.b16 %v419, %v417
  %v526 = vpack.c.b16 %v420, %v418
  %v527 = vpack.c.b16 %v423, %v421
  %v528 = vpack.c.b16 %v424, %v422
  %v529 = vpack.c.b16 %v427, %v425
  %v530 = vpack.c.b16 %v428, %v426
  %v531 = vpack.c.b16 %v431, %v429
  %v532 = vpack.c.b16 %v432, %v430
  %v533 = vpack.c.b16 %v435, %v433
  %v534 = vpack.c.b16 %v436, %v434
  %v535 = vpack.c.b16 %v439, %v437
  %v536 = vpack.c.b16 %v440, %v438
  %633 = vmatprep.subr.bf16.mxu0 %v442
  %634 = vmatpush1.bf16.msra.mxu0 %v441
  %635 = vmatprep.subr.bf16.mxu0 %v444
  %636 = vmatpush1.bf16.msra.mxu0 %v443
  %637 = vmatprep.subr.bf16.mxu0 %v446
  %638 = vmatpush1.bf16.msra.mxu0 %v445
  %639 = vmatprep.subr.bf16.mxu0 %v448
  %640 = vmatpush1.bf16.msra.mxu0 %v447
  %641 = vmatprep.subr.bf16.mxu0 %v450
  %642 = vmatpush1.bf16.msra.mxu0 %v449
  %643 = vmatprep.subr.bf16.mxu0 %v452
  %644 = vmatpush1.bf16.msra.mxu0 %v451
  %645 = vmatprep.subr.bf16.mxu0 %v454
  %646 = vmatpush1.bf16.msra.mxu0 %v453
  %647 = vmatprep.subr.bf16.mxu0 %v456
  %648 = vmatpush1.bf16.msra.mxu0 %v455
  %649 = vmatprep.subr.bf16.mxu0 %v458
  %650 = vmatpush1.bf16.msra.mxu0 %v457
  %651 = vmatprep.subr.bf16.mxu0 %v460
  %652 = vmatpush1.bf16.msra.mxu0 %v459
  %653 = vmatprep.subr.bf16.mxu0 %v462
  %654 = vmatpush1.bf16.msra.mxu0 %v461
  %655 = vmatprep.subr.bf16.mxu0 %v464
  %656 = vmatpush1.bf16.msra.mxu0 %v463
  %657 = vmatprep.subr.bf16.mxu0 %v466
  %658 = vmatpush1.bf16.msra.mxu0 %v465
  %659 = vmatprep.subr.bf16.mxu0 %v468
  %660 = vmatpush1.bf16.msra.mxu0 %v467
  %661 = vmatprep.subr.bf16.mxu0 %v470
  %662 = vmatpush1.bf16.msra.mxu0 %v469
  %663 = vmatprep.subr.bf16.mxu0 %v472
  %664 = vmatpush1.bf16.msra.mxu0 %v471
  %665 = vmatprep.mubr.bf16.mxu0 %v142
  %666 = vmatmul.mubr.bf16.gmra.mrb[0].mxu0 %v141
  %v667 = vpop.f32.mrb[0].mxu0
  %v668 = vadd.f32 %v125, %v667
  %v669 = vpop.f32.mrb[0].mxu0
  %v670 = vadd.f32 %v129, %v669
  %v671 = vpop.f32.mrb[0].mxu0
  %v672 = vpop.f32.mrb[0].mxu0
  %673 = vdwg.mxu0
  %674 = vmatprep.subr.bf16.mxu0 %v474
  %675 = vmatpush1.bf16.msra.mxu0 %v473
  %676 = vmatprep.subr.bf16.mxu0 %v476
  %677 = vmatpush1.bf16.msra.mxu0 %v475
  %678 = vmatprep.subr.bf16.mxu0 %v478
  %679 = vmatpush1.bf16.msra.mxu0 %v477
  %680 = vmatprep.subr.bf16.mxu0 %v480
  %681 = vmatpush1.bf16.msra.mxu0 %v479
  %682 = vmatprep.subr.bf16.mxu0 %v482
  %683 = vmatpush1.bf16.msra.mxu0 %v481
  %684 = vmatprep.subr.bf16.mxu0 %v484
  %685 = vmatpush1.bf16.msra.mxu0 %v483
  %686 = vmatprep.subr.bf16.mxu0 %v486
  %687 = vmatpush1.bf16.msra.mxu0 %v485
  %688 = vmatprep.subr.bf16.mxu0 %v488
  %689 = vmatpush1.bf16.msra.mxu0 %v487
  %690 = vmatprep.subr.bf16.mxu0 %v490
  %691 = vmatpush1.bf16.msra.mxu0 %v489
  %692 = vmatprep.subr.bf16.mxu0 %v492
  %693 = vmatpush1.bf16.msra.mxu0 %v491
  %694 = vmatprep.subr.bf16.mxu0 %v494
  %695 = vmatpush1.bf16.msra.mxu0 %v493
  %696 = vmatprep.subr.bf16.mxu0 %v496
  %697 = vmatpush1.bf16.msra.mxu0 %v495
  %698 = vmatprep.subr.bf16.mxu0 %v498
  %699 = vmatpush1.bf16.msra.mxu0 %v497
  %700 = vmatprep.subr.bf16.mxu0 %v500
  %701 = vmatpush1.bf16.msra.mxu0 %v499
  %702 = vmatprep.subr.bf16.mxu0 %v502
  %703 = vmatpush1.bf16.msra.mxu0 %v501
  %704 = vmatprep.subr.bf16.mxu0 %v504
  %705 = vmatpush1.bf16.msra.mxu0 %v503
  %706 = vmatprep.mubr.bf16.mxu0 %v144
  %707 = vmatmul.mubr.bf16.gmra.mrb[0].mxu0 %v143
  %v708 = vpop.f32.mrb[0].mxu0
  %v709 = vadd.f32 %v668, %v708
  %v710 = vpop.f32.mrb[0].mxu0
  %v711 = vadd.f32 %v670, %v710
  %v712 = vpop.f32.mrb[0].mxu0
  %v713 = vpop.f32.mrb[0].mxu0
  %714 = vdwg.mxu0
  %715 = vmatprep.subr.bf16.mxu0 %v506
  %716 = vmatpush1.bf16.msra.mxu0 %v505
  %717 = vmatprep.subr.bf16.mxu0 %v508
  %718 = vmatpush1.bf16.msra.mxu0 %v507
  %719 = vmatprep.subr.bf16.mxu0 %v510
  %720 = vmatpush1.bf16.msra.mxu0 %v509
  %721 = vmatprep.subr.bf16.mxu0 %v512
  %722 = vmatpush1.bf16.msra.mxu0 %v511
  %723 = vmatprep.subr.bf16.mxu0 %v514
  %724 = vmatpush1.bf16.msra.mxu0 %v513
  %725 = vmatprep.subr.bf16.mxu0 %v516
  %726 = vmatpush1.bf16.msra.mxu0 %v515
  %727 = vmatprep.subr.bf16.mxu0 %v518
  %728 = vmatpush1.bf16.msra.mxu0 %v517
  %729 = vmatprep.subr.bf16.mxu0 %v520
  %730 = vmatpush1.bf16.msra.mxu0 %v519
  %731 = vmatprep.subr.bf16.mxu0 %v522
  %732 = vmatpush1.bf16.msra.mxu0 %v521
  %733 = vmatprep.subr.bf16.mxu0 %v524
  %734 = vmatpush1.bf16.msra.mxu0 %v523
  %735 = vmatprep.subr.bf16.mxu0 %v526
  %736 = vmatpush1.bf16.msra.mxu0 %v525
  %737 = vmatprep.subr.bf16.mxu0 %v528
  %738 = vmatpush1.bf16.msra.mxu0 %v527
  %739 = vmatprep.subr.bf16.mxu0 %v530
  %740 = vmatpush1.bf16.msra.mxu0 %v529
  %741 = vmatprep.subr.bf16.mxu0 %v532
  %742 = vmatpush1.bf16.msra.mxu0 %v531
  %743 = vmatprep.subr.bf16.mxu0 %v534
  %744 = vmatpush1.bf16.msra.mxu0 %v533
  %745 = vmatprep.subr.bf16.mxu0 %v536
  %746 = vmatpush1.bf16.msra.mxu0 %v535
  %747 = vmatprep.mubr.bf16.mxu0 %v146
  %748 = vmatmul.mubr.bf16.gmra.mrb[0].mxu0 %v145
  %v749 = vpop.f32.mrb[0].mxu0
  %v750 = vadd.f32 %v709, %v749
  %v751 = vpop.f32.mrb[0].mxu0
  %v752 = vadd.f32 %v711, %v751
  %v753 = vpop.f32.mrb[0].mxu0
  %v754 = vpop.f32.mrb[0].mxu0
  %755 = vdwg.mxu0
  %v756 = vpack.c.bf16 %v750, %v750
  %v757 = vpack.c.bf16 %v752, %v752
  %v758 = vld [vmem:[%s3] sm:$0xf]
  %v759 = vld [vmem:[%s3 + $0x4] sm:$0xf]
  %v760 = vld [vmem:[%s3 + $0x8] sm:$0xf]
  %v761 = vld [vmem:[%s3 + $0xc] sm:$0xf]
  %v762 = vld [vmem:[%s3 + $0x10] sm:$0xf]
  %v763 = vld [vmem:[%s3 + $0x14] sm:$0xf]
  %v764 = vld [vmem:[%s3 + $0x18] sm:$0xf]
  %v765 = vld [vmem:[%s3 + $0x1c] sm:$0xf]
  %v766 = vld [vmem:[%s3 + $0x20] sm:$0xf]
  %v767 = vld [vmem:[%s3 + $0x24] sm:$0xf]
  %v768 = vld [vmem:[%s3 + $0x28] sm:$0xf]
  %v769 = vld [vmem:[%s3 + $0x2c] sm:$0xf]
  %v770 = vld [vmem:[%s3 + $0x30] sm:$0xf]
  %v771 = vld [vmem:[%s3 + $0x34] sm:$0xf]
  %v772 = vld [vmem:[%s3 + $0x38] sm:$0xf]
  %v773 = vld [vmem:[%s3 + $0x3c] sm:$0xf]
  %v774 = vld [vmem:[%s3 + $0x40] sm:$0xf]
  %v775 = vld [vmem:[%s3 + $0x44] sm:$0xf]
  %v776 = vld [vmem:[%s3 + $0x48] sm:$0xf]
  %v777 = vld [vmem:[%s3 + $0x4c] sm:$0xf]
  %v778 = vld [vmem:[%s3 + $0x50] sm:$0xf]
  %v779 = vld [vmem:[%s3 + $0x54] sm:$0xf]
  %v780 = vld [vmem:[%s3 + $0x58] sm:$0xf]
  %v781 = vld [vmem:[%s3 + $0x5c] sm:$0xf]
  %v782 = vld [vmem:[%s3 + $0x60] sm:$0xf]
  %v783 = vld [vmem:[%s3 + $0x64] sm:$0xf]
  %v784 = vld [vmem:[%s3 + $0x68] sm:$0xf]
  %v785 = vld [vmem:[%s3 + $0x6c] sm:$0xf]
  %v786 = vld [vmem:[%s3 + $0x70] sm:$0xf]
  %v787 = vld [vmem:[%s3 + $0x74] sm:$0xf]
  %v788 = vld [vmem:[%s3 + $0x78] sm:$0xf]
  %v789 = vld [vmem:[%s3 + $0x7c] sm:$0xf]
  %v790 = vld [vmem:[%s4] sm:$0x1]
  %v792 = vlaneseq
  %v793 = vshrl.u32 %v792, 7
  %v794 = vsub.s32 0, %v793
  %v795 = vrot.slane %v790, %v794
  %v829 = vunpack.c.l.b16 %v758
  %v830 = vunpack.c.l.b16 %v759
  %v831 = vunpack.c.l.b16 %v760
  %v832 = vunpack.c.l.b16 %v761
  %v833 = vunpack.c.l.b16 %v762
  %v834 = vunpack.c.l.b16 %v763
  %v835 = vunpack.c.l.b16 %v764
  %v836 = vunpack.c.l.b16 %v765
  %v837 = vunpack.c.l.b16 %v766
  %v838 = vunpack.c.l.b16 %v767
  %v839 = vunpack.c.l.b16 %v768
  %v840 = vunpack.c.l.b16 %v769
  %v841 = vunpack.c.l.b16 %v770
  %v842 = vunpack.c.l.b16 %v771
  %v843 = vunpack.c.l.b16 %v772
  %v844 = vunpack.c.l.b16 %v773
  %v845 = vunpack.c.l.b16 %v774
  %v846 = vunpack.c.l.b16 %v775
  %v847 = vunpack.c.l.b16 %v776
  %v848 = vunpack.c.l.b16 %v777
  %v849 = vunpack.c.l.b16 %v778
  %v850 = vunpack.c.l.b16 %v779
  %v851 = vunpack.c.l.b16 %v780
  %v852 = vunpack.c.l.b16 %v781
  %v853 = vunpack.c.l.b16 %v782
  %v854 = vunpack.c.l.b16 %v783
  %v855 = vunpack.c.l.b16 %v784
  %v856 = vunpack.c.l.b16 %v785
  %v857 = vunpack.c.l.b16 %v786
  %v858 = vunpack.c.l.b16 %v787
  %v859 = vunpack.c.l.b16 %v788
  %v860 = vunpack.c.l.b16 %v789
  %v861 = vpack.c.b16 %v830, %v829
  %v862 = vpack.c.b16 %v832, %v831
  %v863 = vpack.c.b16 %v834, %v833
  %v864 = vpack.c.b16 %v836, %v835
  %v865 = vpack.c.b16 %v838, %v837
  %v866 = vpack.c.b16 %v840, %v839
  %v867 = vpack.c.b16 %v842, %v841
  %v868 = vpack.c.b16 %v844, %v843
  %v869 = vpack.c.b16 %v846, %v845
  %v870 = vpack.c.b16 %v848, %v847
  %v871 = vpack.c.b16 %v850, %v849
  %v872 = vpack.c.b16 %v852, %v851
  %v873 = vpack.c.b16 %v854, %v853
  %v874 = vpack.c.b16 %v856, %v855
  %v875 = vpack.c.b16 %v858, %v857
  %v876 = vpack.c.b16 %v860, %v859
  %893 = vmatprep.subr.bf16.mxu0 0
  %894 = vmatpush1.bf16.msra.mxu0 %v861
  %895 = vmatprep.subr.bf16.mxu0 0
  %896 = vmatpush1.bf16.msra.mxu0 %v862
  %897 = vmatprep.subr.bf16.mxu0 0
  %898 = vmatpush1.bf16.msra.mxu0 %v863
  %899 = vmatprep.subr.bf16.mxu0 0
  %900 = vmatpush1.bf16.msra.mxu0 %v864
  %901 = vmatprep.subr.bf16.mxu0 0
  %902 = vmatpush1.bf16.msra.mxu0 %v865
  %903 = vmatprep.subr.bf16.mxu0 0
  %904 = vmatpush1.bf16.msra.mxu0 %v866
  %905 = vmatprep.subr.bf16.mxu0 0
  %906 = vmatpush1.bf16.msra.mxu0 %v867
  %907 = vmatprep.subr.bf16.mxu0 0
  %908 = vmatpush1.bf16.msra.mxu0 %v868
  %909 = vmatprep.subr.bf16.mxu0 0
  %910 = vmatpush1.bf16.msra.mxu0 %v869
  %911 = vmatprep.subr.bf16.mxu0 0
  %912 = vmatpush1.bf16.msra.mxu0 %v870
  %913 = vmatprep.subr.bf16.mxu0 0
  %914 = vmatpush1.bf16.msra.mxu0 %v871
  %915 = vmatprep.subr.bf16.mxu0 0
  %916 = vmatpush1.bf16.msra.mxu0 %v872
  %917 = vmatprep.subr.bf16.mxu0 0
  %918 = vmatpush1.bf16.msra.mxu0 %v873
  %919 = vmatprep.subr.bf16.mxu0 0
  %920 = vmatpush1.bf16.msra.mxu0 %v874
  %921 = vmatprep.subr.bf16.mxu0 0
  %922 = vmatpush1.bf16.msra.mxu0 %v875
  %923 = vmatprep.subr.bf16.mxu0 0
  %924 = vmatpush1.bf16.msra.mxu0 %v876
  %925 = vmatprep.mubr.bf16.mxu0 %v757
  %926 = vmatmul.mubr.bf16.gmra.mrb[0].mxu0 %v756
  %v927 = vpop.f32.mrb[0].mxu0
  %v928 = vadd.f32 %v795, %v927
  %v929 = vpop.f32.mrb[0].mxu0
  %v930 = vpop.f32.mrb[0].mxu0
  %v931 = vpop.f32.mrb[0].mxu0
  %932 = vdwg.mxu0
  %v933 = vpack.c.bf16 %v928, %v928
  %934 = vst [vmem:[%s5] sm:$0xf] %v933
  // Predicated region
  $region22: #{_lambda_.3} parent=0 // pred_check
    _
  $region23: #{_lambda_.3} parent=0 // pred_check_branch
    %936 = sbr.rel (0) target = $region25
  $region24: #{_lambda_.3} parent=0 // pred_region
    _
  $region25: #{_lambda_.3} parent=0 // pred_fallthru
    _
  // Predicated region
  $region26: #{_lambda_.3} parent=0 // pred_check
    _
  $region27: #{_lambda_.3} parent=0 // pred_check_branch
    %938 = sbr.rel (0) target = $region29
  $region28: #{_lambda_.3} parent=0 // pred_region
    _
  $region29: #{_lambda_.3} parent=0 // pred_fallthru
    _

// kernel: _lambda_.4
$region0: #{_lambda_.4}
  #allocation0 [shape = 'u32[]', space=smem, size = 0x4, offset = 0x4, fixed_abs, tag = 'smem constant byte address 0x4 - core index']
  #allocation1 [shape = 'u32[144,128]{1,0:T(1,128)}', space=vmem, size = 0x12000, scoped, tag = 'internal scratch']
  #allocation2 [shape = 'bf16[8,128]{1,0:T(8,128)(2,1)}', space=vmem, size = 0x800, scoped, tag = 'scratch operand']
  #allocation3 [shape = 'bf16[8,128]{1,0:T(8,128)(2,1)}', space=vmem, size = 0x800, scoped, tag = 'scratch operand']
  #allocation4 [shape = 'f32[8,8]{1,0:T(8,128)}', space=vmem, size = 0x1000, scoped, tag = 'scratch operand']
  #allocation5 [shape = 'f32[8,8]{1,0:T(8,128)}', space=vmem, size = 0x1000, scoped, tag = 'scratch operand']
  %s0 = inlined_call_operand.vmem [shape: bf16[8,128], index: 0, kind: input, shape index: {}]
  %s1 = inlined_call_operand.vmem [shape: f32[8,8], index: 1, kind: input, shape index: {}]
  %s2 = inlined_call_operand.vmem [shape: bf16[128,144], index: 2, kind: input, shape index: {}]
  %s3 = inlined_call_operand.vmem [shape: f32[1,144], index: 3, kind: input, shape index: {}]
  %s4 = inlined_call_operand.vmem [shape: bf16[4,8,128], index: 4, kind: output, shape index: {0}]
  %s5 = inlined_call_operand.hbm [shape: f32[8,8,8], index: 5, kind: output, shape index: {1}]
  %6 = xla_tuple %s4, %s5
  %s7 = sld [smem:[#allocation0]]
  $region97: #{_lambda_.4} parent=0
    _
  %s9 = ssub.s32 1, %s7
  %s10 = scalar_select 0, %s9, %s7
  $region1: #{_lambda_.4} parent=0
    #allocation6 [shape = 'u8[32768]{0}', space=vmem, size = 0x8000, scoped, tag = 'output window, operand 1, single buffered']
    #allocation7 [shape = 's32[2]{0}', space=sflag, size = 0x8, scoped, tag = 'scoped memory for _lambda_.4']
    %11 = vsyncpa [#allocation7], 0
    loop: start=0, step=1, limit=6
    $region2: #{_lambda_.4} parent=1 // loop_pre_header
      _
    $region3: #{_lambda_.4} parent=1 // loop_header
      %s13 = sphi 0, %s17
      %p14 = scmp.ge.s32.totalorder %s13, 6
      %s20 = sphi 0, %s32
      %s21 = sphi 0, %s28
      %s22 = sphi 0, %s20
      %s23 = sphi 0, %s21
      %s24 = sphi 0, %s22
      %s25 = sphi 0, %s23
      %s33 = sphi 0, %s33
      %s35 = sphi 0, %s33
      %s36 = sphi 0, %s35
      %s50 = sphi 0, %s36
      %s56 = sphi 0, %s58
      %s59 = sphi 0, %s56
      %s60 = sphi 0, %s59
      %s76 = sphi 0, %s60
      %s80 = sphi 0, %s80
      %s82 = sphi 0, %s80
      %s83 = sphi 0, %s82
      %s97 = sphi 0, %s83
      %s101 = sphi 0, %s101
      %s103 = sphi 0, %s101
      %s104 = sphi 0, %s103
      %s118 = sphi 0, %s104
      %s126 = sphi 0, %s128
      %s129 = sphi 0, %s126
      %s130 = sphi 0, %s129
      %s146 = sphi 0, %s130
      %s152 = sphi 0, %s154
      %s155 = sphi 0, %s152
      %s156 = sphi 0, %s155
      %s172 = sphi 0, %s156
    $region4: #{_lambda_.4} parent=1 // loop_header_branch
      %16 = sbr.rel (%p14) target = $region8
    $region5: #{_lambda_.4} parent=1 // loop_body
      %s18 = ssub.s32 %s13, 1
      %s19 = ssub.s32 %s13, 2
      %s26 = sadd.s32 1, %s21
      %p27 = scmp.ge.s32.totalorder %s26, 1
      %s28 = scalar_select %p27, 0, %s26
      %s29 = sadd.s32 1, %s20
      %s30 = scalar_select %p27, %s29, %s20
      %p31 = scmp.ge.s32.totalorder %s30, 4
      %s32 = scalar_select %p31, 0, %s30
      %s34 = sadd.s32 %s33, 1
      %p37 = scmp.eq.s32.totalorder %s13, 3
      %p38 = scmp.ne.s32.totalorder %s33, %s35
      %p39 = scmp.eq.s32.totalorder %s13, 0
      %p40 = por %p38, %p39
      %p41 = scmp.ne.s32.totalorder %s33, %s35
      %p42 = scmp.eq.s32.totalorder %s18, 3
      %p43 = por %p41, %p42
      %p44 = scmp.ne.s32.totalorder %s35, %s36
      %p45 = scmp.eq.s32.totalorder %s18, 0
      %p46 = por %p44, %p45
      %p47 = scmp.ne.s32.totalorder %s35, %s36
      %p48 = scmp.eq.s32.totalorder %s19, 3
      %p49 = por %p47, %p48
      %p51 = scmp.ne.s32.totalorder %s36, %s50
      %p52 = scmp.eq.s32.totalorder %s19, 0
      %p53 = por %p51, %p52
      %s54 = ssub.s32 %s21, %s28
      %p55 = scmp.eq.s32.totalorder %s54, 0
      %s57 = sadd.s32 %s56, 1
      %s58 = scalar_select %p55, %s56, %s57
      %p61 = pneg %p55
      %p62 = scmp.eq.s32.totalorder %s13, 3
      %p63 = por %p61, %p62
      %p64 = scmp.ne.s32.totalorder %s56, %s59
      %p65 = scmp.eq.s32.totalorder %s13, 0
      %p66 = por %p64, %p65
      %p67 = scmp.ne.s32.totalorder %s56, %s59
      %p68 = scmp.eq.s32.totalorder %s18, 3
      %p69 = por %p67, %p68
      %p70 = scmp.ne.s32.totalorder %s59, %s60
      %p71 = scmp.eq.s32.totalorder %s18, 0
      %p72 = por %p70, %p71
      %p73 = scmp.ne.s32.totalorder %s59, %s60
      %p74 = scmp.eq.s32.totalorder %s19, 3
      %p75 = por %p73, %p74
      %p77 = scmp.ne.s32.totalorder %s60, %s76
      %p78 = scmp.eq.s32.totalorder %s19, 0
      %p79 = por %p77, %p78
      %s81 = sadd.s32 %s80, 1
      %p84 = scmp.eq.s32.totalorder %s13, 3
      %p85 = scmp.ne.s32.totalorder %s80, %s82
      %p86 = scmp.eq.s32.totalorder %s13, 0
      %p87 = por %p85, %p86
      %p88 = scmp.ne.s32.totalorder %s80, %s82
      %p89 = scmp.eq.s32.totalorder %s18, 3
      %p90 = por %p88, %p89
      %p91 = scmp.ne.s32.totalorder %s82, %s83
      %p92 = scmp.eq.s32.totalorder %s18, 0
      %p93 = por %p91, %p92
      %p94 = scmp.ne.s32.totalorder %s82, %s83
      %p95 = scmp.eq.s32.totalorder %s19, 3
      %p96 = por %p94, %p95
      %p98 = scmp.ne.s32.totalorder %s83, %s97
      %p99 = scmp.eq.s32.totalorder %s19, 0
      %p100 = por %p98, %p99
      %s102 = sadd.s32 %s101, 1
      %p105 = scmp.eq.s32.totalorder %s13, 3
      %p106 = scmp.ne.s32.totalorder %s101, %s103
      %p107 = scmp.eq.s32.totalorder %s13, 0
      %p108 = por %p106, %p107
      %p109 = scmp.ne.s32.totalorder %s101, %s103
      %p110 = scmp.eq.s32.totalorder %s18, 3
      %p111 = por %p109, %p110
      %p112 = scmp.ne.s32.totalorder %s103, %s104
      %p113 = scmp.eq.s32.totalorder %s18, 0
      %p114 = por %p112, %p113
      %p115 = scmp.ne.s32.totalorder %s103, %s104
      %p116 = scmp.eq.s32.totalorder %s19, 3
      %p117 = por %p115, %p116
      %p119 = scmp.ne.s32.totalorder %s104, %s118
      %p120 = scmp.eq.s32.totalorder %s19, 0
      %p121 = por %p119, %p120
      %s122 = ssub.s32 %s20, %s32
      %s123 = ssub.s32 %s21, %s28
      %s124 = sor.u32 %s122, %s123
      %p125 = scmp.eq.s32.totalorder %s124, 0
      %s127 = sadd.s32 %s126, 1
      %s128 = scalar_select %p125, %s126, %s127
      %p131 = pneg %p125
      %p132 = scmp.eq.s32.totalorder %s13, 3
      %p133 = por %p131, %p132
      %p134 = scmp.ne.s32.totalorder %s126, %s129
      %p135 = scmp.eq.s32.totalorder %s13, 0
      %p136 = por %p134, %p135
      %p137 = scmp.ne.s32.totalorder %s126, %s129
      %p138 = scmp.eq.s32.totalorder %s18, 3
      %p139 = por %p137, %p138
      %p140 = scmp.ne.s32.totalorder %s129, %s130
      %p141 = scmp.eq.s32.totalorder %s18, 0
      %p142 = por %p140, %p141
      %p143 = scmp.ne.s32.totalorder %s129, %s130
      %p144 = scmp.eq.s32.totalorder %s19, 3
      %p145 = por %p143, %p144
      %p147 = scmp.ne.s32.totalorder %s130, %s146
      %p148 = scmp.eq.s32.totalorder %s19, 0
      %p149 = por %p147, %p148
      %s150 = ssub.s32 %s21, %s28
      %p151 = scmp.eq.s32.totalorder %s150, 0
      %s153 = sadd.s32 %s152, 1
      %s154 = scalar_select %p151, %s152, %s153
      %p157 = pneg %p151
      %p158 = scmp.eq.s32.totalorder %s13, 3
      %p159 = por %p157, %p158
      %p160 = scmp.ne.s32.totalorder %s152, %s155
      %p161 = scmp.eq.s32.totalorder %s13, 0
      %p162 = por %p160, %p161
      %p163 = scmp.ne.s32.totalorder %s152, %s155
      %p164 = scmp.eq.s32.totalorder %s18, 3
      %p165 = por %p163, %p164
      %p166 = scmp.ne.s32.totalorder %s155, %s156
      %p167 = scmp.eq.s32.totalorder %s18, 0
      %p168 = por %p166, %p167
      %p169 = scmp.ne.s32.totalorder %s155, %s156
      %p170 = scmp.eq.s32.totalorder %s19, 3
      %p171 = por %p169, %p170
      %p173 = scmp.ne.s32.totalorder %s156, %s172
      %p174 = scmp.eq.s32.totalorder %s19, 0
      %p175 = por %p173, %p174
      %p176 = scmp.le.s32.totalorder 1, %s13
      %p177 = scmp.lt.s32.totalorder %s13, 5
      %p178 = pnand %p176, %p177
      %p179 = pneg %p178
      // Predicated region
      $region9: #{_lambda_.4} parent=5 // pred_check
        _
      $region10: #{_lambda_.4} parent=5 // pred_check_branch
        %181 = sbr.rel (%p178) target = $region12
      $region11: #{_lambda_.4} parent=5 // pred_region
        %s182 = ssub.s32 %s13, 1
        // Predicated region
        $region13: #{_lambda_.4} parent=11 // pred_check
          %p183 = pneg %p46
        $region14: #{_lambda_.4} parent=11 // pred_check_branch
          %185 = sbr.rel (%p183) target = $region16
        $region15: #{_lambda_.4} parent=11 // pred_region
          _
        $region16: #{_lambda_.4} parent=11 // pred_fallthru
          _
        // Predicated region
        $region17: #{_lambda_.4} parent=11 // pred_check
          %p186 = pneg %p72
        $region18: #{_lambda_.4} parent=11 // pred_check_branch
          %188 = sbr.rel (%p186) target = $region20
        $region19: #{_lambda_.4} parent=11 // pred_region
          %p189 = scmp.lt.s32.totalorder %s23, 0
          %s190 = scalar_select %p189, %s23, 0
          %s191 = smul.addr %s190, 8
          %s192 = scalar_lea.vmem %s1, %s191
        $region20: #{_lambda_.4} parent=11 // pred_fallthru
          _
        // Predicated region
        $region21: #{_lambda_.4} parent=11 // pred_check
          %p193 = pneg %p93
        $region22: #{_lambda_.4} parent=11 // pred_check_branch
          %195 = sbr.rel (%p193) target = $region24
        $region23: #{_lambda_.4} parent=11 // pred_region
          _
        $region24: #{_lambda_.4} parent=11 // pred_fallthru
          _
        // Predicated region
        $region25: #{_lambda_.4} parent=11 // pred_check
          %p196 = pneg %p114
        $region26: #{_lambda_.4} parent=11 // pred_check_branch
          %198 = sbr.rel (%p196) target = $region28
        $region27: #{_lambda_.4} parent=11 // pred_region
          _
        $region28: #{_lambda_.4} parent=11 // pred_fallthru
          _
      $region12: #{_lambda_.4} parent=5 // pred_fallthru
        _
      %p199 = scmp.lt.s32.totalorder %s13, 4
      // Predicated region
      $region29: #{_lambda_.4} parent=5 // pred_check
        %p200 = pneg %p199
      $region30: #{_lambda_.4} parent=5 // pred_check_branch
        %202 = sbr.rel (%p200) target = $region32
      $region31: #{_lambda_.4} parent=5 // pred_region
        _
      $region32: #{_lambda_.4} parent=5 // pred_fallthru
        _
      %p203 = scmp.le.s32.totalorder 1, %s13
      %p204 = scmp.lt.s32.totalorder %s13, 5
      %p205 = pnand %p203, %p204
      %p206 = pneg %p205
      // Predicated region
      $region33: #{_lambda_.4} parent=5 // pred_check
        _
      $region34: #{_lambda_.4} parent=5 // pred_check_branch
        %208 = sbr.rel (%p205) target = $region36
      $region35: #{_lambda_.4} parent=5 // pred_region
        %s209 = ssub.s32 %s13, 1
        %p210 = pneg %p46
        %p211 = pneg %p43
        %p212 = scmp.lt.s32.totalorder %s23, 0
        %s213 = scalar_select %p212, %s23, 0
        %s214 = smul.addr %s213, 8
        %s215 = scalar_lea.vmem %s1, %s214
        %p216 = pneg %p72
        %p217 = pneg %p69
        %p218 = pneg %p93
        %p219 = pneg %p90
        %p220 = pneg %p114
        %p221 = pneg %p111
        %p222 = pneg %p142
        %p223 = pneg %p139
        %p224 = scmp.lt.s32.totalorder %s22, 3
        %s225 = scalar_select %p224, %s22, 3
        %p226 = scmp.lt.s32.totalorder %s23, 0
        %s227 = scalar_select %p226, %s23, 0
        %s228 = sadd.s32 %s227, %s225
        %s229 = smul.addr %s228, 4
        %s230 = scalar_lea.vmem %s4, %s229
        %p231 = pneg %p168
        %p232 = pneg %p165
        %p233 = scmp.lt.s32.totalorder %s23, 0
        %s234 = scalar_select %p233, %s23, 0
        %s235 = smul.addr %s234, 8
        %s236 = scalar_lea.vmem %s1, %s235
        %p237 = scmp.lt.s32.totalorder %s22, 3
        %s238 = scalar_select %p237, %s22, 3
        %p239 = scmp.lt.s32.totalorder %s23, 0
        %s240 = scalar_select %p239, %s23, 0
        %s241 = sadd.s32 %s240, %s238
        %s242 = smul.addr %s241, 4
        %s243 = scalar_lea.vmem %s4, %s242
        %p245 = scmp.eq.s32.totalorder %s22, 0
        %p246 = scmp.eq.s32.totalorder %s23, 0
        %p247 = pnand %p245, %p246
        %p248 = pneg %p247
        // Predicated region
        $region37: #{_lambda_.4} parent=35 // pred_check
          _
        $region38: #{_lambda_.4} parent=35 // pred_check_branch
          %250 = sbr.rel (%p247) target = $region40
        $region39: #{_lambda_.4} parent=35 // pred_region
          %v251 = vld [vmem:[%s0] sm:$0xf]
          %252 = vst [vmem:[#allocation2] sm:$0xf] %v251
        $region40: #{_lambda_.4} parent=35 // pred_fallthru
          _
        // Predicated region
        $region41: #{_lambda_.4} parent=35 // pred_check
          %p253 = pneg %p246
        $region42: #{_lambda_.4} parent=35 // pred_check_branch
          %255 = sbr.rel (%p253) target = $region44
        $region43: #{_lambda_.4} parent=35 // pred_region
          %v256 = vld [vmem:[#allocation2] sm:$0xf]
          %v257 = vld [vmem:[%s2] sm:$0xff]
          %v258 = vld [vmem:[%s2 + $0x8] sm:$0xff]
          %v259 = vld [vmem:[%s2 + $0x10] sm:$0xff]
          %v260 = vld [vmem:[%s2 + $0x18] sm:$0xff]
          %v261 = vld [vmem:[%s2 + $0x20] sm:$0xff]
          %v262 = vld [vmem:[%s2 + $0x28] sm:$0xff]
          %v263 = vld [vmem:[%s2 + $0x30] sm:$0xff]
          %v264 = vld [vmem:[%s2 + $0x38] sm:$0xff]
          %v265 = vld [vmem:[%s2 + $0x40] sm:$0xff]
          %v266 = vld [vmem:[%s2 + $0x48] sm:$0xff]
          %v267 = vld [vmem:[%s2 + $0x50] sm:$0xff]
          %v268 = vld [vmem:[%s2 + $0x58] sm:$0xff]
          %v269 = vld [vmem:[%s2 + $0x60] sm:$0xff]
          %v270 = vld [vmem:[%s2 + $0x68] sm:$0xff]
          %v271 = vld [vmem:[%s2 + $0x70] sm:$0xff]
          %v272 = vld [vmem:[%s2 + $0x78] sm:$0xff]
          %v273 = vld [vmem:[%s3] sm:$0x3]
          %v275 = vlaneseq
          %v276 = vshrl.u32 %v275, 7
          %v277 = vsub.s32 0, %v276
          %v278 = vrot.slane %v273, %v277
          %v279 = vlaneseq
          %v280 = vshrl.u32 %v279, 7
          %v281 = vsub.s32 1, %v280
          %v282 = vrot.slane %v273, %v281
          %v301 = vunpack.c.l.b16 %v257
          %v302 = vunpack.c.h.b16 %v257
          %v303 = vunpack.c.l.b16 %v258
          %v304 = vunpack.c.h.b16 %v258
          %v305 = vunpack.c.l.b16 %v259
          %v306 = vunpack.c.h.b16 %v259
          %v307 = vunpack.c.l.b16 %v260
          %v308 = vunpack.c.h.b16 %v260
          %v309 = vunpack.c.l.b16 %v261
          %v310 = vunpack.c.h.b16 %v261
          %v311 = vunpack.c.l.b16 %v262
          %v312 = vunpack.c.h.b16 %v262
          %v313 = vunpack.c.l.b16 %v263
          %v314 = vunpack.c.h.b16 %v263
          %v315 = vunpack.c.l.b16 %v264
          %v316 = vunpack.c.h.b16 %v264
          %v317 = vunpack.c.l.b16 %v265
          %v318 = vunpack.c.h.b16 %v265
          %v319 = vunpack.c.l.b16 %v266
          %v320 = vunpack.c.h.b16 %v266
          %v321 = vunpack.c.l.b16 %v267
          %v322 = vunpack.c.h.b16 %v267
          %v323 = vunpack.c.l.b16 %v268
          %v324 = vunpack.c.h.b16 %v268
          %v325 = vunpack.c.l.b16 %v269
          %v326 = vunpack.c.h.b16 %v269
          %v327 = vunpack.c.l.b16 %v270
          %v328 = vunpack.c.h.b16 %v270
          %v329 = vunpack.c.l.b16 %v271
          %v330 = vunpack.c.h.b16 %v271
          %v331 = vunpack.c.l.b16 %v272
          %v332 = vunpack.c.h.b16 %v272
          %v333 = vpack.c.b16 %v303, %v301
          %v334 = vpack.c.b16 %v304, %v302
          %v335 = vpack.c.b16 %v307, %v305
          %v336 = vpack.c.b16 %v308, %v306
          %v337 = vpack.c.b16 %v311, %v309
          %v338 = vpack.c.b16 %v312, %v310
          %v339 = vpack.c.b16 %v315, %v313
          %v340 = vpack.c.b16 %v316, %v314
          %v341 = vpack.c.b16 %v319, %v317
          %v342 = vpack.c.b16 %v320, %v318
          %v343 = vpack.c.b16 %v323, %v321
          %v344 = vpack.c.b16 %v324, %v322
          %v345 = vpack.c.b16 %v327, %v325
          %v346 = vpack.c.b16 %v328, %v326
          %v347 = vpack.c.b16 %v331, %v329
          %v348 = vpack.c.b16 %v332, %v330
          %365 = vmatprep.subr.bf16.mxu0 %v334
          %366 = vmatpush1.bf16.msra.mxu0 %v333
          %367 = vmatprep.subr.bf16.mxu0 %v336
          %368 = vmatpush1.bf16.msra.mxu0 %v335
          %369 = vmatprep.subr.bf16.mxu0 %v338
          %370 = vmatpush1.bf16.msra.mxu0 %v337
          %371 = vmatprep.subr.bf16.mxu0 %v340
          %372 = vmatpush1.bf16.msra.mxu0 %v339
          %373 = vmatprep.subr.bf16.mxu0 %v342
          %374 = vmatpush1.bf16.msra.mxu0 %v341
          %375 = vmatprep.subr.bf16.mxu0 %v344
          %376 = vmatpush1.bf16.msra.mxu0 %v343
          %377 = vmatprep.subr.bf16.mxu0 %v346
          %378 = vmatpush1.bf16.msra.mxu0 %v345
          %379 = vmatprep.subr.bf16.mxu0 %v348
          %380 = vmatpush1.bf16.msra.mxu0 %v347
          %381 = vmatprep.subr.bf16.mxu0 0
          %382 = vmatpush1.bf16.msra.mxu0 0
          %383 = vmatprep.subr.bf16.mxu0 0
          %384 = vmatpush1.bf16.msra.mxu0 0
          %385 = vmatprep.subr.bf16.mxu0 0
          %386 = vmatpush1.bf16.msra.mxu0 0
          %387 = vmatprep.subr.bf16.mxu0 0
          %388 = vmatpush1.bf16.msra.mxu0 0
          %389 = vmatprep.subr.bf16.mxu0 0
          %390 = vmatpush1.bf16.msra.mxu0 0
          %391 = vmatprep.subr.bf16.mxu0 0
          %392 = vmatpush1.bf16.msra.mxu0 0
          %393 = vmatprep.subr.bf16.mxu0 0
          %394 = vmatpush1.bf16.msra.mxu0 0
          %395 = vmatprep.subr.bf16.mxu0 0
          %396 = vmatpush1.bf16.msra.mxu0 0
          %397 = vmatprep.mubr.bf16.mxu0 0
          %398 = vmatmul.mubr.bf16.gmra.mrb[0].mxu0 %v256
          %v399 = vpop.f32.mrb[0].mxu0
          %v400 = vadd.f32 %v278, %v399
          %v401 = vpop.f32.mrb[0].mxu0
          %v402 = vadd.f32 %v282, %v401
          %v403 = vpop.f32.mrb[0].mxu0
          %v404 = vpop.f32.mrb[0].mxu0
          %405 = vdwg.mxu0
          %v406 = vpack.c.bf16 %v400, %v400
          %407 = vst [vmem:[#allocation3] sm:$0xf] %v406
          %vm408 = vcmask 64512
          %409 = vst.msk [vmem:[#allocation4] sm:$0xff] %vm408, %v402
          %411 = vrot.lane.b32.xlu0 %v402, 120
          %v412 = vpop.permute.xlu0 %411
          %414 = vxpose.xlu0.b32.start [1/16] %v412, 128
          %415 = vxpose.xlu0.b32.cont [2/16] 0.0, 128
          %416 = vxpose.xlu0.b32.cont [3/16] 0.0, 128
          %417 = vxpose.xlu0.b32.cont [4/16] 0.0, 128
          %418 = vxpose.xlu0.b32.cont [5/16] 0.0, 128
          %419 = vxpose.xlu0.b32.cont [6/16] 0.0, 128
          %420 = vxpose.xlu0.b32.cont [7/16] 0.0, 128
          %421 = vxpose.xlu0.b32.cont [8/16] 0.0, 128
          %422 = vxpose.xlu0.b32.cont [9/16] 0.0, 128
          %423 = vxpose.xlu0.b32.cont [10/16] 0.0, 128
          %424 = vxpose.xlu0.b32.cont [11/16] 0.0, 128
          %425 = vxpose.xlu0.b32.cont [12/16] 0.0, 128
          %426 = vxpose.xlu0.b32.cont [13/16] 0.0, 128
          %427 = vxpose.xlu0.b32.cont [14/16] 0.0, 128
          %428 = vxpose.xlu0.b32.cont [15/16] 0.0, 128
          %429 = vxpose.xlu0.b32.end [16/16] 0.0, 128
          %v430 = vpop.trf.xlu0
          %v431 = vpop.trf.xlu0
          %v432 = vpop.trf.xlu0
          %v433 = vpop.trf.xlu0
          %v434 = vpop.trf.xlu0
          %v435 = vpop.trf.xlu0
          %v436 = vpop.trf.xlu0
          %v437 = vpop.trf.xlu0
          %v438 = vpop.trf.xlu0
          %v439 = vpop.trf.xlu0
          %v440 = vpop.trf.xlu0
          %v441 = vpop.trf.xlu0
          %v442 = vpop.trf.xlu0
          %v443 = vpop.trf.xlu0
          %v444 = vpop.trf.xlu0
          %v445 = vpop.trf.xlu0
          %446 = vst.msk [vmem:[#allocation5] sm:$0xff] %vm408, %v430
        $region44: #{_lambda_.4} parent=35 // pred_fallthru
          _
        %s447 = smul.u32 %s23, 8
        %v448 = vld [vmem:[%s236] sm:$0xff]
        %vm449 = vcmp.gt.f32.partialorder %v448, 0.0
        %v450 = vsel %vm449, 0.0, -9e+15
        %s451 = scalar_lea.vmem [#allocation4], %s447
        %v452 = vld [vmem:[%s451] sm:$0xff]
        %v453 = vld [vmem:[#allocation5] sm:$0xff]
        %v454 = vld [vmem:[#allocation3] sm:$0xf]
        %456 = vset.pattern.permute.xlu0 0
        %457 = vperm.xlu0 %456, %v452
        %v458 = vpop.permute.xlu0 %457
        %v460 = vlaneseq
        %v461 = vshrl.u32 %v460, 7
        %v462 = vsub.s32 0, %v461
        %v463 = vrot.slane %v453, %v462
        %v464 = vadd.f32 %v458, %v463
        %vm465 = vcmp.gt.f32.partialorder %v464, 0.0
        %v466 = vmul.f32 %v464, 0.2
        %v467 = vsel %vm465, %v464, %v466
        %v468 = vadd.f32 %v467, %v450
        %vm469 = vcmask 64512
        %v470 = vsel %vm469, %v468, -inf
        %471 = vmax.xlane.f32.xlu0 %v470
        %v472 = vpop.xlane.xlu0 %471
        %v473 = vsub.f32 %v468, %v472
        %v474 = vmul.f32 %v473, 1.442695
        %v475 = vpow.pop %v474
        %v476 = vsel %vm469, %v475, 0.0
        %477 = vadd.xlane.f32.xlu0 %v476
        %v478 = vpop.xlane.xlu0 %477
        %v479 = vrcp.pop %v478
        %v480 = vmul.f32 %v475, %v479
        %v481 = vpack.c.bf16 %v480, %v480
        %v483 = vsel %vm469, %v481, 0
        %vm485 = vcmask 1043456
        %v487 = vsel %vm485, %v454, 0
        %489 = vmatprep.subr.bf16.mxu0 0
        %490 = vmatpush1.bf16.msra.mxu0 %v487
        %491 = vmatprep.subr.bf16.mxu0 0
        %492 = vmatpush1.bf16.msra.mxu0 0
        %493 = vmatprep.subr.bf16.mxu0 0
        %494 = vmatpush1.bf16.msra.mxu0 0
        %495 = vmatprep.subr.bf16.mxu0 0
        %496 = vmatpush1.bf16.msra.mxu0 0
        %497 = vmatprep.subr.bf16.mxu0 0
        %498 = vmatpush1.bf16.msra.mxu0 0
        %499 = vmatprep.subr.bf16.mxu0 0
        %500 = vmatpush1.bf16.msra.mxu0 0
        %501 = vmatprep.subr.bf16.mxu0 0
        %502 = vmatpush1.bf16.msra.mxu0 0
        %503 = vmatprep.subr.bf16.mxu0 0
        %504 = vmatpush1.bf16.msra.mxu0 0
        %505 = vmatprep.subr.bf16.mxu0 0
        %506 = vmatpush1.bf16.msra.mxu0 0
        %507 = vmatprep.subr.bf16.mxu0 0
        %508 = vmatpush1.bf16.msra.mxu0 0
        %509 = vmatprep.subr.bf16.mxu0 0
        %510 = vmatpush1.bf16.msra.mxu0 0
        %511 = vmatprep.subr.bf16.mxu0 0
        %512 = vmatpush1.bf16.msra.mxu0 0
        %513 = vmatprep.subr.bf16.mxu0 0
        %514 = vmatpush1.bf16.msra.mxu0 0
        %515 = vmatprep.subr.bf16.mxu0 0
        %516 = vmatpush1.bf16.msra.mxu0 0
        %517 = vmatprep.subr.bf16.mxu0 0
        %518 = vmatpush1.bf16.msra.mxu0 0
        %519 = vmatprep.subr.bf16.mxu0 0
        %520 = vmatpush1.bf16.msra.mxu0 0
        %521 = vmatprep.mubr.bf16.mxu0 0
        %522 = vmatmul.mubr.bf16.gmra.mrb[0].mxu0 %v483
        %v523 = vpop.f32.mrb[0].mxu0
        %v524 = vadd.f32 0.0, %v523
        %v525 = vpop.f32.mrb[0].mxu0
        %v526 = vpop.f32.mrb[0].mxu0
        %v527 = vpop.f32.mrb[0].mxu0
        %528 = vdwg.mxu0
        %p529 = scmp.eq.s32.totalorder %s22, 3
        // Predicated region
        $region45: #{_lambda_.4} parent=35 // pred_check
          %p530 = pneg %p529
        $region46: #{_lambda_.4} parent=35 // pred_check_branch
          %532 = sbr.rel (%p530) target = $region48
        $region47: #{_lambda_.4} parent=35 // pred_region
          %533 = vst.msk [vmem:[#allocation6] sm:$0xff] %vm469, %v480
        $region48: #{_lambda_.4} parent=35 // pred_fallthru
          _
        %534 = vset.pattern.permute.xlu0 1
        %535 = vperm.xlu0 %534, %v452
        %v536 = vpop.permute.xlu0 %535
        %v538 = vlaneseq
        %v539 = vshrl.u32 %v538, 7
        %v540 = vsub.s32 1, %v539
        %v541 = vrot.slane %v453, %v540
        %v542 = vadd.f32 %v536, %v541
        %vm543 = vcmp.gt.f32.partialorder %v542, 0.0
        %v544 = vmul.f32 %v542, 0.2
        %v545 = vsel %vm543, %v542, %v544
        %v546 = vadd.f32 %v545, %v450
        %v547 = vsel %vm469, %v546, -inf
        %548 = vmax.xlane.f32.xlu0 %v547
        %v549 = vpop.xlane.xlu0 %548
        %v550 = vsub.f32 %v546, %v549
        %v551 = vmul.f32 %v550, 1.442695
        %v552 = vpow.pop %v551
        %v553 = vsel %vm469, %v552, 0.0
        %554 = vadd.xlane.f32.xlu0 %v553
        %v555 = vpop.xlane.xlu0 %554
        %v556 = vrcp.pop %v555
        %v557 = vmul.f32 %v552, %v556
        %v558 = vpack.c.bf16 %v557, %v557
        %v560 = vunpack.c.l.b16 %v454
        %v561 = vpack.c.b16 %v560, %v560
        %562 = vrot.lane.b32.xlu0 %v561, 112
        %v563 = vpop.permute.xlu0 %562
        %v565 = vsel %vm469, %v558, 0
        %v568 = vsel %vm485, %v563, 0
        %570 = vmatprep.subr.bf16.mxu0 0
        %571 = vmatpush1.bf16.msra.mxu0 %v568
        %572 = vmatprep.subr.bf16.mxu0 0
        %573 = vmatpush1.bf16.msra.mxu0 0
        %574 = vmatprep.subr.bf16.mxu0 0
        %575 = vmatpush1.bf16.msra.mxu0 0
        %576 = vmatprep.subr.bf16.mxu0 0
        %577 = vmatpush1.bf16.msra.mxu0 0
        %578 = vmatprep.subr.bf16.mxu0 0
        %579 = vmatpush1.bf16.msra.mxu0 0
        %580 = vmatprep.subr.bf16.mxu0 0
        %581 = vmatpush1.bf16.msra.mxu0 0
        %582 = vmatprep.subr.bf16.mxu0 0
        %583 = vmatpush1.bf16.msra.mxu0 0
        %584 = vmatprep.subr.bf16.mxu0 0
        %585 = vmatpush1.bf16.msra.mxu0 0
        %586 = vmatprep.subr.bf16.mxu0 0
        %587 = vmatpush1.bf16.msra.mxu0 0
        %588 = vmatprep.subr.bf16.mxu0 0
        %589 = vmatpush1.bf16.msra.mxu0 0
        %590 = vmatprep.subr.bf16.mxu0 0
        %591 = vmatpush1.bf16.msra.mxu0 0
        %592 = vmatprep.subr.bf16.mxu0 0
        %593 = vmatpush1.bf16.msra.mxu0 0
        %594 = vmatprep.subr.bf16.mxu0 0
        %595 = vmatpush1.bf16.msra.mxu0 0
        %596 = vmatprep.subr.bf16.mxu0 0
        %597 = vmatpush1.bf16.msra.mxu0 0
        %598 = vmatprep.subr.bf16.mxu0 0
        %599 = vmatpush1.bf16.msra.mxu0 0
        %600 = vmatprep.subr.bf16.mxu0 0
        %601 = vmatpush1.bf16.msra.mxu0 0
        %602 = vmatprep.mubr.bf16.mxu0 0
        %603 = vmatmul.mubr.bf16.gmra.mrb[0].mxu0 %v565
        %v604 = vpop.f32.mrb[0].mxu0
        %v605 = vadd.f32 0.0, %v604
        %v606 = vpop.f32.mrb[0].mxu0
        %v607 = vpop.f32.mrb[0].mxu0
        %v608 = vpop.f32.mrb[0].mxu0
        %609 = vdwg.mxu0
        // Predicated region
        $region49: #{_lambda_.4} parent=35 // pred_check
          %p610 = pneg %p529
        $region50: #{_lambda_.4} parent=35 // pred_check_branch
          %612 = sbr.rel (%p610) target = $region52
        $region51: #{_lambda_.4} parent=35 // pred_region
          %s613 = scalar_lea.vmem [#allocation6], 8
          %614 = vst.msk [vmem:[%s613] sm:$0xff] %vm469, %v557
        $region52: #{_lambda_.4} parent=35 // pred_fallthru
          _
        %615 = vset.pattern.permute.xlu0 2
        %616 = vperm.xlu0 %615, %v452
        %v617 = vpop.permute.xlu0 %616
        %v619 = vlaneseq
        %v620 = vshrl.u32 %v619, 7
        %v621 = vsub.s32 2, %v620
        %v622 = vrot.slane %v453, %v621
        %v623 = vadd.f32 %v617, %v622
        %vm624 = vcmp.gt.f32.partialorder %v623, 0.0
        %v625 = vmul.f32 %v623, 0.2
        %v626 = vsel %vm624, %v623, %v625
        %v627 = vadd.f32 %v626, %v450
        %v628 = vsel %vm469, %v627, -inf
        %629 = vmax.xlane.f32.xlu0 %v628
        %v630 = vpop.xlane.xlu0 %629
        %v631 = vsub.f32 %v627, %v630
        %v632 = vmul.f32 %v631, 1.442695
        %v633 = vpow.pop %v632
        %v634 = vsel %vm469, %v633, 0.0
        %635 = vadd.xlane.f32.xlu0 %v634
        %v636 = vpop.xlane.xlu0 %635
        %v637 = vrcp.pop %v636
        %v638 = vmul.f32 %v633, %v637
        %v639 = vpack.c.bf16 %v638, %v638
        %640 = vrot.lane.b32.xlu0 %v561, 96
        %v641 = vpop.permute.xlu0 %640
        %v643 = vsel %vm469, %v639, 0
        %v646 = vsel %vm485, %v641, 0
        %648 = vmatprep.subr.bf16.mxu0 0
        %649 = vmatpush1.bf16.msra.mxu0 %v646
        %650 = vmatprep.subr.bf16.mxu0 0
        %651 = vmatpush1.bf16.msra.mxu0 0
        %652 = vmatprep.subr.bf16.mxu0 0
        %653 = vmatpush1.bf16.msra.mxu0 0
        %654 = vmatprep.subr.bf16.mxu0 0
        %655 = vmatpush1.bf16.msra.mxu0 0
        %656 = vmatprep.subr.bf16.mxu0 0
        %657 = vmatpush1.bf16.msra.mxu0 0
        %658 = vmatprep.subr.bf16.mxu0 0
        %659 = vmatpush1.bf16.msra.mxu0 0
        %660 = vmatprep.subr.bf16.mxu0 0
        %661 = vmatpush1.bf16.msra.mxu0 0
        %662 = vmatprep.subr.bf16.mxu0 0
        %663 = vmatpush1.bf16.msra.mxu0 0
        %664 = vmatprep.subr.bf16.mxu0 0
        %665 = vmatpush1.bf16.msra.mxu0 0
        %666 = vmatprep.subr.bf16.mxu0 0
        %667 = vmatpush1.bf16.msra.mxu0 0
        %668 = vmatprep.subr.bf16.mxu0 0
        %669 = vmatpush1.bf16.msra.mxu0 0
        %670 = vmatprep.subr.bf16.mxu0 0
        %671 = vmatpush1.bf16.msra.mxu0 0
        %672 = vmatprep.subr.bf16.mxu0 0
        %673 = vmatpush1.bf16.msra.mxu0 0
        %674 = vmatprep.subr.bf16.mxu0 0
        %675 = vmatpush1.bf16.msra.mxu0 0
        %676 = vmatprep.subr.bf16.mxu0 0
        %677 = vmatpush1.bf16.msra.mxu0 0
        %678 = vmatprep.subr.bf16.mxu0 0
        %679 = vmatpush1.bf16.msra.mxu0 0
        %680 = vmatprep.mubr.bf16.mxu0 0
        %681 = vmatmul.mubr.bf16.gmra.mrb[0].mxu0 %v643
        %v682 = vpop.f32.mrb[0].mxu0
        %v683 = vadd.f32 0.0, %v682
        %v684 = vpop.f32.mrb[0].mxu0
        %v685 = vpop.f32.mrb[0].mxu0
        %v686 = vpop.f32.mrb[0].mxu0
        %687 = vdwg.mxu0
        // Predicated region
        $region53: #{_lambda_.4} parent=35 // pred_check
          %p688 = pneg %p529
        $region54: #{_lambda_.4} parent=35 // pred_check_branch
          %690 = sbr.rel (%p688) target = $region56
        $region55: #{_lambda_.4} parent=35 // pred_region
          %s691 = scalar_lea.vmem [#allocation6], 16
          %692 = vst.msk [vmem:[%s691] sm:$0xff] %vm469, %v638
        $region56: #{_lambda_.4} parent=35 // pred_fallthru
          _
        %693 = vset.pattern.permute.xlu0 3
        %694 = vperm.xlu0 %693, %v452
        %v695 = vpop.permute.xlu0 %694
        %v697 = vlaneseq
        %v698 = vshrl.u32 %v697, 7
        %v699 = vsub.s32 3, %v698
        %v700 = vrot.slane %v453, %v699
        %v701 = vadd.f32 %v695, %v700
        %vm702 = vcmp.gt.f32.partialorder %v701, 0.0
        %v703 = vmul.f32 %v701, 0.2
        %v704 = vsel %vm702, %v701, %v703
        %v705 = vadd.f32 %v704, %v450
        %v706 = vsel %vm469, %v705, -inf
        %707 = vmax.xlane.f32.xlu0 %v706
        %v708 = vpop.xlane.xlu0 %707
        %v709 = vsub.f32 %v705, %v708
        %v710 = vmul.f32 %v709, 1.442695
        %v711 = vpow.pop %v710
        %v712 = vsel %vm469, %v711, 0.0
        %713 = vadd.xlane.f32.xlu0 %v712
        %v714 = vpop.xlane.xlu0 %713
        %v715 = vrcp.pop %v714
        %v716 = vmul.f32 %v711, %v715
        %v717 = vpack.c.bf16 %v716, %v716
        %718 = vrot.lane.b32.xlu0 %v561, 80
        %v719 = vpop.permute.xlu0 %718
        %v721 = vsel %vm469, %v717, 0
        %v724 = vsel %vm485, %v719, 0
        %726 = vmatprep.subr.bf16.mxu0 0
        %727 = vmatpush1.bf16.msra.mxu0 %v724
        %728 = vmatprep.subr.bf16.mxu0 0
        %729 = vmatpush1.bf16.msra.mxu0 0
        %730 = vmatprep.subr.bf16.mxu0 0
        %731 = vmatpush1.bf16.msra.mxu0 0
        %732 = vmatprep.subr.bf16.mxu0 0
        %733 = vmatpush1.bf16.msra.mxu0 0
        %734 = vmatprep.subr.bf16.mxu0 0
        %735 = vmatpush1.bf16.msra.mxu0 0
        %736 = vmatprep.subr.bf16.mxu0 0
        %737 = vmatpush1.bf16.msra.mxu0 0
        %738 = vmatprep.subr.bf16.mxu0 0
        %739 = vmatpush1.bf16.msra.mxu0 0
        %740 = vmatprep.subr.bf16.mxu0 0
        %741 = vmatpush1.bf16.msra.mxu0 0
        %742 = vmatprep.subr.bf16.mxu0 0
        %743 = vmatpush1.bf16.msra.mxu0 0
        %744 = vmatprep.subr.bf16.mxu0 0
        %745 = vmatpush1.bf16.msra.mxu0 0
        %746 = vmatprep.subr.bf16.mxu0 0
        %747 = vmatpush1.bf16.msra.mxu0 0
        %748 = vmatprep.subr.bf16.mxu0 0
        %749 = vmatpush1.bf16.msra.mxu0 0
        %750 = vmatprep.subr.bf16.mxu0 0
        %751 = vmatpush1.bf16.msra.mxu0 0
        %752 = vmatprep.subr.bf16.mxu0 0
        %753 = vmatpush1.bf16.msra.mxu0 0
        %754 = vmatprep.subr.bf16.mxu0 0
        %755 = vmatpush1.bf16.msra.mxu0 0
        %756 = vmatprep.subr.bf16.mxu0 0
        %757 = vmatpush1.bf16.msra.mxu0 0
        %758 = vmatprep.mubr.bf16.mxu0 0
        %759 = vmatmul.mubr.bf16.gmra.mrb[0].mxu0 %v721
        %v760 = vpop.f32.mrb[0].mxu0
        %v761 = vadd.f32 0.0, %v760
        %v762 = vpop.f32.mrb[0].mxu0
        %v763 = vpop.f32.mrb[0].mxu0
        %v764 = vpop.f32.mrb[0].mxu0
        %765 = vdwg.mxu0
        // Predicated region
        $region57: #{_lambda_.4} parent=35 // pred_check
          %p766 = pneg %p529
        $region58: #{_lambda_.4} parent=35 // pred_check_branch
          %768 = sbr.rel (%p766) target = $region60
        $region59: #{_lambda_.4} parent=35 // pred_region
          %s769 = scalar_lea.vmem [#allocation6], 24
          %770 = vst.msk [vmem:[%s769] sm:$0xff] %vm469, %v716
        $region60: #{_lambda_.4} parent=35 // pred_fallthru
          _
        %771 = vset.pattern.permute.xlu0 4
        %772 = vperm.xlu0 %771, %v452
        %v773 = vpop.permute.xlu0 %772
        %v775 = vlaneseq
        %v776 = vshrl.u32 %v775, 7
        %v777 = vsub.s32 4, %v776
        %v778 = vrot.slane %v453, %v777
        %v779 = vadd.f32 %v773, %v778
        %vm780 = vcmp.gt.f32.partialorder %v779, 0.0
        %v781 = vmul.f32 %v779, 0.2
        %v782 = vsel %vm780, %v779, %v781
        %v783 = vadd.f32 %v782, %v450
        %v784 = vsel %vm469, %v783, -inf
        %785 = vmax.xlane.f32.xlu0 %v784
        %v786 = vpop.xlane.xlu0 %785
        %v787 = vsub.f32 %v783, %v786
        %v788 = vmul.f32 %v787, 1.442695
        %v789 = vpow.pop %v788
        %v790 = vsel %vm469, %v789, 0.0
        %791 = vadd.xlane.f32.xlu0 %v790
        %v792 = vpop.xlane.xlu0 %791
        %v793 = vrcp.pop %v792
        %v794 = vmul.f32 %v789, %v793
        %v795 = vpack.c.bf16 %v794, %v794
        %796 = vrot.lane.b32.xlu0 %v561, 64
        %v797 = vpop.permute.xlu0 %796
        %v799 = vsel %vm469, %v795, 0
        %v802 = vsel %vm485, %v797, 0
        %804 = vmatprep.subr.bf16.mxu0 0
        %805 = vmatpush1.bf16.msra.mxu0 %v802
        %806 = vmatprep.subr.bf16.mxu0 0
        %807 = vmatpush1.bf16.msra.mxu0 0
        %808 = vmatprep.subr.bf16.mxu0 0
        %809 = vmatpush1.bf16.msra.mxu0 0
        %810 = vmatprep.subr.bf16.mxu0 0
        %811 = vmatpush1.bf16.msra.mxu0 0
        %812 = vmatprep.subr.bf16.mxu0 0
        %813 = vmatpush1.bf16.msra.mxu0 0
        %814 = vmatprep.subr.bf16.mxu0 0
        %815 = vmatpush1.bf16.msra.mxu0 0
        %816 = vmatprep.subr.bf16.mxu0 0
        %817 = vmatpush1.bf16.msra.mxu0 0
        %818 = vmatprep.subr.bf16.mxu0 0
        %819 = vmatpush1.bf16.msra.mxu0 0
        %820 = vmatprep.subr.bf16.mxu0 0
        %821 = vmatpush1.bf16.msra.mxu0 0
        %822 = vmatprep.subr.bf16.mxu0 0
        %823 = vmatpush1.bf16.msra.mxu0 0
        %824 = vmatprep.subr.bf16.mxu0 0
        %825 = vmatpush1.bf16.msra.mxu0 0
        %826 = vmatprep.subr.bf16.mxu0 0
        %827 = vmatpush1.bf16.msra.mxu0 0
        %828 = vmatprep.subr.bf16.mxu0 0
        %829 = vmatpush1.bf16.msra.mxu0 0
        %830 = vmatprep.subr.bf16.mxu0 0
        %831 = vmatpush1.bf16.msra.mxu0 0
        %832 = vmatprep.subr.bf16.mxu0 0
        %833 = vmatpush1.bf16.msra.mxu0 0
        %834 = vmatprep.subr.bf16.mxu0 0
        %835 = vmatpush1.bf16.msra.mxu0 0
        %836 = vmatprep.mubr.bf16.mxu0 0
        %837 = vmatmul.mubr.bf16.gmra.mrb[0].mxu0 %v799
        %v838 = vpop.f32.mrb[0].mxu0
        %v839 = vadd.f32 0.0, %v838
        %v840 = vpop.f32.mrb[0].mxu0
        %v841 = vpop.f32.mrb[0].mxu0
        %v842 = vpop.f32.mrb[0].mxu0
        %843 = vdwg.mxu0
        // Predicated region
        $region61: #{_lambda_.4} parent=35 // pred_check
          %p844 = pneg %p529
        $region62: #{_lambda_.4} parent=35 // pred_check_branch
          %846 = sbr.rel (%p844) target = $region64
        $region63: #{_lambda_.4} parent=35 // pred_region
          %s847 = scalar_lea.vmem [#allocation6], 32
          %848 = vst.msk [vmem:[%s847] sm:$0xff] %vm469, %v794
        $region64: #{_lambda_.4} parent=35 // pred_fallthru
          _
        %849 = vset.pattern.permute.xlu0 5
        %850 = vperm.xlu0 %849, %v452
        %v851 = vpop.permute.xlu0 %850
        %v853 = vlaneseq
        %v854 = vshrl.u32 %v853, 7
        %v855 = vsub.s32 5, %v854
        %v856 = vrot.slane %v453, %v855
        %v857 = vadd.f32 %v851, %v856
        %vm858 = vcmp.gt.f32.partialorder %v857, 0.0
        %v859 = vmul.f32 %v857, 0.2
        %v860 = vsel %vm858, %v857, %v859
        %v861 = vadd.f32 %v860, %v450
        %v862 = vsel %vm469, %v861, -inf
        %863 = vmax.xlane.f32.xlu0 %v862
        %v864 = vpop.xlane.xlu0 %863
        %v865 = vsub.f32 %v861, %v864
        %v866 = vmul.f32 %v865, 1.442695
        %v867 = vpow.pop %v866
        %v868 = vsel %vm469, %v867, 0.0
        %869 = vadd.xlane.f32.xlu0 %v868
        %v870 = vpop.xlane.xlu0 %869
        %v871 = vrcp.pop %v870
        %v872 = vmul.f32 %v867, %v871
        %v873 = vpack.c.bf16 %v872, %v872
        %874 = vrot.lane.b32.xlu0 %v561, 48
        %v875 = vpop.permute.xlu0 %874
        %v877 = vsel %vm469, %v873, 0
        %v880 = vsel %vm485, %v875, 0
        %882 = vmatprep.subr.bf16.mxu0 0
        %883 = vmatpush1.bf16.msra.mxu0 %v880
        %884 = vmatprep.subr.bf16.mxu0 0
        %885 = vmatpush1.bf16.msra.mxu0 0
        %886 = vmatprep.subr.bf16.mxu0 0
        %887 = vmatpush1.bf16.msra.mxu0 0
        %888 = vmatprep.subr.bf16.mxu0 0
        %889 = vmatpush1.bf16.msra.mxu0 0
        %890 = vmatprep.subr.bf16.mxu0 0
        %891 = vmatpush1.bf16.msra.mxu0 0
        %892 = vmatprep.subr.bf16.mxu0 0
        %893 = vmatpush1.bf16.msra.mxu0 0
        %894 = vmatprep.subr.bf16.mxu0 0
        %895 = vmatpush1.bf16.msra.mxu0 0
        %896 = vmatprep.subr.bf16.mxu0 0
        %897 = vmatpush1.bf16.msra.mxu0 0
        %898 = vmatprep.subr.bf16.mxu0 0
        %899 = vmatpush1.bf16.msra.mxu0 0
        %900 = vmatprep.subr.bf16.mxu0 0
        %901 = vmatpush1.bf16.msra.mxu0 0
        %902 = vmatprep.subr.bf16.mxu0 0
        %903 = vmatpush1.bf16.msra.mxu0 0
        %904 = vmatprep.subr.bf16.mxu0 0
        %905 = vmatpush1.bf16.msra.mxu0 0
        %906 = vmatprep.subr.bf16.mxu0 0
        %907 = vmatpush1.bf16.msra.mxu0 0
        %908 = vmatprep.subr.bf16.mxu0 0
        %909 = vmatpush1.bf16.msra.mxu0 0
        %910 = vmatprep.subr.bf16.mxu0 0
        %911 = vmatpush1.bf16.msra.mxu0 0
        %912 = vmatprep.subr.bf16.mxu0 0
        %913 = vmatpush1.bf16.msra.mxu0 0
        %914 = vmatprep.mubr.bf16.mxu0 0
        %915 = vmatmul.mubr.bf16.gmra.mrb[0].mxu0 %v877
        %v916 = vpop.f32.mrb[0].mxu0
        %v917 = vadd.f32 0.0, %v916
        %v918 = vpop.f32.mrb[0].mxu0
        %v919 = vpop.f32.mrb[0].mxu0
        %v920 = vpop.f32.mrb[0].mxu0
        %921 = vdwg.mxu0
        // Predicated region
        $region65: #{_lambda_.4} parent=35 // pred_check
          %p922 = pneg %p529
        $region66: #{_lambda_.4} parent=35 // pred_check_branch
          %924 = sbr.rel (%p922) target = $region68
        $region67: #{_lambda_.4} parent=35 // pred_region
          %s925 = scalar_lea.vmem [#allocation6], 40
          %926 = vst.msk [vmem:[%s925] sm:$0xff] %vm469, %v872
        $region68: #{_lambda_.4} parent=35 // pred_fallthru
          _
        %927 = vset.pattern.permute.xlu0 6
        %928 = vperm.xlu0 %927, %v452
        %v929 = vpop.permute.xlu0 %928
        %v931 = vlaneseq
        %v932 = vshrl.u32 %v931, 7
        %v933 = vsub.s32 6, %v932
        %v934 = vrot.slane %v453, %v933
        %v935 = vadd.f32 %v929, %v934
        %vm936 = vcmp.gt.f32.partialorder %v935, 0.0
        %v937 = vmul.f32 %v935, 0.2
        %v938 = vsel %vm936, %v935, %v937
        %v939 = vadd.f32 %v938, %v450
        %v940 = vsel %vm469, %v939, -inf
        %941 = vmax.xlane.f32.xlu0 %v940
        %v942 = vpop.xlane.xlu0 %941
        %v943 = vsub.f32 %v939, %v942
        %v944 = vmul.f32 %v943, 1.442695
        %v945 = vpow.pop %v944
        %v946 = vsel %vm469, %v945, 0.0
        %947 = vadd.xlane.f32.xlu0 %v946
        %v948 = vpop.xlane.xlu0 %947
        %v949 = vrcp.pop %v948
        %v950 = vmul.f32 %v945, %v949
        %v951 = vpack.c.bf16 %v950, %v950
        %952 = vrot.lane.b32.xlu0 %v561, 32
        %v953 = vpop.permute.xlu0 %952
        %v955 = vsel %vm469, %v951, 0
        %v958 = vsel %vm485, %v953, 0
        %960 = vmatprep.subr.bf16.mxu0 0
        %961 = vmatpush1.bf16.msra.mxu0 %v958
        %962 = vmatprep.subr.bf16.mxu0 0
        %963 = vmatpush1.bf16.msra.mxu0 0
        %964 = vmatprep.subr.bf16.mxu0 0
        %965 = vmatpush1.bf16.msra.mxu0 0
        %966 = vmatprep.subr.bf16.mxu0 0
        %967 = vmatpush1.bf16.msra.mxu0 0
        %968 = vmatprep.subr.bf16.mxu0 0
        %969 = vmatpush1.bf16.msra.mxu0 0
        %970 = vmatprep.subr.bf16.mxu0 0
        %971 = vmatpush1.bf16.msra.mxu0 0
        %972 = vmatprep.subr.bf16.mxu0 0
        %973 = vmatpush1.bf16.msra.mxu0 0
        %974 = vmatprep.subr.bf16.mxu0 0
        %975 = vmatpush1.bf16.msra.mxu0 0
        %976 = vmatprep.subr.bf16.mxu0 0
        %977 = vmatpush1.bf16.msra.mxu0 0
        %978 = vmatprep.subr.bf16.mxu0 0
        %979 = vmatpush1.bf16.msra.mxu0 0
        %980 = vmatprep.subr.bf16.mxu0 0
        %981 = vmatpush1.bf16.msra.mxu0 0
        %982 = vmatprep.subr.bf16.mxu0 0
        %983 = vmatpush1.bf16.msra.mxu0 0
        %984 = vmatprep.subr.bf16.mxu0 0
        %985 = vmatpush1.bf16.msra.mxu0 0
        %986 = vmatprep.subr.bf16.mxu0 0
        %987 = vmatpush1.bf16.msra.mxu0 0
        %988 = vmatprep.subr.bf16.mxu0 0
        %989 = vmatpush1.bf16.msra.mxu0 0
        %990 = vmatprep.subr.bf16.mxu0 0
        %991 = vmatpush1.bf16.msra.mxu0 0
        %992 = vmatprep.mubr.bf16.mxu0 0
        %993 = vmatmul.mubr.bf16.gmra.mrb[0].mxu0 %v955
        %v994 = vpop.f32.mrb[0].mxu0
        %v995 = vadd.f32 0.0, %v994
        %v996 = vpop.f32.mrb[0].mxu0
        %v997 = vpop.f32.mrb[0].mxu0
        %v998 = vpop.f32.mrb[0].mxu0
        %999 = vdwg.mxu0
        // Predicated region
        $region69: #{_lambda_.4} parent=35 // pred_check
          %p1000 = pneg %p529
        $region70: #{_lambda_.4} parent=35 // pred_check_branch
          %1002 = sbr.rel (%p1000) target = $region72
        $region71: #{_lambda_.4} parent=35 // pred_region
          %s1003 = scalar_lea.vmem [#allocation6], 48
          %1004 = vst.msk [vmem:[%s1003] sm:$0xff] %vm469, %v950
        $region72: #{_lambda_.4} parent=35 // pred_fallthru
          _
        %1005 = vset.pattern.permute.xlu0 7
        %1006 = vperm.xlu0 %1005, %v452
        %v1007 = vpop.permute.xlu0 %1006
        %v1009 = vlaneseq
        %v1010 = vshrl.u32 %v1009, 7
        %v1011 = vsub.s32 7, %v1010
        %v1012 = vrot.slane %v453, %v1011
        %v1013 = vadd.f32 %v1007, %v1012
        %vm1014 = vcmp.gt.f32.partialorder %v1013, 0.0
        %v1015 = vmul.f32 %v1013, 0.2
        %v1016 = vsel %vm1014, %v1013, %v1015
        %v1017 = vadd.f32 %v1016, %v450
        %v1018 = vsel %vm469, %v1017, -inf
        %1019 = vmax.xlane.f32.xlu0 %v1018
        %v1020 = vpop.xlane.xlu0 %1019
        %v1021 = vsub.f32 %v1017, %v1020
        %v1022 = vmul.f32 %v1021, 1.442695
        %v1023 = vpow.pop %v1022
        %v1024 = vsel %vm469, %v1023, 0.0
        %1025 = vadd.xlane.f32.xlu0 %v1024
        %v1026 = vpop.xlane.xlu0 %1025
        %v1027 = vrcp.pop %v1026
        %v1028 = vmul.f32 %v1023, %v1027
        %v1029 = vpack.c.bf16 %v1028, %v1028
        %1030 = vrot.lane.b32.xlu0 %v561, 16
        %v1031 = vpop.permute.xlu0 %1030
        %v1033 = vsel %vm469, %v1029, 0
        %v1036 = vsel %vm485, %v1031, 0
        %1038 = vmatprep.subr.bf16.mxu0 0
        %1039 = vmatpush1.bf16.msra.mxu0 %v1036
        %1040 = vmatprep.subr.bf16.mxu0 0
        %1041 = vmatpush1.bf16.msra.mxu0 0
        %1042 = vmatprep.subr.bf16.mxu0 0
        %1043 = vmatpush1.bf16.msra.mxu0 0
        %1044 = vmatprep.subr.bf16.mxu0 0
        %1045 = vmatpush1.bf16.msra.mxu0 0
        %1046 = vmatprep.subr.bf16.mxu0 0
        %1047 = vmatpush1.bf16.msra.mxu0 0
        %1048 = vmatprep.subr.bf16.mxu0 0
        %1049 = vmatpush1.bf16.msra.mxu0 0
        %1050 = vmatprep.subr.bf16.mxu0 0
        %1051 = vmatpush1.bf16.msra.mxu0 0
        %1052 = vmatprep.subr.bf16.mxu0 0
        %1053 = vmatpush1.bf16.msra.mxu0 0
        %1054 = vmatprep.subr.bf16.mxu0 0
        %1055 = vmatpush1.bf16.msra.mxu0 0
        %1056 = vmatprep.subr.bf16.mxu0 0
        %1057 = vmatpush1.bf16.msra.mxu0 0
        %1058 = vmatprep.subr.bf16.mxu0 0
        %1059 = vmatpush1.bf16.msra.mxu0 0
        %1060 = vmatprep.subr.bf16.mxu0 0
        %1061 = vmatpush1.bf16.msra.mxu0 0
        %1062 = vmatprep.subr.bf16.mxu0 0
        %1063 = vmatpush1.bf16.msra.mxu0 0
        %1064 = vmatprep.subr.bf16.mxu0 0
        %1065 = vmatpush1.bf16.msra.mxu0 0
        %1066 = vmatprep.subr.bf16.mxu0 0
        %1067 = vmatpush1.bf16.msra.mxu0 0
        %1068 = vmatprep.subr.bf16.mxu0 0
        %1069 = vmatpush1.bf16.msra.mxu0 0
        %1070 = vmatprep.mubr.bf16.mxu0 0
        %1071 = vmatmul.mubr.bf16.gmra.mrb[0].mxu0 %v1033
        %v1072 = vpop.f32.mrb[0].mxu0
        %v1073 = vadd.f32 0.0, %v1072
        %v1074 = vpop.f32.mrb[0].mxu0
        %v1075 = vpop.f32.mrb[0].mxu0
        %v1076 = vpop.f32.mrb[0].mxu0
        %1077 = vdwg.mxu0
        // Predicated region
        $region73: #{_lambda_.4} parent=35 // pred_check
          %p1078 = pneg %p529
        $region74: #{_lambda_.4} parent=35 // pred_check_branch
          %1080 = sbr.rel (%p1078) target = $region76
        $region75: #{_lambda_.4} parent=35 // pred_region
          %s1081 = scalar_lea.vmem [#allocation6], 56
          %1082 = vst.msk [vmem:[%s1081] sm:$0xff] %vm469, %v1028
        $region76: #{_lambda_.4} parent=35 // pred_fallthru
          _
        %1084 = vrot.lane.b32.xlu0 %v605, 16
        %v1085 = vpop.permute.xlu0 %1084
        %1088 = vrot.lane.b32.xlu0 %v683, 32
        %v1089 = vpop.permute.xlu0 %1088
        %1092 = vrot.lane.b32.xlu0 %v761, 48
        %v1093 = vpop.permute.xlu0 %1092
        %1096 = vrot.lane.b32.xlu0 %v839, 64
        %v1097 = vpop.permute.xlu0 %1096
        %1100 = vrot.lane.b32.xlu0 %v917, 80
        %v1101 = vpop.permute.xlu0 %1100
        %1104 = vrot.lane.b32.xlu0 %v995, 96
        %v1105 = vpop.permute.xlu0 %1104
        %1108 = vrot.lane.b32.xlu0 %v1073, 112
        %v1109 = vpop.permute.xlu0 %1108
        %vm1111 = vcmask 130048
        %v1112 = vsel %vm1111, %v524, %v1085
        %vm1113 = vcmask 261120
        %v1114 = vsel %vm1113, %v1112, %v1089
        %vm1115 = vcmask 392192
        %v1116 = vsel %vm1115, %v1114, %v1093
        %vm1117 = vcmask 523264
        %v1118 = vsel %vm1117, %v1116, %v1097
        %vm1119 = vcmask 654336
        %v1120 = vsel %vm1119, %v1118, %v1101
        %vm1121 = vcmask 785408
        %v1122 = vsel %vm1121, %v1120, %v1105
        %vm1123 = vcmask 916480
        %v1124 = vsel %vm1123, %v1122, %v1109
        %v1125 = vpack.c.bf16 %v1124, %v1124
        %1126 = vst [vmem:[%s243] sm:$0xf] %v1125
        %s1127 = sshra.s32 %s447, 3
        %s1128 = sand.u32 %s447, 7
        %s1129 = smul.addr %s1127, 4
        %s1130 = scalar_lea.vmem [#allocation2], %s1129
        %1131 = vst [vmem:[%s1130] sm:$0xf] %v1125
        %p1132 = scmp.lt.s32.totalorder %s22, 3
        %s1133 = scalar_select %p1132, %s22, 3
        %p1134 = scmp.lt.s32.totalorder %s23, 0
        %s1135 = scalar_select %p1134, %s23, 0
        %s1136 = sadd.s32 %s1135, %s1133
        %s1137 = smul.addr %s1136, 4
        %s1138 = scalar_lea.vmem %s4, %s1137
        // Predicated region
        $region77: #{_lambda_.4} parent=35 // pred_check
          %p1139 = pneg %p139
        $region78: #{_lambda_.4} parent=35 // pred_check_branch
          %1141 = sbr.rel (%p1139) target = $region80
        $region79: #{_lambda_.4} parent=35 // pred_region
          _
        $region80: #{_lambda_.4} parent=35 // pred_fallthru
          _
        // Predicated region
        $region81: #{_lambda_.4} parent=35 // pred_check
          %p1142 = pneg %p165
        $region82: #{_lambda_.4} parent=35 // pred_check_branch
          %1144 = sbr.rel (%p1142) target = $region84
        $region83: #{_lambda_.4} parent=35 // pred_region
          %s1146 = ssub.s32 1024, 1024
          %1147 = vsyncadd [#allocation7], %s1146
          %s1148 = smul.addr %s23, 128
          %s1149 = scalar_lea.hbm %s5, %s1148
          %s1150 = sshll.u32 [#allocation6], 4
          %s1151 = int_to_ptr.vmem [resolvable:$true] %s1150
          %1156 = dma.vmem_to_hbm [thread:$0]  %s1151, 1024, %s1149, [#allocation7], 128, 128, 8
        $region84: #{_lambda_.4} parent=35 // pred_fallthru
          _
        // Predicated region
        $region85: #{_lambda_.4} parent=35 // pred_check
          %p1157 = pneg %p165
        $region86: #{_lambda_.4} parent=35 // pred_check_branch
          %1159 = sbr.rel (%p1157) target = $region88
        $region87: #{_lambda_.4} parent=35 // pred_region
          %1160 = dma.done [#allocation7], 1024
        $region88: #{_lambda_.4} parent=35 // pred_fallthru
          _
      $region36: #{_lambda_.4} parent=5 // pred_fallthru
        _
      %p1161 = scmp.le.s32.totalorder 2, %s13
      // Predicated region
      $region89: #{_lambda_.4} parent=5 // pred_check
        %p1162 = pneg %p1161
      $region90: #{_lambda_.4} parent=5 // pred_check_branch
        %1164 = sbr.rel (%p1162) target = $region92
      $region91: #{_lambda_.4} parent=5 // pred_region
        %s1165 = ssub.s32 %s13, 2
        // Predicated region
        $region93: #{_lambda_.4} parent=91 // pred_check
          %p1166 = pneg %p145
        $region94: #{_lambda_.4} parent=91 // pred_check_branch
          %1168 = sbr.rel (%p1166) target = $region96
        $region95: #{_lambda_.4} parent=91 // pred_region
          %p1169 = scmp.lt.s32.totalorder %s24, 3
          %s1170 = scalar_select %p1169, %s24, 3
          %p1171 = scmp.lt.s32.totalorder %s25, 0
          %s1172 = scalar_select %p1171, %s25, 0
          %s1173 = sadd.s32 %s1172, %s1170
          %s1174 = smul.addr %s1173, 4
          %s1175 = scalar_lea.vmem %s4, %s1174
        $region96: #{_lambda_.4} parent=91 // pred_fallthru
          _
      $region92: #{_lambda_.4} parent=5 // pred_fallthru
        _
    $region6: #{_lambda_.4} parent=1 // loop_footer
      %s17 = sadd.s32 1, %s13
    $region7: #{_lambda_.4} parent=1 // loop_footer_branch
      %12 = sbr.rel target = $region3
    $region8: #{_lambda_.4} parent=1 // loop_exit
      _
    %1176 = vsyncpa [#allocation7], 1
    %s1177 = scalar_lea.sflag [#allocation7], 1
    %1178 = vsyncpa %s1177, 1

// kernel: _lambda_.5
$region0: #{_lambda_.5}
  #allocation0 [shape = 'u32[]', space=smem, size = 0x4, offset = 0x4, fixed_abs, tag = 'smem constant byte address 0x4 - core index']
  #allocation1 [shape = 'u32[144,128]{1,0:T(1,128)}', space=vmem, size = 0x12000, scoped, tag = 'internal scratch']
  %s0 = inlined_call_operand.vmem [shape: bf16[4,8,128], index: 0, kind: input, shape index: {}]
  %s1 = inlined_call_operand.vmem [shape: bf16[128,512], index: 1, kind: input, shape index: {}]
  %s2 = inlined_call_operand.vmem [shape: bf16[128,512], index: 2, kind: input, shape index: {}]
  %s3 = inlined_call_operand.vmem [shape: f32[1,512], index: 3, kind: input, shape index: {}]
  %s4 = inlined_call_operand.vmem [shape: bf16[128,512], index: 4, kind: input, shape index: {}]
  %s5 = inlined_call_operand.vmem [shape: bf16[128,512], index: 5, kind: input, shape index: {}]
  %s6 = inlined_call_operand.vmem [shape: f32[1,512], index: 6, kind: input, shape index: {}]
  %s7 = inlined_call_operand.hbm [shape: f32[8,128], index: 7, kind: output, shape index: {}]
  %s8 = sld [smem:[#allocation0]]
  $region38: #{_lambda_.5} parent=0
    _
  %s10 = ssub.s32 1, %s8
  %s11 = scalar_select 0, %s10, %s8
  $region1: #{_lambda_.5} parent=0
    #allocation2 [shape = 'u8[4096]{0}', space=vmem, size = 0x1000, scoped, tag = 'output window, operand 0, single buffered']
    #allocation3 [shape = 's32[1]{0}', space=sflag, size = 0x4, scoped, tag = 'scoped memory for _lambda_.5']
    %12 = vsyncpa [#allocation3], 0
    // Predicated region
    $region2: #{_lambda_.5} parent=1 // pred_check
      _
    $region3: #{_lambda_.5} parent=1 // pred_check_branch
      %14 = sbr.rel (0) target = $region5
    $region4: #{_lambda_.5} parent=1 // pred_region
      _
    $region5: #{_lambda_.5} parent=1 // pred_fallthru
      _
    // Predicated region
    $region6: #{_lambda_.5} parent=1 // pred_check
      _
    $region7: #{_lambda_.5} parent=1 // pred_check_branch
      %16 = sbr.rel (0) target = $region9
    $region8: #{_lambda_.5} parent=1 // pred_region
      _
    $region9: #{_lambda_.5} parent=1 // pred_fallthru
      _
    // Predicated region
    $region10: #{_lambda_.5} parent=1 // pred_check
      _
    $region11: #{_lambda_.5} parent=1 // pred_check_branch
      %18 = sbr.rel (0) target = $region13
    $region12: #{_lambda_.5} parent=1 // pred_region
      _
    $region13: #{_lambda_.5} parent=1 // pred_fallthru
      _
    // Predicated region
    $region14: #{_lambda_.5} parent=1 // pred_check
      _
    $region15: #{_lambda_.5} parent=1 // pred_check_branch
      %20 = sbr.rel (0) target = $region17
    $region16: #{_lambda_.5} parent=1 // pred_region
      _
    $region17: #{_lambda_.5} parent=1 // pred_fallthru
      _
    // Predicated region
    $region18: #{_lambda_.5} parent=1 // pred_check
      _
    $region19: #{_lambda_.5} parent=1 // pred_check_branch
      %22 = sbr.rel (0) target = $region21
    $region20: #{_lambda_.5} parent=1 // pred_region
      _
    $region21: #{_lambda_.5} parent=1 // pred_fallthru
      _
    // Predicated region
    $region22: #{_lambda_.5} parent=1 // pred_check
      _
    $region23: #{_lambda_.5} parent=1 // pred_check_branch
      %24 = sbr.rel (0) target = $region25
    $region24: #{_lambda_.5} parent=1 // pred_region
      _
    $region25: #{_lambda_.5} parent=1 // pred_fallthru
      _
    // Predicated region
    $region26: #{_lambda_.5} parent=1 // pred_check
      _
    $region27: #{_lambda_.5} parent=1 // pred_check_branch
      %26 = sbr.rel (0) target = $region29
    $region28: #{_lambda_.5} parent=1 // pred_region
      _
    $region29: #{_lambda_.5} parent=1 // pred_fallthru
      _
    %v28 = vld [vmem:[%s1] sm:$0xff]
    %v29 = vld [vmem:[%s1 + $0x8] sm:$0xff]
    %v30 = vld [vmem:[%s1 + $0x10] sm:$0xff]
    %v31 = vld [vmem:[%s1 + $0x18] sm:$0xff]
    %v32 = vld [vmem:[%s1 + $0x20] sm:$0xff]
    %v33 = vld [vmem:[%s1 + $0x28] sm:$0xff]
    %v34 = vld [vmem:[%s1 + $0x30] sm:$0xff]
    %v35 = vld [vmem:[%s1 + $0x38] sm:$0xff]
    %v36 = vld [vmem:[%s1 + $0x40] sm:$0xff]
    %v37 = vld [vmem:[%s1 + $0x48] sm:$0xff]
    %v38 = vld [vmem:[%s1 + $0x50] sm:$0xff]
    %v39 = vld [vmem:[%s1 + $0x58] sm:$0xff]
    %v40 = vld [vmem:[%s1 + $0x60] sm:$0xff]
    %v41 = vld [vmem:[%s1 + $0x68] sm:$0xff]
    %v42 = vld [vmem:[%s1 + $0x70] sm:$0xff]
    %v43 = vld [vmem:[%s1 + $0x78] sm:$0xff]
    %v44 = vld [vmem:[%s1 + $0x80] sm:$0xff]
    %v45 = vld [vmem:[%s1 + $0x88] sm:$0xff]
    %v46 = vld [vmem:[%s1 + $0x90] sm:$0xff]
    %v47 = vld [vmem:[%s1 + $0x98] sm:$0xff]
    %v48 = vld [vmem:[%s1 + $0xa0] sm:$0xff]
    %v49 = vld [vmem:[%s1 + $0xa8] sm:$0xff]
    %v50 = vld [vmem:[%s1 + $0xb0] sm:$0xff]
    %v51 = vld [vmem:[%s1 + $0xb8] sm:$0xff]
    %v52 = vld [vmem:[%s1 + $0xc0] sm:$0xff]
    %v53 = vld [vmem:[%s1 + $0xc8] sm:$0xff]
    %v54 = vld [vmem:[%s1 + $0xd0] sm:$0xff]
    %v55 = vld [vmem:[%s1 + $0xd8] sm:$0xff]
    %v56 = vld [vmem:[%s1 + $0xe0] sm:$0xff]
    %v57 = vld [vmem:[%s1 + $0xe8] sm:$0xff]
    %v58 = vld [vmem:[%s1 + $0xf0] sm:$0xff]
    %v59 = vld [vmem:[%s1 + $0xf8] sm:$0xff]
    %v60 = vld [vmem:[%s2] sm:$0xff]
    %v61 = vld [vmem:[%s2 + $0x8] sm:$0xff]
    %v62 = vld [vmem:[%s2 + $0x10] sm:$0xff]
    %v63 = vld [vmem:[%s2 + $0x18] sm:$0xff]
    %v64 = vld [vmem:[%s2 + $0x20] sm:$0xff]
    %v65 = vld [vmem:[%s2 + $0x28] sm:$0xff]
    %v66 = vld [vmem:[%s2 + $0x30] sm:$0xff]
    %v67 = vld [vmem:[%s2 + $0x38] sm:$0xff]
    %v68 = vld [vmem:[%s2 + $0x40] sm:$0xff]
    %v69 = vld [vmem:[%s2 + $0x48] sm:$0xff]
    %v70 = vld [vmem:[%s2 + $0x50] sm:$0xff]
    %v71 = vld [vmem:[%s2 + $0x58] sm:$0xff]
    %v72 = vld [vmem:[%s2 + $0x60] sm:$0xff]
    %v73 = vld [vmem:[%s2 + $0x68] sm:$0xff]
    %v74 = vld [vmem:[%s2 + $0x70] sm:$0xff]
    %v75 = vld [vmem:[%s2 + $0x78] sm:$0xff]
    %v76 = vld [vmem:[%s2 + $0x80] sm:$0xff]
    %v77 = vld [vmem:[%s2 + $0x88] sm:$0xff]
    %v78 = vld [vmem:[%s2 + $0x90] sm:$0xff]
    %v79 = vld [vmem:[%s2 + $0x98] sm:$0xff]
    %v80 = vld [vmem:[%s2 + $0xa0] sm:$0xff]
    %v81 = vld [vmem:[%s2 + $0xa8] sm:$0xff]
    %v82 = vld [vmem:[%s2 + $0xb0] sm:$0xff]
    %v83 = vld [vmem:[%s2 + $0xb8] sm:$0xff]
    %v84 = vld [vmem:[%s2 + $0xc0] sm:$0xff]
    %v85 = vld [vmem:[%s2 + $0xc8] sm:$0xff]
    %v86 = vld [vmem:[%s2 + $0xd0] sm:$0xff]
    %v87 = vld [vmem:[%s2 + $0xd8] sm:$0xff]
    %v88 = vld [vmem:[%s2 + $0xe0] sm:$0xff]
    %v89 = vld [vmem:[%s2 + $0xe8] sm:$0xff]
    %v90 = vld [vmem:[%s2 + $0xf0] sm:$0xff]
    %v91 = vld [vmem:[%s2 + $0xf8] sm:$0xff]
    %v92 = vld [vmem:[%s4] sm:$0xff]
    %v93 = vld [vmem:[%s4 + $0x8] sm:$0xff]
    %v94 = vld [vmem:[%s4 + $0x10] sm:$0xff]
    %v95 = vld [vmem:[%s4 + $0x18] sm:$0xff]
    %v96 = vld [vmem:[%s4 + $0x20] sm:$0xff]
    %v97 = vld [vmem:[%s4 + $0x28] sm:$0xff]
    %v98 = vld [vmem:[%s4 + $0x30] sm:$0xff]
    %v99 = vld [vmem:[%s4 + $0x38] sm:$0xff]
    %v100 = vld [vmem:[%s4 + $0x40] sm:$0xff]
    %v101 = vld [vmem:[%s4 + $0x48] sm:$0xff]
    %v102 = vld [vmem:[%s4 + $0x50] sm:$0xff]
    %v103 = vld [vmem:[%s4 + $0x58] sm:$0xff]
    %v104 = vld [vmem:[%s4 + $0x60] sm:$0xff]
    %v105 = vld [vmem:[%s4 + $0x68] sm:$0xff]
    %v106 = vld [vmem:[%s4 + $0x70] sm:$0xff]
    %v107 = vld [vmem:[%s4 + $0x78] sm:$0xff]
    %v108 = vld [vmem:[%s4 + $0x80] sm:$0xff]
    %v109 = vld [vmem:[%s4 + $0x88] sm:$0xff]
    %v110 = vld [vmem:[%s4 + $0x90] sm:$0xff]
    %v111 = vld [vmem:[%s4 + $0x98] sm:$0xff]
    %v112 = vld [vmem:[%s4 + $0xa0] sm:$0xff]
    %v113 = vld [vmem:[%s4 + $0xa8] sm:$0xff]
    %v114 = vld [vmem:[%s4 + $0xb0] sm:$0xff]
    %v115 = vld [vmem:[%s4 + $0xb8] sm:$0xff]
    %v116 = vld [vmem:[%s4 + $0xc0] sm:$0xff]
    %v117 = vld [vmem:[%s4 + $0xc8] sm:$0xff]
    %v118 = vld [vmem:[%s4 + $0xd0] sm:$0xff]
    %v119 = vld [vmem:[%s4 + $0xd8] sm:$0xff]
    %v120 = vld [vmem:[%s4 + $0xe0] sm:$0xff]
    %v121 = vld [vmem:[%s4 + $0xe8] sm:$0xff]
    %v122 = vld [vmem:[%s4 + $0xf0] sm:$0xff]
    %v123 = vld [vmem:[%s4 + $0xf8] sm:$0xff]
    %v124 = vld [vmem:[%s5] sm:$0xff]
    %v125 = vld [vmem:[%s5 + $0x8] sm:$0xff]
    %v126 = vld [vmem:[%s5 + $0x10] sm:$0xff]
    %v127 = vld [vmem:[%s5 + $0x18] sm:$0xff]
    %v128 = vld [vmem:[%s5 + $0x20] sm:$0xff]
    %v129 = vld [vmem:[%s5 + $0x28] sm:$0xff]
    %v130 = vld [vmem:[%s5 + $0x30] sm:$0xff]
    %v131 = vld [vmem:[%s5 + $0x38] sm:$0xff]
    %v132 = vld [vmem:[%s5 + $0x40] sm:$0xff]
    %v133 = vld [vmem:[%s5 + $0x48] sm:$0xff]
    %v134 = vld [vmem:[%s5 + $0x50] sm:$0xff]
    %v135 = vld [vmem:[%s5 + $0x58] sm:$0xff]
    %v136 = vld [vmem:[%s5 + $0x60] sm:$0xff]
    %v137 = vld [vmem:[%s5 + $0x68] sm:$0xff]
    %v138 = vld [vmem:[%s5 + $0x70] sm:$0xff]
    %v139 = vld [vmem:[%s5 + $0x78] sm:$0xff]
    %v140 = vld [vmem:[%s5 + $0x80] sm:$0xff]
    %v141 = vld [vmem:[%s5 + $0x88] sm:$0xff]
    %v142 = vld [vmem:[%s5 + $0x90] sm:$0xff]
    %v143 = vld [vmem:[%s5 + $0x98] sm:$0xff]
    %v144 = vld [vmem:[%s5 + $0xa0] sm:$0xff]
    %v145 = vld [vmem:[%s5 + $0xa8] sm:$0xff]
    %v146 = vld [vmem:[%s5 + $0xb0] sm:$0xff]
    %v147 = vld [vmem:[%s5 + $0xb8] sm:$0xff]
    %v148 = vld [vmem:[%s5 + $0xc0] sm:$0xff]
    %v149 = vld [vmem:[%s5 + $0xc8] sm:$0xff]
    %v150 = vld [vmem:[%s5 + $0xd0] sm:$0xff]
    %v151 = vld [vmem:[%s5 + $0xd8] sm:$0xff]
    %v152 = vld [vmem:[%s5 + $0xe0] sm:$0xff]
    %v153 = vld [vmem:[%s5 + $0xe8] sm:$0xff]
    %v154 = vld [vmem:[%s5 + $0xf0] sm:$0xff]
    %v155 = vld [vmem:[%s5 + $0xf8] sm:$0xff]
    %v156 = vld [vmem:[%s3] sm:$0xf]
    %v157 = vld [vmem:[%s6] sm:$0xf]
    %v158 = vld [vmem:[%s0] sm:$0xf]
    %s159 = scalar_lea.vmem %s0, 4
    %v160 = vld [vmem:[%s159] sm:$0xf]
    %s161 = scalar_lea.vmem %s0, 8
    %v162 = vld [vmem:[%s161] sm:$0xf]
    %s163 = scalar_lea.vmem %s0, 12
    %v164 = vld [vmem:[%s163] sm:$0xf]
    %v166 = vunpack.c.l.b16 %v160
    %v167 = vpack.c.b16 %v166, %v166
    %v169 = vunpack.c.l.b16 %v164
    %v170 = vpack.c.b16 %v169, %v169
    %vm171 = vcmask 1043456
    %v174 = vsel %vm171, %v158, %v167
    %v178 = vsel %vm171, %v162, %v170
    %v181 = vlaneseq
    %v182 = vshrl.u32 %v181, 7
    %v183 = vsub.s32 0, %v182
    %v184 = vrot.slane %v156, %v183
    %v185 = vlaneseq
    %v186 = vshrl.u32 %v185, 7
    %v187 = vsub.s32 1, %v186
    %v188 = vrot.slane %v156, %v187
    %v189 = vlaneseq
    %v190 = vshrl.u32 %v189, 7
    %v191 = vsub.s32 2, %v190
    %v192 = vrot.slane %v156, %v191
    %v193 = vlaneseq
    %v194 = vshrl.u32 %v193, 7
    %v195 = vsub.s32 3, %v194
    %v196 = vrot.slane %v156, %v195
    %v233 = vunpack.c.l.b16 %v28
    %v234 = vunpack.c.h.b16 %v28
    %v235 = vunpack.c.l.b16 %v29
    %v236 = vunpack.c.h.b16 %v29
    %v237 = vunpack.c.l.b16 %v30
    %v238 = vunpack.c.h.b16 %v30
    %v239 = vunpack.c.l.b16 %v31
    %v240 = vunpack.c.h.b16 %v31
    %v241 = vunpack.c.l.b16 %v32
    %v242 = vunpack.c.h.b16 %v32
    %v243 = vunpack.c.l.b16 %v33
    %v244 = vunpack.c.h.b16 %v33
    %v245 = vunpack.c.l.b16 %v34
    %v246 = vunpack.c.h.b16 %v34
    %v247 = vunpack.c.l.b16 %v35
    %v248 = vunpack.c.h.b16 %v35
    %v249 = vunpack.c.l.b16 %v36
    %v250 = vunpack.c.h.b16 %v36
    %v251 = vunpack.c.l.b16 %v37
    %v252 = vunpack.c.h.b16 %v37
    %v253 = vunpack.c.l.b16 %v38
    %v254 = vunpack.c.h.b16 %v38
    %v255 = vunpack.c.l.b16 %v39
    %v256 = vunpack.c.h.b16 %v39
    %v257 = vunpack.c.l.b16 %v40
    %v258 = vunpack.c.h.b16 %v40
    %v259 = vunpack.c.l.b16 %v41
    %v260 = vunpack.c.h.b16 %v41
    %v261 = vunpack.c.l.b16 %v42
    %v262 = vunpack.c.h.b16 %v42
    %v263 = vunpack.c.l.b16 %v43
    %v264 = vunpack.c.h.b16 %v43
    %v265 = vunpack.c.l.b16 %v44
    %v266 = vunpack.c.h.b16 %v44
    %v267 = vunpack.c.l.b16 %v45
    %v268 = vunpack.c.h.b16 %v45
    %v269 = vunpack.c.l.b16 %v46
    %v270 = vunpack.c.h.b16 %v46
    %v271 = vunpack.c.l.b16 %v47
    %v272 = vunpack.c.h.b16 %v47
    %v273 = vunpack.c.l.b16 %v48
    %v274 = vunpack.c.h.b16 %v48
    %v275 = vunpack.c.l.b16 %v49
    %v276 = vunpack.c.h.b16 %v49
    %v277 = vunpack.c.l.b16 %v50
    %v278 = vunpack.c.h.b16 %v50
    %v279 = vunpack.c.l.b16 %v51
    %v280 = vunpack.c.h.b16 %v51
    %v281 = vunpack.c.l.b16 %v52
    %v282 = vunpack.c.h.b16 %v52
    %v283 = vunpack.c.l.b16 %v53
    %v284 = vunpack.c.h.b16 %v53
    %v285 = vunpack.c.l.b16 %v54
    %v286 = vunpack.c.h.b16 %v54
    %v287 = vunpack.c.l.b16 %v55
    %v288 = vunpack.c.h.b16 %v55
    %v289 = vunpack.c.l.b16 %v56
    %v290 = vunpack.c.h.b16 %v56
    %v291 = vunpack.c.l.b16 %v57
    %v292 = vunpack.c.h.b16 %v57
    %v293 = vunpack.c.l.b16 %v58
    %v294 = vunpack.c.h.b16 %v58
    %v295 = vunpack.c.l.b16 %v59
    %v296 = vunpack.c.h.b16 %v59
    %v297 = vpack.c.b16 %v237, %v233
    %v298 = vpack.c.b16 %v238, %v234
    %v299 = vpack.c.b16 %v239, %v235
    %v300 = vpack.c.b16 %v240, %v236
    %v301 = vpack.c.b16 %v245, %v241
    %v302 = vpack.c.b16 %v246, %v242
    %v303 = vpack.c.b16 %v247, %v243
    %v304 = vpack.c.b16 %v248, %v244
    %v305 = vpack.c.b16 %v253, %v249
    %v306 = vpack.c.b16 %v254, %v250
    %v307 = vpack.c.b16 %v255, %v251
    %v308 = vpack.c.b16 %v256, %v252
    %v309 = vpack.c.b16 %v261, %v257
    %v310 = vpack.c.b16 %v262, %v258
    %v311 = vpack.c.b16 %v263, %v259
    %v312 = vpack.c.b16 %v264, %v260
    %v313 = vpack.c.b16 %v269, %v265
    %v314 = vpack.c.b16 %v270, %v266
    %v315 = vpack.c.b16 %v271, %v267
    %v316 = vpack.c.b16 %v272, %v268
    %v317 = vpack.c.b16 %v277, %v273
    %v318 = vpack.c.b16 %v278, %v274
    %v319 = vpack.c.b16 %v279, %v275
    %v320 = vpack.c.b16 %v280, %v276
    %v321 = vpack.c.b16 %v285, %v281
    %v322 = vpack.c.b16 %v286, %v282
    %v323 = vpack.c.b16 %v287, %v283
    %v324 = vpack.c.b16 %v288, %v284
    %v325 = vpack.c.b16 %v293, %v289
    %v326 = vpack.c.b16 %v294, %v290
    %v327 = vpack.c.b16 %v295, %v291
    %v328 = vpack.c.b16 %v296, %v292
    %361 = vmatprep.subr.bf16.mxu0 %v298
    %362 = vmatpush1.bf16.msra.mxu0 %v297
    %363 = vmatprep.subr.bf16.mxu0 %v302
    %364 = vmatpush1.bf16.msra.mxu0 %v301
    %365 = vmatprep.subr.bf16.mxu0 %v306
    %366 = vmatpush1.bf16.msra.mxu0 %v305
    %367 = vmatprep.subr.bf16.mxu0 %v310
    %368 = vmatpush1.bf16.msra.mxu0 %v309
    %369 = vmatprep.subr.bf16.mxu0 %v314
    %370 = vmatpush1.bf16.msra.mxu0 %v313
    %371 = vmatprep.subr.bf16.mxu0 %v318
    %372 = vmatpush1.bf16.msra.mxu0 %v317
    %373 = vmatprep.subr.bf16.mxu0 %v322
    %374 = vmatpush1.bf16.msra.mxu0 %v321
    %375 = vmatprep.subr.bf16.mxu0 %v326
    %376 = vmatpush1.bf16.msra.mxu0 %v325
    %377 = vmatprep.subr.bf16.mxu0 0
    %378 = vmatpush1.bf16.msra.mxu0 0
    %379 = vmatprep.subr.bf16.mxu0 0
    %380 = vmatpush1.bf16.msra.mxu0 0
    %381 = vmatprep.subr.bf16.mxu0 0
    %382 = vmatpush1.bf16.msra.mxu0 0
    %383 = vmatprep.subr.bf16.mxu0 0
    %384 = vmatpush1.bf16.msra.mxu0 0
    %385 = vmatprep.subr.bf16.mxu0 0
    %386 = vmatpush1.bf16.msra.mxu0 0
    %387 = vmatprep.subr.bf16.mxu0 0
    %388 = vmatpush1.bf16.msra.mxu0 0
    %389 = vmatprep.subr.bf16.mxu0 0
    %390 = vmatpush1.bf16.msra.mxu0 0
    %391 = vmatprep.subr.bf16.mxu0 0
    %392 = vmatpush1.bf16.msra.mxu0 0
    %393 = vmatprep.mubr.bf16.mxu0 0
    %394 = vmatmul.mubr.bf16.gmra.mrb[0].mxu0 %v174
    %v395 = vpop.f32.mrb[0].mxu0
    %v396 = vadd.f32 %v184, %v395
    %v397 = vpop.f32.mrb[0].mxu0
    %v398 = vadd.f32 %v188, %v397
    %v399 = vpop.f32.mrb[0].mxu0
    %v400 = vadd.f32 %v184, %v399
    %v401 = vpop.f32.mrb[0].mxu0
    %v402 = vadd.f32 %v188, %v401
    %403 = vmatprep.mubr.bf16.mxu0 0
    %404 = vmatmul.mubr.bf16.gmra.mrb[0].mxu0 %v178
    %v405 = vpop.f32.mrb[0].mxu0
    %v406 = vadd.f32 %v184, %v405
    %v407 = vpop.f32.mrb[0].mxu0
    %v408 = vadd.f32 %v188, %v407
    %v409 = vpop.f32.mrb[0].mxu0
    %v410 = vadd.f32 %v184, %v409
    %v411 = vpop.f32.mrb[0].mxu0
    %v412 = vadd.f32 %v188, %v411
    %413 = vdwg.mxu0
    %414 = vmatprep.subr.bf16.mxu0 %v300
    %415 = vmatpush1.bf16.msra.mxu0 %v299
    %416 = vmatprep.subr.bf16.mxu0 %v304
    %417 = vmatpush1.bf16.msra.mxu0 %v303
    %418 = vmatprep.subr.bf16.mxu0 %v308
    %419 = vmatpush1.bf16.msra.mxu0 %v307
    %420 = vmatprep.subr.bf16.mxu0 %v312
    %421 = vmatpush1.bf16.msra.mxu0 %v311
    %422 = vmatprep.subr.bf16.mxu0 %v316
    %423 = vmatpush1.bf16.msra.mxu0 %v315
    %424 = vmatprep.subr.bf16.mxu0 %v320
    %425 = vmatpush1.bf16.msra.mxu0 %v319
    %426 = vmatprep.subr.bf16.mxu0 %v324
    %427 = vmatpush1.bf16.msra.mxu0 %v323
    %428 = vmatprep.subr.bf16.mxu0 %v328
    %429 = vmatpush1.bf16.msra.mxu0 %v327
    %430 = vmatprep.subr.bf16.mxu0 0
    %431 = vmatpush1.bf16.msra.mxu0 0
    %432 = vmatprep.subr.bf16.mxu0 0
    %433 = vmatpush1.bf16.msra.mxu0 0
    %434 = vmatprep.subr.bf16.mxu0 0
    %435 = vmatpush1.bf16.msra.mxu0 0
    %436 = vmatprep.subr.bf16.mxu0 0
    %437 = vmatpush1.bf16.msra.mxu0 0
    %438 = vmatprep.subr.bf16.mxu0 0
    %439 = vmatpush1.bf16.msra.mxu0 0
    %440 = vmatprep.subr.bf16.mxu0 0
    %441 = vmatpush1.bf16.msra.mxu0 0
    %442 = vmatprep.subr.bf16.mxu0 0
    %443 = vmatpush1.bf16.msra.mxu0 0
    %444 = vmatprep.subr.bf16.mxu0 0
    %445 = vmatpush1.bf16.msra.mxu0 0
    %446 = vmatprep.mubr.bf16.mxu0 0
    %447 = vmatmul.mubr.bf16.gmra.mrb[0].mxu0 %v174
    %v448 = vpop.f32.mrb[0].mxu0
    %v449 = vadd.f32 %v192, %v448
    %v450 = vpop.f32.mrb[0].mxu0
    %v451 = vadd.f32 %v196, %v450
    %v452 = vpop.f32.mrb[0].mxu0
    %v453 = vadd.f32 %v192, %v452
    %v454 = vpop.f32.mrb[0].mxu0
    %v455 = vadd.f32 %v196, %v454
    %456 = vmatprep.mubr.bf16.mxu0 0
    %457 = vmatmul.mubr.bf16.gmra.mrb[0].mxu0 %v178
    %v458 = vpop.f32.mrb[0].mxu0
    %v459 = vadd.f32 %v192, %v458
    %v460 = vpop.f32.mrb[0].mxu0
    %v461 = vadd.f32 %v196, %v460
    %v462 = vpop.f32.mrb[0].mxu0
    %v463 = vadd.f32 %v192, %v462
    %v464 = vpop.f32.mrb[0].mxu0
    %v465 = vadd.f32 %v196, %v464
    %466 = vdwg.mxu0
    %v499 = vunpack.c.l.b16 %v60
    %v500 = vunpack.c.h.b16 %v60
    %v501 = vunpack.c.l.b16 %v61
    %v502 = vunpack.c.h.b16 %v61
    %v503 = vunpack.c.l.b16 %v62
    %v504 = vunpack.c.h.b16 %v62
    %v505 = vunpack.c.l.b16 %v63
    %v506 = vunpack.c.h.b16 %v63
    %v507 = vunpack.c.l.b16 %v64
    %v508 = vunpack.c.h.b16 %v64
    %v509 = vunpack.c.l.b16 %v65
    %v510 = vunpack.c.h.b16 %v65
    %v511 = vunpack.c.l.b16 %v66
    %v512 = vunpack.c.h.b16 %v66
    %v513 = vunpack.c.l.b16 %v67
    %v514 = vunpack.c.h.b16 %v67
    %v515 = vunpack.c.l.b16 %v68
    %v516 = vunpack.c.h.b16 %v68
    %v517 = vunpack.c.l.b16 %v69
    %v518 = vunpack.c.h.b16 %v69
    %v519 = vunpack.c.l.b16 %v70
    %v520 = vunpack.c.h.b16 %v70
    %v521 = vunpack.c.l.b16 %v71
    %v522 = vunpack.c.h.b16 %v71
    %v523 = vunpack.c.l.b16 %v72
    %v524 = vunpack.c.h.b16 %v72
    %v525 = vunpack.c.l.b16 %v73
    %v526 = vunpack.c.h.b16 %v73
    %v527 = vunpack.c.l.b16 %v74
    %v528 = vunpack.c.h.b16 %v74
    %v529 = vunpack.c.l.b16 %v75
    %v530 = vunpack.c.h.b16 %v75
    %v531 = vunpack.c.l.b16 %v76
    %v532 = vunpack.c.h.b16 %v76
    %v533 = vunpack.c.l.b16 %v77
    %v534 = vunpack.c.h.b16 %v77
    %v535 = vunpack.c.l.b16 %v78
    %v536 = vunpack.c.h.b16 %v78
    %v537 = vunpack.c.l.b16 %v79
    %v538 = vunpack.c.h.b16 %v79
    %v539 = vunpack.c.l.b16 %v80
    %v540 = vunpack.c.h.b16 %v80
    %v541 = vunpack.c.l.b16 %v81
    %v542 = vunpack.c.h.b16 %v81
    %v543 = vunpack.c.l.b16 %v82
    %v544 = vunpack.c.h.b16 %v82
    %v545 = vunpack.c.l.b16 %v83
    %v546 = vunpack.c.h.b16 %v83
    %v547 = vunpack.c.l.b16 %v84
    %v548 = vunpack.c.h.b16 %v84
    %v549 = vunpack.c.l.b16 %v85
    %v550 = vunpack.c.h.b16 %v85
    %v551 = vunpack.c.l.b16 %v86
    %v552 = vunpack.c.h.b16 %v86
    %v553 = vunpack.c.l.b16 %v87
    %v554 = vunpack.c.h.b16 %v87
    %v555 = vunpack.c.l.b16 %v88
    %v556 = vunpack.c.h.b16 %v88
    %v557 = vunpack.c.l.b16 %v89
    %v558 = vunpack.c.h.b16 %v89
    %v559 = vunpack.c.l.b16 %v90
    %v560 = vunpack.c.h.b16 %v90
    %v561 = vunpack.c.l.b16 %v91
    %v562 = vunpack.c.h.b16 %v91
    %v563 = vpack.c.b16 %v503, %v499
    %v564 = vpack.c.b16 %v504, %v500
    %v565 = vpack.c.b16 %v505, %v501
    %v566 = vpack.c.b16 %v506, %v502
    %v567 = vpack.c.b16 %v511, %v507
    %v568 = vpack.c.b16 %v512, %v508
    %v569 = vpack.c.b16 %v513, %v509
    %v570 = vpack.c.b16 %v514, %v510
    %v571 = vpack.c.b16 %v519, %v515
    %v572 = vpack.c.b16 %v520, %v516
    %v573 = vpack.c.b16 %v521, %v517
    %v574 = vpack.c.b16 %v522, %v518
    %v575 = vpack.c.b16 %v527, %v523
    %v576 = vpack.c.b16 %v528, %v524
    %v577 = vpack.c.b16 %v529, %v525
    %v578 = vpack.c.b16 %v530, %v526
    %v579 = vpack.c.b16 %v535, %v531
    %v580 = vpack.c.b16 %v536, %v532
    %v581 = vpack.c.b16 %v537, %v533
    %v582 = vpack.c.b16 %v538, %v534
    %v583 = vpack.c.b16 %v543, %v539
    %v584 = vpack.c.b16 %v544, %v540
    %v585 = vpack.c.b16 %v545, %v541
    %v586 = vpack.c.b16 %v546, %v542
    %v587 = vpack.c.b16 %v551, %v547
    %v588 = vpack.c.b16 %v552, %v548
    %v589 = vpack.c.b16 %v553, %v549
    %v590 = vpack.c.b16 %v554, %v550
    %v591 = vpack.c.b16 %v559, %v555
    %v592 = vpack.c.b16 %v560, %v556
    %v593 = vpack.c.b16 %v561, %v557
    %v594 = vpack.c.b16 %v562, %v558
    %627 = vmatprep.subr.bf16.mxu0 %v564
    %628 = vmatpush1.bf16.msra.mxu0 %v563
    %629 = vmatprep.subr.bf16.mxu0 %v568
    %630 = vmatpush1.bf16.msra.mxu0 %v567
    %631 = vmatprep.subr.bf16.mxu0 %v572
    %632 = vmatpush1.bf16.msra.mxu0 %v571
    %633 = vmatprep.subr.bf16.mxu0 %v576
    %634 = vmatpush1.bf16.msra.mxu0 %v575
    %635 = vmatprep.subr.bf16.mxu0 %v580
    %636 = vmatpush1.bf16.msra.mxu0 %v579
    %637 = vmatprep.subr.bf16.mxu0 %v584
    %638 = vmatpush1.bf16.msra.mxu0 %v583
    %639 = vmatprep.subr.bf16.mxu0 %v588
    %640 = vmatpush1.bf16.msra.mxu0 %v587
    %641 = vmatprep.subr.bf16.mxu0 %v592
    %642 = vmatpush1.bf16.msra.mxu0 %v591
    %643 = vmatprep.subr.bf16.mxu0 0
    %644 = vmatpush1.bf16.msra.mxu0 0
    %645 = vmatprep.subr.bf16.mxu0 0
    %646 = vmatpush1.bf16.msra.mxu0 0
    %647 = vmatprep.subr.bf16.mxu0 0
    %648 = vmatpush1.bf16.msra.mxu0 0
    %649 = vmatprep.subr.bf16.mxu0 0
    %650 = vmatpush1.bf16.msra.mxu0 0
    %651 = vmatprep.subr.bf16.mxu0 0
    %652 = vmatpush1.bf16.msra.mxu0 0
    %653 = vmatprep.subr.bf16.mxu0 0
    %654 = vmatpush1.bf16.msra.mxu0 0
    %655 = vmatprep.subr.bf16.mxu0 0
    %656 = vmatpush1.bf16.msra.mxu0 0
    %657 = vmatprep.subr.bf16.mxu0 0
    %658 = vmatpush1.bf16.msra.mxu0 0
    %659 = vmatprep.mubr.bf16.mxu0 0
    %660 = vmatmul.mubr.bf16.gmra.mrb[0].mxu0 0
    %v661 = vpop.f32.mrb[0].mxu0
    %v662 = vadd.f32 0.0, %v661
    %v663 = vpop.f32.mrb[0].mxu0
    %v664 = vadd.f32 0.0, %v663
    %v665 = vpop.f32.mrb[0].mxu0
    %v666 = vpop.f32.mrb[0].mxu0
    %667 = vdwg.mxu0
    %668 = vmatprep.subr.bf16.mxu0 %v566
    %669 = vmatpush1.bf16.msra.mxu0 %v565
    %670 = vmatprep.subr.bf16.mxu0 %v570
    %671 = vmatpush1.bf16.msra.mxu0 %v569
    %672 = vmatprep.subr.bf16.mxu0 %v574
    %673 = vmatpush1.bf16.msra.mxu0 %v573
    %674 = vmatprep.subr.bf16.mxu0 %v578
    %675 = vmatpush1.bf16.msra.mxu0 %v577
    %676 = vmatprep.subr.bf16.mxu0 %v582
    %677 = vmatpush1.bf16.msra.mxu0 %v581
    %678 = vmatprep.subr.bf16.mxu0 %v586
    %679 = vmatpush1.bf16.msra.mxu0 %v585
    %680 = vmatprep.subr.bf16.mxu0 %v590
    %681 = vmatpush1.bf16.msra.mxu0 %v589
    %682 = vmatprep.subr.bf16.mxu0 %v594
    %683 = vmatpush1.bf16.msra.mxu0 %v593
    %684 = vmatprep.subr.bf16.mxu0 0
    %685 = vmatpush1.bf16.msra.mxu0 0
    %686 = vmatprep.subr.bf16.mxu0 0
    %687 = vmatpush1.bf16.msra.mxu0 0
    %688 = vmatprep.subr.bf16.mxu0 0
    %689 = vmatpush1.bf16.msra.mxu0 0
    %690 = vmatprep.subr.bf16.mxu0 0
    %691 = vmatpush1.bf16.msra.mxu0 0
    %692 = vmatprep.subr.bf16.mxu0 0
    %693 = vmatpush1.bf16.msra.mxu0 0
    %694 = vmatprep.subr.bf16.mxu0 0
    %695 = vmatpush1.bf16.msra.mxu0 0
    %696 = vmatprep.subr.bf16.mxu0 0
    %697 = vmatpush1.bf16.msra.mxu0 0
    %698 = vmatprep.subr.bf16.mxu0 0
    %699 = vmatpush1.bf16.msra.mxu0 0
    %700 = vmatprep.mubr.bf16.mxu0 0
    %701 = vmatmul.mubr.bf16.gmra.mrb[0].mxu0 0
    %v702 = vpop.f32.mrb[0].mxu0
    %v703 = vadd.f32 0.0, %v702
    %v704 = vpop.f32.mrb[0].mxu0
    %v705 = vadd.f32 0.0, %v704
    %v706 = vpop.f32.mrb[0].mxu0
    %v707 = vpop.f32.mrb[0].mxu0
    %708 = vdwg.mxu0
    %v709 = vadd.f32 %v396, %v662
    %v710 = vadd.f32 %v398, %v664
    %v711 = vadd.f32 %v449, %v703
    %v712 = vadd.f32 %v451, %v705
    %v713 = vxor.u32 %v709, 2147483648
    %v714 = vmul.f32 %v713, 1.442695
    %v715 = vpow.pop %v714
    %v716 = vadd.f32 %v715, 1.0
    %v717 = vrcp.pop %v716
    %v718 = vmul.f32 1.0, %v717
    %v719 = vxor.u32 %v710, 2147483648
    %v720 = vmul.f32 %v719, 1.442695
    %v721 = vpow.pop %v720
    %v722 = vadd.f32 %v721, 1.0
    %v723 = vrcp.pop %v722
    %v724 = vmul.f32 1.0, %v723
    %v725 = vtanh.pop %v711
    %v726 = vxor.u32 %v712, 2147483648
    %v727 = vmul.f32 %v726, 1.442695
    %v728 = vpow.pop %v727
    %v729 = vadd.f32 %v728, 1.0
    %v730 = vrcp.pop %v729
    %v731 = vmul.f32 1.0, %v730
    %v732 = vmul.f32 %v724, 0.0
    %v733 = vmul.f32 %v718, %v725
    %v734 = vadd.f32 %v732, %v733
    %v735 = vtanh.pop %v734
    %v736 = vmul.f32 %v731, %v735
    %v737 = vpack.c.bf16 %v736, %v736
    %738 = vmatprep.subr.bf16.mxu0 %v564
    %739 = vmatpush1.bf16.msra.mxu0 %v563
    %740 = vmatprep.subr.bf16.mxu0 %v568
    %741 = vmatpush1.bf16.msra.mxu0 %v567
    %742 = vmatprep.subr.bf16.mxu0 %v572
    %743 = vmatpush1.bf16.msra.mxu0 %v571
    %744 = vmatprep.subr.bf16.mxu0 %v576
    %745 = vmatpush1.bf16.msra.mxu0 %v575
    %746 = vmatprep.subr.bf16.mxu0 %v580
    %747 = vmatpush1.bf16.msra.mxu0 %v579
    %748 = vmatprep.subr.bf16.mxu0 %v584
    %749 = vmatpush1.bf16.msra.mxu0 %v583
    %750 = vmatprep.subr.bf16.mxu0 %v588
    %751 = vmatpush1.bf16.msra.mxu0 %v587
    %752 = vmatprep.subr.bf16.mxu0 %v592
    %753 = vmatpush1.bf16.msra.mxu0 %v591
    %754 = vmatprep.subr.bf16.mxu0 0
    %755 = vmatpush1.bf16.msra.mxu0 0
    %756 = vmatprep.subr.bf16.mxu0 0
    %757 = vmatpush1.bf16.msra.mxu0 0
    %758 = vmatprep.subr.bf16.mxu0 0
    %759 = vmatpush1.bf16.msra.mxu0 0
    %760 = vmatprep.subr.bf16.mxu0 0
    %761 = vmatpush1.bf16.msra.mxu0 0
    %762 = vmatprep.subr.bf16.mxu0 0
    %763 = vmatpush1.bf16.msra.mxu0 0
    %764 = vmatprep.subr.bf16.mxu0 0
    %765 = vmatpush1.bf16.msra.mxu0 0
    %766 = vmatprep.subr.bf16.mxu0 0
    %767 = vmatpush1.bf16.msra.mxu0 0
    %768 = vmatprep.subr.bf16.mxu0 0
    %769 = vmatpush1.bf16.msra.mxu0 0
    %770 = vmatprep.mubr.bf16.mxu0 0
    %771 = vmatmul.mubr.bf16.gmra.mrb[0].mxu0 %v737
    %v772 = vpop.f32.mrb[0].mxu0
    %v773 = vadd.f32 0.0, %v772
    %v774 = vpop.f32.mrb[0].mxu0
    %v775 = vadd.f32 0.0, %v774
    %v776 = vpop.f32.mrb[0].mxu0
    %v777 = vpop.f32.mrb[0].mxu0
    %778 = vdwg.mxu0
    %779 = vmatprep.subr.bf16.mxu0 %v566
    %780 = vmatpush1.bf16.msra.mxu0 %v565
    %781 = vmatprep.subr.bf16.mxu0 %v570
    %782 = vmatpush1.bf16.msra.mxu0 %v569
    %783 = vmatprep.subr.bf16.mxu0 %v574
    %784 = vmatpush1.bf16.msra.mxu0 %v573
    %785 = vmatprep.subr.bf16.mxu0 %v578
    %786 = vmatpush1.bf16.msra.mxu0 %v577
    %787 = vmatprep.subr.bf16.mxu0 %v582
    %788 = vmatpush1.bf16.msra.mxu0 %v581
    %789 = vmatprep.subr.bf16.mxu0 %v586
    %790 = vmatpush1.bf16.msra.mxu0 %v585
    %791 = vmatprep.subr.bf16.mxu0 %v590
    %792 = vmatpush1.bf16.msra.mxu0 %v589
    %793 = vmatprep.subr.bf16.mxu0 %v594
    %794 = vmatpush1.bf16.msra.mxu0 %v593
    %795 = vmatprep.subr.bf16.mxu0 0
    %796 = vmatpush1.bf16.msra.mxu0 0
    %797 = vmatprep.subr.bf16.mxu0 0
    %798 = vmatpush1.bf16.msra.mxu0 0
    %799 = vmatprep.subr.bf16.mxu0 0
    %800 = vmatpush1.bf16.msra.mxu0 0
    %801 = vmatprep.subr.bf16.mxu0 0
    %802 = vmatpush1.bf16.msra.mxu0 0
    %803 = vmatprep.subr.bf16.mxu0 0
    %804 = vmatpush1.bf16.msra.mxu0 0
    %805 = vmatprep.subr.bf16.mxu0 0
    %806 = vmatpush1.bf16.msra.mxu0 0
    %807 = vmatprep.subr.bf16.mxu0 0
    %808 = vmatpush1.bf16.msra.mxu0 0
    %809 = vmatprep.subr.bf16.mxu0 0
    %810 = vmatpush1.bf16.msra.mxu0 0
    %811 = vmatprep.mubr.bf16.mxu0 0
    %812 = vmatmul.mubr.bf16.gmra.mrb[0].mxu0 %v737
    %v813 = vpop.f32.mrb[0].mxu0
    %v814 = vadd.f32 0.0, %v813
    %v815 = vpop.f32.mrb[0].mxu0
    %v816 = vadd.f32 0.0, %v815
    %v817 = vpop.f32.mrb[0].mxu0
    %v818 = vpop.f32.mrb[0].mxu0
    %819 = vdwg.mxu0
    %v820 = vadd.f32 %v400, %v773
    %v821 = vadd.f32 %v402, %v775
    %v822 = vadd.f32 %v453, %v814
    %v823 = vadd.f32 %v455, %v816
    %v824 = vxor.u32 %v820, 2147483648
    %v825 = vmul.f32 %v824, 1.442695
    %v826 = vpow.pop %v825
    %v827 = vadd.f32 %v826, 1.0
    %v828 = vrcp.pop %v827
    %v829 = vmul.f32 1.0, %v828
    %v830 = vxor.u32 %v821, 2147483648
    %v831 = vmul.f32 %v830, 1.442695
    %v832 = vpow.pop %v831
    %v833 = vadd.f32 %v832, 1.0
    %v834 = vrcp.pop %v833
    %v835 = vmul.f32 1.0, %v834
    %v836 = vtanh.pop %v822
    %v837 = vxor.u32 %v823, 2147483648
    %v838 = vmul.f32 %v837, 1.442695
    %v839 = vpow.pop %v838
    %v840 = vadd.f32 %v839, 1.0
    %v841 = vrcp.pop %v840
    %v842 = vmul.f32 1.0, %v841
    %v843 = vmul.f32 %v835, %v734
    %v844 = vmul.f32 %v829, %v836
    %v845 = vadd.f32 %v843, %v844
    %v846 = vtanh.pop %v845
    %v847 = vmul.f32 %v842, %v846
    %v848 = vpack.c.bf16 %v847, %v847
    %849 = vmatprep.subr.bf16.mxu0 %v564
    %850 = vmatpush1.bf16.msra.mxu0 %v563
    %851 = vmatprep.subr.bf16.mxu0 %v568
    %852 = vmatpush1.bf16.msra.mxu0 %v567
    %853 = vmatprep.subr.bf16.mxu0 %v572
    %854 = vmatpush1.bf16.msra.mxu0 %v571
    %855 = vmatprep.subr.bf16.mxu0 %v576
    %856 = vmatpush1.bf16.msra.mxu0 %v575
    %857 = vmatprep.subr.bf16.mxu0 %v580
    %858 = vmatpush1.bf16.msra.mxu0 %v579
    %859 = vmatprep.subr.bf16.mxu0 %v584
    %860 = vmatpush1.bf16.msra.mxu0 %v583
    %861 = vmatprep.subr.bf16.mxu0 %v588
    %862 = vmatpush1.bf16.msra.mxu0 %v587
    %863 = vmatprep.subr.bf16.mxu0 %v592
    %864 = vmatpush1.bf16.msra.mxu0 %v591
    %865 = vmatprep.subr.bf16.mxu0 0
    %866 = vmatpush1.bf16.msra.mxu0 0
    %867 = vmatprep.subr.bf16.mxu0 0
    %868 = vmatpush1.bf16.msra.mxu0 0
    %869 = vmatprep.subr.bf16.mxu0 0
    %870 = vmatpush1.bf16.msra.mxu0 0
    %871 = vmatprep.subr.bf16.mxu0 0
    %872 = vmatpush1.bf16.msra.mxu0 0
    %873 = vmatprep.subr.bf16.mxu0 0
    %874 = vmatpush1.bf16.msra.mxu0 0
    %875 = vmatprep.subr.bf16.mxu0 0
    %876 = vmatpush1.bf16.msra.mxu0 0
    %877 = vmatprep.subr.bf16.mxu0 0
    %878 = vmatpush1.bf16.msra.mxu0 0
    %879 = vmatprep.subr.bf16.mxu0 0
    %880 = vmatpush1.bf16.msra.mxu0 0
    %881 = vmatprep.mubr.bf16.mxu0 0
    %882 = vmatmul.mubr.bf16.gmra.mrb[0].mxu0 %v848
    %v883 = vpop.f32.mrb[0].mxu0
    %v884 = vadd.f32 0.0, %v883
    %v885 = vpop.f32.mrb[0].mxu0
    %v886 = vadd.f32 0.0, %v885
    %v887 = vpop.f32.mrb[0].mxu0
    %v888 = vpop.f32.mrb[0].mxu0
    %889 = vdwg.mxu0
    %890 = vmatprep.subr.bf16.mxu0 %v566
    %891 = vmatpush1.bf16.msra.mxu0 %v565
    %892 = vmatprep.subr.bf16.mxu0 %v570
    %893 = vmatpush1.bf16.msra.mxu0 %v569
    %894 = vmatprep.subr.bf16.mxu0 %v574
    %895 = vmatpush1.bf16.msra.mxu0 %v573
    %896 = vmatprep.subr.bf16.mxu0 %v578
    %897 = vmatpush1.bf16.msra.mxu0 %v577
    %898 = vmatprep.subr.bf16.mxu0 %v582
    %899 = vmatpush1.bf16.msra.mxu0 %v581
    %900 = vmatprep.subr.bf16.mxu0 %v586
    %901 = vmatpush1.bf16.msra.mxu0 %v585
    %902 = vmatprep.subr.bf16.mxu0 %v590
    %903 = vmatpush1.bf16.msra.mxu0 %v589
    %904 = vmatprep.subr.bf16.mxu0 %v594
    %905 = vmatpush1.bf16.msra.mxu0 %v593
    %906 = vmatprep.subr.bf16.mxu0 0
    %907 = vmatpush1.bf16.msra.mxu0 0
    %908 = vmatprep.subr.bf16.mxu0 0
    %909 = vmatpush1.bf16.msra.mxu0 0
    %910 = vmatprep.subr.bf16.mxu0 0
    %911 = vmatpush1.bf16.msra.mxu0 0
    %912 = vmatprep.subr.bf16.mxu0 0
    %913 = vmatpush1.bf16.msra.mxu0 0
    %914 = vmatprep.subr.bf16.mxu0 0
    %915 = vmatpush1.bf16.msra.mxu0 0
    %916 = vmatprep.subr.bf16.mxu0 0
    %917 = vmatpush1.bf16.msra.mxu0 0
    %918 = vmatprep.subr.bf16.mxu0 0
    %919 = vmatpush1.bf16.msra.mxu0 0
    %920 = vmatprep.subr.bf16.mxu0 0
    %921 = vmatpush1.bf16.msra.mxu0 0
    %922 = vmatprep.mubr.bf16.mxu0 0
    %923 = vmatmul.mubr.bf16.gmra.mrb[0].mxu0 %v848
    %v924 = vpop.f32.mrb[0].mxu0
    %v925 = vadd.f32 0.0, %v924
    %v926 = vpop.f32.mrb[0].mxu0
    %v927 = vadd.f32 0.0, %v926
    %v928 = vpop.f32.mrb[0].mxu0
    %v929 = vpop.f32.mrb[0].mxu0
    %930 = vdwg.mxu0
    %v931 = vadd.f32 %v406, %v884
    %v932 = vadd.f32 %v408, %v886
    %v933 = vadd.f32 %v459, %v925
    %v934 = vadd.f32 %v461, %v927
    %v935 = vxor.u32 %v931, 2147483648
    %v936 = vmul.f32 %v935, 1.442695
    %v937 = vpow.pop %v936
    %v938 = vadd.f32 %v937, 1.0
    %v939 = vrcp.pop %v938
    %v940 = vmul.f32 1.0, %v939
    %v941 = vxor.u32 %v932, 2147483648
    %v942 = vmul.f32 %v941, 1.442695
    %v943 = vpow.pop %v942
    %v944 = vadd.f32 %v943, 1.0
    %v945 = vrcp.pop %v944
    %v946 = vmul.f32 1.0, %v945
    %v947 = vtanh.pop %v933
    %v948 = vxor.u32 %v934, 2147483648
    %v949 = vmul.f32 %v948, 1.442695
    %v950 = vpow.pop %v949
    %v951 = vadd.f32 %v950, 1.0
    %v952 = vrcp.pop %v951
    %v953 = vmul.f32 1.0, %v952
    %v954 = vmul.f32 %v946, %v845
    %v955 = vmul.f32 %v940, %v947
    %v956 = vadd.f32 %v954, %v955
    %v957 = vtanh.pop %v956
    %v958 = vmul.f32 %v953, %v957
    %v959 = vpack.c.bf16 %v958, %v958
    %960 = vmatprep.subr.bf16.mxu0 %v564
    %961 = vmatpush1.bf16.msra.mxu0 %v563
    %962 = vmatprep.subr.bf16.mxu0 %v568
    %963 = vmatpush1.bf16.msra.mxu0 %v567
    %964 = vmatprep.subr.bf16.mxu0 %v572
    %965 = vmatpush1.bf16.msra.mxu0 %v571
    %966 = vmatprep.subr.bf16.mxu0 %v576
    %967 = vmatpush1.bf16.msra.mxu0 %v575
    %968 = vmatprep.subr.bf16.mxu0 %v580
    %969 = vmatpush1.bf16.msra.mxu0 %v579
    %970 = vmatprep.subr.bf16.mxu0 %v584
    %971 = vmatpush1.bf16.msra.mxu0 %v583
    %972 = vmatprep.subr.bf16.mxu0 %v588
    %973 = vmatpush1.bf16.msra.mxu0 %v587
    %974 = vmatprep.subr.bf16.mxu0 %v592
    %975 = vmatpush1.bf16.msra.mxu0 %v591
    %976 = vmatprep.subr.bf16.mxu0 0
    %977 = vmatpush1.bf16.msra.mxu0 0
    %978 = vmatprep.subr.bf16.mxu0 0
    %979 = vmatpush1.bf16.msra.mxu0 0
    %980 = vmatprep.subr.bf16.mxu0 0
    %981 = vmatpush1.bf16.msra.mxu0 0
    %982 = vmatprep.subr.bf16.mxu0 0
    %983 = vmatpush1.bf16.msra.mxu0 0
    %984 = vmatprep.subr.bf16.mxu0 0
    %985 = vmatpush1.bf16.msra.mxu0 0
    %986 = vmatprep.subr.bf16.mxu0 0
    %987 = vmatpush1.bf16.msra.mxu0 0
    %988 = vmatprep.subr.bf16.mxu0 0
    %989 = vmatpush1.bf16.msra.mxu0 0
    %990 = vmatprep.subr.bf16.mxu0 0
    %991 = vmatpush1.bf16.msra.mxu0 0
    %992 = vmatprep.mubr.bf16.mxu0 0
    %993 = vmatmul.mubr.bf16.gmra.mrb[0].mxu0 %v959
    %v994 = vpop.f32.mrb[0].mxu0
    %v995 = vadd.f32 0.0, %v994
    %v996 = vpop.f32.mrb[0].mxu0
    %v997 = vadd.f32 0.0, %v996
    %v998 = vpop.f32.mrb[0].mxu0
    %v999 = vpop.f32.mrb[0].mxu0
    %1000 = vdwg.mxu0
    %1001 = vmatprep.subr.bf16.mxu0 %v566
    %1002 = vmatpush1.bf16.msra.mxu0 %v565
    %1003 = vmatprep.subr.bf16.mxu0 %v570
    %1004 = vmatpush1.bf16.msra.mxu0 %v569
    %1005 = vmatprep.subr.bf16.mxu0 %v574
    %1006 = vmatpush1.bf16.msra.mxu0 %v573
    %1007 = vmatprep.subr.bf16.mxu0 %v578
    %1008 = vmatpush1.bf16.msra.mxu0 %v577
    %1009 = vmatprep.subr.bf16.mxu0 %v582
    %1010 = vmatpush1.bf16.msra.mxu0 %v581
    %1011 = vmatprep.subr.bf16.mxu0 %v586
    %1012 = vmatpush1.bf16.msra.mxu0 %v585
    %1013 = vmatprep.subr.bf16.mxu0 %v590
    %1014 = vmatpush1.bf16.msra.mxu0 %v589
    %1015 = vmatprep.subr.bf16.mxu0 %v594
    %1016 = vmatpush1.bf16.msra.mxu0 %v593
    %1017 = vmatprep.subr.bf16.mxu0 0
    %1018 = vmatpush1.bf16.msra.mxu0 0
    %1019 = vmatprep.subr.bf16.mxu0 0
    %1020 = vmatpush1.bf16.msra.mxu0 0
    %1021 = vmatprep.subr.bf16.mxu0 0
    %1022 = vmatpush1.bf16.msra.mxu0 0
    %1023 = vmatprep.subr.bf16.mxu0 0
    %1024 = vmatpush1.bf16.msra.mxu0 0
    %1025 = vmatprep.subr.bf16.mxu0 0
    %1026 = vmatpush1.bf16.msra.mxu0 0
    %1027 = vmatprep.subr.bf16.mxu0 0
    %1028 = vmatpush1.bf16.msra.mxu0 0
    %1029 = vmatprep.subr.bf16.mxu0 0
    %1030 = vmatpush1.bf16.msra.mxu0 0
    %1031 = vmatprep.subr.bf16.mxu0 0
    %1032 = vmatpush1.bf16.msra.mxu0 0
    %1033 = vmatprep.mubr.bf16.mxu0 0
    %1034 = vmatmul.mubr.bf16.gmra.mrb[0].mxu0 %v959
    %v1035 = vpop.f32.mrb[0].mxu0
    %v1036 = vadd.f32 0.0, %v1035
    %v1037 = vpop.f32.mrb[0].mxu0
    %v1038 = vadd.f32 0.0, %v1037
    %v1039 = vpop.f32.mrb[0].mxu0
    %v1040 = vpop.f32.mrb[0].mxu0
    %1041 = vdwg.mxu0
    %v1042 = vadd.f32 %v410, %v995
    %v1043 = vadd.f32 %v412, %v997
    %v1044 = vadd.f32 %v463, %v1036
    %v1045 = vadd.f32 %v465, %v1038
    %v1046 = vxor.u32 %v1042, 2147483648
    %v1047 = vmul.f32 %v1046, 1.442695
    %v1048 = vpow.pop %v1047
    %v1049 = vadd.f32 %v1048, 1.0
    %v1050 = vrcp.pop %v1049
    %v1051 = vmul.f32 1.0, %v1050
    %v1052 = vxor.u32 %v1043, 2147483648
    %v1053 = vmul.f32 %v1052, 1.442695
    %v1054 = vpow.pop %v1053
    %v1055 = vadd.f32 %v1054, 1.0
    %v1056 = vrcp.pop %v1055
    %v1057 = vmul.f32 1.0, %v1056
    %v1058 = vtanh.pop %v1044
    %v1059 = vxor.u32 %v1045, 2147483648
    %v1060 = vmul.f32 %v1059, 1.442695
    %v1061 = vpow.pop %v1060
    %v1062 = vadd.f32 %v1061, 1.0
    %v1063 = vrcp.pop %v1062
    %v1064 = vmul.f32 1.0, %v1063
    %v1065 = vmul.f32 %v1057, %v956
    %v1066 = vmul.f32 %v1051, %v1058
    %v1067 = vadd.f32 %v1065, %v1066
    %v1068 = vtanh.pop %v1067
    %v1069 = vmul.f32 %v1064, %v1068
    %v1070 = vpack.c.bf16 %v1069, %v1069
    %v1072 = vrot.slane %v848, 4
    %v1074 = vrot.slane %v1070, 4
    %v1077 = vsel %vm171, %v737, %v1072
    %v1081 = vsel %vm171, %v959, %v1074
    %v1084 = vlaneseq
    %v1085 = vshrl.u32 %v1084, 7
    %v1086 = vsub.s32 0, %v1085
    %v1087 = vrot.slane %v157, %v1086
    %v1088 = vlaneseq
    %v1089 = vshrl.u32 %v1088, 7
    %v1090 = vsub.s32 1, %v1089
    %v1091 = vrot.slane %v157, %v1090
    %v1092 = vlaneseq
    %v1093 = vshrl.u32 %v1092, 7
    %v1094 = vsub.s32 2, %v1093
    %v1095 = vrot.slane %v157, %v1094
    %v1096 = vlaneseq
    %v1097 = vshrl.u32 %v1096, 7
    %v1098 = vsub.s32 3, %v1097
    %v1099 = vrot.slane %v157, %v1098
    %v1136 = vunpack.c.l.b16 %v92
    %v1137 = vunpack.c.h.b16 %v92
    %v1138 = vunpack.c.l.b16 %v93
    %v1139 = vunpack.c.h.b16 %v93
    %v1140 = vunpack.c.l.b16 %v94
    %v1141 = vunpack.c.h.b16 %v94
    %v1142 = vunpack.c.l.b16 %v95
    %v1143 = vunpack.c.h.b16 %v95
    %v1144 = vunpack.c.l.b16 %v96
    %v1145 = vunpack.c.h.b16 %v96
    %v1146 = vunpack.c.l.b16 %v97
    %v1147 = vunpack.c.h.b16 %v97
    %v1148 = vunpack.c.l.b16 %v98
    %v1149 = vunpack.c.h.b16 %v98
    %v1150 = vunpack.c.l.b16 %v99
    %v1151 = vunpack.c.h.b16 %v99
    %v1152 = vunpack.c.l.b16 %v100
    %v1153 = vunpack.c.h.b16 %v100
    %v1154 = vunpack.c.l.b16 %v101
    %v1155 = vunpack.c.h.b16 %v101
    %v1156 = vunpack.c.l.b16 %v102
    %v1157 = vunpack.c.h.b16 %v102
    %v1158 = vunpack.c.l.b16 %v103
    %v1159 = vunpack.c.h.b16 %v103
    %v1160 = vunpack.c.l.b16 %v104
    %v1161 = vunpack.c.h.b16 %v104
    %v1162 = vunpack.c.l.b16 %v105
    %v1163 = vunpack.c.h.b16 %v105
    %v1164 = vunpack.c.l.b16 %v106
    %v1165 = vunpack.c.h.b16 %v106
    %v1166 = vunpack.c.l.b16 %v107
    %v1167 = vunpack.c.h.b16 %v107
    %v1168 = vunpack.c.l.b16 %v108
    %v1169 = vunpack.c.h.b16 %v108
    %v1170 = vunpack.c.l.b16 %v109
    %v1171 = vunpack.c.h.b16 %v109
    %v1172 = vunpack.c.l.b16 %v110
    %v1173 = vunpack.c.h.b16 %v110
    %v1174 = vunpack.c.l.b16 %v111
    %v1175 = vunpack.c.h.b16 %v111
    %v1176 = vunpack.c.l.b16 %v112
    %v1177 = vunpack.c.h.b16 %v112
    %v1178 = vunpack.c.l.b16 %v113
    %v1179 = vunpack.c.h.b16 %v113
    %v1180 = vunpack.c.l.b16 %v114
    %v1181 = vunpack.c.h.b16 %v114
    %v1182 = vunpack.c.l.b16 %v115
    %v1183 = vunpack.c.h.b16 %v115
    %v1184 = vunpack.c.l.b16 %v116
    %v1185 = vunpack.c.h.b16 %v116
    %v1186 = vunpack.c.l.b16 %v117
    %v1187 = vunpack.c.h.b16 %v117
    %v1188 = vunpack.c.l.b16 %v118
    %v1189 = vunpack.c.h.b16 %v118
    %v1190 = vunpack.c.l.b16 %v119
    %v1191 = vunpack.c.h.b16 %v119
    %v1192 = vunpack.c.l.b16 %v120
    %v1193 = vunpack.c.h.b16 %v120
    %v1194 = vunpack.c.l.b16 %v121
    %v1195 = vunpack.c.h.b16 %v121
    %v1196 = vunpack.c.l.b16 %v122
    %v1197 = vunpack.c.h.b16 %v122
    %v1198 = vunpack.c.l.b16 %v123
    %v1199 = vunpack.c.h.b16 %v123
    %v1200 = vpack.c.b16 %v1140, %v1136
    %v1201 = vpack.c.b16 %v1141, %v1137
    %v1202 = vpack.c.b16 %v1142, %v1138
    %v1203 = vpack.c.b16 %v1143, %v1139
    %v1204 = vpack.c.b16 %v1148, %v1144
    %v1205 = vpack.c.b16 %v1149, %v1145
    %v1206 = vpack.c.b16 %v1150, %v1146
    %v1207 = vpack.c.b16 %v1151, %v1147
    %v1208 = vpack.c.b16 %v1156, %v1152
    %v1209 = vpack.c.b16 %v1157, %v1153
    %v1210 = vpack.c.b16 %v1158, %v1154
    %v1211 = vpack.c.b16 %v1159, %v1155
    %v1212 = vpack.c.b16 %v1164, %v1160
    %v1213 = vpack.c.b16 %v1165, %v1161
    %v1214 = vpack.c.b16 %v1166, %v1162
    %v1215 = vpack.c.b16 %v1167, %v1163
    %v1216 = vpack.c.b16 %v1172, %v1168
    %v1217 = vpack.c.b16 %v1173, %v1169
    %v1218 = vpack.c.b16 %v1174, %v1170
    %v1219 = vpack.c.b16 %v1175, %v1171
    %v1220 = vpack.c.b16 %v1180, %v1176
    %v1221 = vpack.c.b16 %v1181, %v1177
    %v1222 = vpack.c.b16 %v1182, %v1178
    %v1223 = vpack.c.b16 %v1183, %v1179
    %v1224 = vpack.c.b16 %v1188, %v1184
    %v1225 = vpack.c.b16 %v1189, %v1185
    %v1226 = vpack.c.b16 %v1190, %v1186
    %v1227 = vpack.c.b16 %v1191, %v1187
    %v1228 = vpack.c.b16 %v1196, %v1192
    %v1229 = vpack.c.b16 %v1197, %v1193
    %v1230 = vpack.c.b16 %v1198, %v1194
    %v1231 = vpack.c.b16 %v1199, %v1195
    %1264 = vmatprep.subr.bf16.mxu0 %v1201
    %1265 = vmatpush1.bf16.msra.mxu0 %v1200
    %1266 = vmatprep.subr.bf16.mxu0 %v1205
    %1267 = vmatpush1.bf16.msra.mxu0 %v1204
    %1268 = vmatprep.subr.bf16.mxu0 %v1209
    %1269 = vmatpush1.bf16.msra.mxu0 %v1208
    %1270 = vmatprep.subr.bf16.mxu0 %v1213
    %1271 = vmatpush1.bf16.msra.mxu0 %v1212
    %1272 = vmatprep.subr.bf16.mxu0 %v1217
    %1273 = vmatpush1.bf16.msra.mxu0 %v1216
    %1274 = vmatprep.subr.bf16.mxu0 %v1221
    %1275 = vmatpush1.bf16.msra.mxu0 %v1220
    %1276 = vmatprep.subr.bf16.mxu0 %v1225
    %1277 = vmatpush1.bf16.msra.mxu0 %v1224
    %1278 = vmatprep.subr.bf16.mxu0 %v1229
    %1279 = vmatpush1.bf16.msra.mxu0 %v1228
    %1280 = vmatprep.subr.bf16.mxu0 0
    %1281 = vmatpush1.bf16.msra.mxu0 0
    %1282 = vmatprep.subr.bf16.mxu0 0
    %1283 = vmatpush1.bf16.msra.mxu0 0
    %1284 = vmatprep.subr.bf16.mxu0 0
    %1285 = vmatpush1.bf16.msra.mxu0 0
    %1286 = vmatprep.subr.bf16.mxu0 0
    %1287 = vmatpush1.bf16.msra.mxu0 0
    %1288 = vmatprep.subr.bf16.mxu0 0
    %1289 = vmatpush1.bf16.msra.mxu0 0
    %1290 = vmatprep.subr.bf16.mxu0 0
    %1291 = vmatpush1.bf16.msra.mxu0 0
    %1292 = vmatprep.subr.bf16.mxu0 0
    %1293 = vmatpush1.bf16.msra.mxu0 0
    %1294 = vmatprep.subr.bf16.mxu0 0
    %1295 = vmatpush1.bf16.msra.mxu0 0
    %1296 = vmatprep.mubr.bf16.mxu0 0
    %1297 = vmatmul.mubr.bf16.gmra.mrb[0].mxu0 %v1077
    %v1298 = vpop.f32.mrb[0].mxu0
    %v1299 = vadd.f32 %v1087, %v1298
    %v1300 = vpop.f32.mrb[0].mxu0
    %v1301 = vadd.f32 %v1091, %v1300
    %v1302 = vpop.f32.mrb[0].mxu0
    %v1303 = vadd.f32 %v1087, %v1302
    %v1304 = vpop.f32.mrb[0].mxu0
    %v1305 = vadd.f32 %v1091, %v1304
    %1306 = vmatprep.mubr.bf16.mxu0 0
    %1307 = vmatmul.mubr.bf16.gmra.mrb[0].mxu0 %v1081
    %v1308 = vpop.f32.mrb[0].mxu0
    %v1309 = vadd.f32 %v1087, %v1308
    %v1310 = vpop.f32.mrb[0].mxu0
    %v1311 = vadd.f32 %v1091, %v1310
    %v1312 = vpop.f32.mrb[0].mxu0
    %v1313 = vadd.f32 %v1087, %v1312
    %v1314 = vpop.f32.mrb[0].mxu0
    %v1315 = vadd.f32 %v1091, %v1314
    %1316 = vdwg.mxu0
    %1317 = vmatprep.subr.bf16.mxu0 %v1203
    %1318 = vmatpush1.bf16.msra.mxu0 %v1202
    %1319 = vmatprep.subr.bf16.mxu0 %v1207
    %1320 = vmatpush1.bf16.msra.mxu0 %v1206
    %1321 = vmatprep.subr.bf16.mxu0 %v1211
    %1322 = vmatpush1.bf16.msra.mxu0 %v1210
    %1323 = vmatprep.subr.bf16.mxu0 %v1215
    %1324 = vmatpush1.bf16.msra.mxu0 %v1214
    %1325 = vmatprep.subr.bf16.mxu0 %v1219
    %1326 = vmatpush1.bf16.msra.mxu0 %v1218
    %1327 = vmatprep.subr.bf16.mxu0 %v1223
    %1328 = vmatpush1.bf16.msra.mxu0 %v1222
    %1329 = vmatprep.subr.bf16.mxu0 %v1227
    %1330 = vmatpush1.bf16.msra.mxu0 %v1226
    %1331 = vmatprep.subr.bf16.mxu0 %v1231
    %1332 = vmatpush1.bf16.msra.mxu0 %v1230
    %1333 = vmatprep.subr.bf16.mxu0 0
    %1334 = vmatpush1.bf16.msra.mxu0 0
    %1335 = vmatprep.subr.bf16.mxu0 0
    %1336 = vmatpush1.bf16.msra.mxu0 0
    %1337 = vmatprep.subr.bf16.mxu0 0
    %1338 = vmatpush1.bf16.msra.mxu0 0
    %1339 = vmatprep.subr.bf16.mxu0 0
    %1340 = vmatpush1.bf16.msra.mxu0 0
    %1341 = vmatprep.subr.bf16.mxu0 0
    %1342 = vmatpush1.bf16.msra.mxu0 0
    %1343 = vmatprep.subr.bf16.mxu0 0
    %1344 = vmatpush1.bf16.msra.mxu0 0
    %1345 = vmatprep.subr.bf16.mxu0 0
    %1346 = vmatpush1.bf16.msra.mxu0 0
    %1347 = vmatprep.subr.bf16.mxu0 0
    %1348 = vmatpush1.bf16.msra.mxu0 0
    %1349 = vmatprep.mubr.bf16.mxu0 0
    %1350 = vmatmul.mubr.bf16.gmra.mrb[0].mxu0 %v1077
    %v1351 = vpop.f32.mrb[0].mxu0
    %v1352 = vadd.f32 %v1095, %v1351
    %v1353 = vpop.f32.mrb[0].mxu0
    %v1354 = vadd.f32 %v1099, %v1353
    %v1355 = vpop.f32.mrb[0].mxu0
    %v1356 = vadd.f32 %v1095, %v1355
    %v1357 = vpop.f32.mrb[0].mxu0
    %v1358 = vadd.f32 %v1099, %v1357
    %1359 = vmatprep.mubr.bf16.mxu0 0
    %1360 = vmatmul.mubr.bf16.gmra.mrb[0].mxu0 %v1081
    %v1361 = vpop.f32.mrb[0].mxu0
    %v1362 = vadd.f32 %v1095, %v1361
    %v1363 = vpop.f32.mrb[0].mxu0
    %v1364 = vadd.f32 %v1099, %v1363
    %v1365 = vpop.f32.mrb[0].mxu0
    %v1366 = vadd.f32 %v1095, %v1365
    %v1367 = vpop.f32.mrb[0].mxu0
    %v1368 = vadd.f32 %v1099, %v1367
    %1369 = vdwg.mxu0
    %v1402 = vunpack.c.l.b16 %v124
    %v1403 = vunpack.c.h.b16 %v124
    %v1404 = vunpack.c.l.b16 %v125
    %v1405 = vunpack.c.h.b16 %v125
    %v1406 = vunpack.c.l.b16 %v126
    %v1407 = vunpack.c.h.b16 %v126
    %v1408 = vunpack.c.l.b16 %v127
    %v1409 = vunpack.c.h.b16 %v127
    %v1410 = vunpack.c.l.b16 %v128
    %v1411 = vunpack.c.h.b16 %v128
    %v1412 = vunpack.c.l.b16 %v129
    %v1413 = vunpack.c.h.b16 %v129
    %v1414 = vunpack.c.l.b16 %v130
    %v1415 = vunpack.c.h.b16 %v130
    %v1416 = vunpack.c.l.b16 %v131
    %v1417 = vunpack.c.h.b16 %v131
    %v1418 = vunpack.c.l.b16 %v132
    %v1419 = vunpack.c.h.b16 %v132
    %v1420 = vunpack.c.l.b16 %v133
    %v1421 = vunpack.c.h.b16 %v133
    %v1422 = vunpack.c.l.b16 %v134
    %v1423 = vunpack.c.h.b16 %v134
    %v1424 = vunpack.c.l.b16 %v135
    %v1425 = vunpack.c.h.b16 %v135
    %v1426 = vunpack.c.l.b16 %v136
    %v1427 = vunpack.c.h.b16 %v136
    %v1428 = vunpack.c.l.b16 %v137
    %v1429 = vunpack.c.h.b16 %v137
    %v1430 = vunpack.c.l.b16 %v138
    %v1431 = vunpack.c.h.b16 %v138
    %v1432 = vunpack.c.l.b16 %v139
    %v1433 = vunpack.c.h.b16 %v139
    %v1434 = vunpack.c.l.b16 %v140
    %v1435 = vunpack.c.h.b16 %v140
    %v1436 = vunpack.c.l.b16 %v141
    %v1437 = vunpack.c.h.b16 %v141
    %v1438 = vunpack.c.l.b16 %v142
    %v1439 = vunpack.c.h.b16 %v142
    %v1440 = vunpack.c.l.b16 %v143
    %v1441 = vunpack.c.h.b16 %v143
    %v1442 = vunpack.c.l.b16 %v144
    %v1443 = vunpack.c.h.b16 %v144
    %v1444 = vunpack.c.l.b16 %v145
    %v1445 = vunpack.c.h.b16 %v145
    %v1446 = vunpack.c.l.b16 %v146
    %v1447 = vunpack.c.h.b16 %v146
    %v1448 = vunpack.c.l.b16 %v147
    %v1449 = vunpack.c.h.b16 %v147
    %v1450 = vunpack.c.l.b16 %v148
    %v1451 = vunpack.c.h.b16 %v148
    %v1452 = vunpack.c.l.b16 %v149
    %v1453 = vunpack.c.h.b16 %v149
    %v1454 = vunpack.c.l.b16 %v150
    %v1455 = vunpack.c.h.b16 %v150
    %v1456 = vunpack.c.l.b16 %v151
    %v1457 = vunpack.c.h.b16 %v151
    %v1458 = vunpack.c.l.b16 %v152
    %v1459 = vunpack.c.h.b16 %v152
    %v1460 = vunpack.c.l.b16 %v153
    %v1461 = vunpack.c.h.b16 %v153
    %v1462 = vunpack.c.l.b16 %v154
    %v1463 = vunpack.c.h.b16 %v154
    %v1464 = vunpack.c.l.b16 %v155
    %v1465 = vunpack.c.h.b16 %v155
    %v1466 = vpack.c.b16 %v1406, %v1402
    %v1467 = vpack.c.b16 %v1407, %v1403
    %v1468 = vpack.c.b16 %v1408, %v1404
    %v1469 = vpack.c.b16 %v1409, %v1405
    %v1470 = vpack.c.b16 %v1414, %v1410
    %v1471 = vpack.c.b16 %v1415, %v1411
    %v1472 = vpack.c.b16 %v1416, %v1412
    %v1473 = vpack.c.b16 %v1417, %v1413
    %v1474 = vpack.c.b16 %v1422, %v1418
    %v1475 = vpack.c.b16 %v1423, %v1419
    %v1476 = vpack.c.b16 %v1424, %v1420
    %v1477 = vpack.c.b16 %v1425, %v1421
    %v1478 = vpack.c.b16 %v1430, %v1426
    %v1479 = vpack.c.b16 %v1431, %v1427
    %v1480 = vpack.c.b16 %v1432, %v1428
    %v1481 = vpack.c.b16 %v1433, %v1429
    %v1482 = vpack.c.b16 %v1438, %v1434
    %v1483 = vpack.c.b16 %v1439, %v1435
    %v1484 = vpack.c.b16 %v1440, %v1436
    %v1485 = vpack.c.b16 %v1441, %v1437
    %v1486 = vpack.c.b16 %v1446, %v1442
    %v1487 = vpack.c.b16 %v1447, %v1443
    %v1488 = vpack.c.b16 %v1448, %v1444
    %v1489 = vpack.c.b16 %v1449, %v1445
    %v1490 = vpack.c.b16 %v1454, %v1450
    %v1491 = vpack.c.b16 %v1455, %v1451
    %v1492 = vpack.c.b16 %v1456, %v1452
    %v1493 = vpack.c.b16 %v1457, %v1453
    %v1494 = vpack.c.b16 %v1462, %v1458
    %v1495 = vpack.c.b16 %v1463, %v1459
    %v1496 = vpack.c.b16 %v1464, %v1460
    %v1497 = vpack.c.b16 %v1465, %v1461
    %1530 = vmatprep.subr.bf16.mxu0 %v1467
    %1531 = vmatpush1.bf16.msra.mxu0 %v1466
    %1532 = vmatprep.subr.bf16.mxu0 %v1471
    %1533 = vmatpush1.bf16.msra.mxu0 %v1470
    %1534 = vmatprep.subr.bf16.mxu0 %v1475
    %1535 = vmatpush1.bf16.msra.mxu0 %v1474
    %1536 = vmatprep.subr.bf16.mxu0 %v1479
    %1537 = vmatpush1.bf16.msra.mxu0 %v1478
    %1538 = vmatprep.subr.bf16.mxu0 %v1483
    %1539 = vmatpush1.bf16.msra.mxu0 %v1482
    %1540 = vmatprep.subr.bf16.mxu0 %v1487
    %1541 = vmatpush1.bf16.msra.mxu0 %v1486
    %1542 = vmatprep.subr.bf16.mxu0 %v1491
    %1543 = vmatpush1.bf16.msra.mxu0 %v1490
    %1544 = vmatprep.subr.bf16.mxu0 %v1495
    %1545 = vmatpush1.bf16.msra.mxu0 %v1494
    %1546 = vmatprep.subr.bf16.mxu0 0
    %1547 = vmatpush1.bf16.msra.mxu0 0
    %1548 = vmatprep.subr.bf16.mxu0 0
    %1549 = vmatpush1.bf16.msra.mxu0 0
    %1550 = vmatprep.subr.bf16.mxu0 0
    %1551 = vmatpush1.bf16.msra.mxu0 0
    %1552 = vmatprep.subr.bf16.mxu0 0
    %1553 = vmatpush1.bf16.msra.mxu0 0
    %1554 = vmatprep.subr.bf16.mxu0 0
    %1555 = vmatpush1.bf16.msra.mxu0 0
    %1556 = vmatprep.subr.bf16.mxu0 0
    %1557 = vmatpush1.bf16.msra.mxu0 0
    %1558 = vmatprep.subr.bf16.mxu0 0
    %1559 = vmatpush1.bf16.msra.mxu0 0
    %1560 = vmatprep.subr.bf16.mxu0 0
    %1561 = vmatpush1.bf16.msra.mxu0 0
    %1562 = vmatprep.mubr.bf16.mxu0 0
    %1563 = vmatmul.mubr.bf16.gmra.mrb[0].mxu0 0
    %v1564 = vpop.f32.mrb[0].mxu0
    %v1565 = vadd.f32 0.0, %v1564
    %v1566 = vpop.f32.mrb[0].mxu0
    %v1567 = vadd.f32 0.0, %v1566
    %v1568 = vpop.f32.mrb[0].mxu0
    %v1569 = vpop.f32.mrb[0].mxu0
    %1570 = vdwg.mxu0
    %1571 = vmatprep.subr.bf16.mxu0 %v1469
    %1572 = vmatpush1.bf16.msra.mxu0 %v1468
    %1573 = vmatprep.subr.bf16.mxu0 %v1473
    %1574 = vmatpush1.bf16.msra.mxu0 %v1472
    %1575 = vmatprep.subr.bf16.mxu0 %v1477
    %1576 = vmatpush1.bf16.msra.mxu0 %v1476
    %1577 = vmatprep.subr.bf16.mxu0 %v1481
    %1578 = vmatpush1.bf16.msra.mxu0 %v1480
    %1579 = vmatprep.subr.bf16.mxu0 %v1485
    %1580 = vmatpush1.bf16.msra.mxu0 %v1484
    %1581 = vmatprep.subr.bf16.mxu0 %v1489
    %1582 = vmatpush1.bf16.msra.mxu0 %v1488
    %1583 = vmatprep.subr.bf16.mxu0 %v1493
    %1584 = vmatpush1.bf16.msra.mxu0 %v1492
    %1585 = vmatprep.subr.bf16.mxu0 %v1497
    %1586 = vmatpush1.bf16.msra.mxu0 %v1496
    %1587 = vmatprep.subr.bf16.mxu0 0
    %1588 = vmatpush1.bf16.msra.mxu0 0
    %1589 = vmatprep.subr.bf16.mxu0 0
    %1590 = vmatpush1.bf16.msra.mxu0 0
    %1591 = vmatprep.subr.bf16.mxu0 0
    %1592 = vmatpush1.bf16.msra.mxu0 0
    %1593 = vmatprep.subr.bf16.mxu0 0
    %1594 = vmatpush1.bf16.msra.mxu0 0
    %1595 = vmatprep.subr.bf16.mxu0 0
    %1596 = vmatpush1.bf16.msra.mxu0 0
    %1597 = vmatprep.subr.bf16.mxu0 0
    %1598 = vmatpush1.bf16.msra.mxu0 0
    %1599 = vmatprep.subr.bf16.mxu0 0
    %1600 = vmatpush1.bf16.msra.mxu0 0
    %1601 = vmatprep.subr.bf16.mxu0 0
    %1602 = vmatpush1.bf16.msra.mxu0 0
    %1603 = vmatprep.mubr.bf16.mxu0 0
    %1604 = vmatmul.mubr.bf16.gmra.mrb[0].mxu0 0
    %v1605 = vpop.f32.mrb[0].mxu0
    %v1606 = vadd.f32 0.0, %v1605
    %v1607 = vpop.f32.mrb[0].mxu0
    %v1608 = vadd.f32 0.0, %v1607
    %v1609 = vpop.f32.mrb[0].mxu0
    %v1610 = vpop.f32.mrb[0].mxu0
    %1611 = vdwg.mxu0
    %v1612 = vadd.f32 %v1299, %v1565
    %v1613 = vadd.f32 %v1301, %v1567
    %v1614 = vadd.f32 %v1352, %v1606
    %v1615 = vadd.f32 %v1354, %v1608
    %v1616 = vxor.u32 %v1612, 2147483648
    %v1617 = vmul.f32 %v1616, 1.442695
    %v1618 = vpow.pop %v1617
    %v1619 = vadd.f32 %v1618, 1.0
    %v1620 = vrcp.pop %v1619
    %v1621 = vmul.f32 1.0, %v1620
    %v1622 = vxor.u32 %v1613, 2147483648
    %v1623 = vmul.f32 %v1622, 1.442695
    %v1624 = vpow.pop %v1623
    %v1625 = vadd.f32 %v1624, 1.0
    %v1626 = vrcp.pop %v1625
    %v1627 = vmul.f32 1.0, %v1626
    %v1628 = vtanh.pop %v1614
    %v1629 = vxor.u32 %v1615, 2147483648
    %v1630 = vmul.f32 %v1629, 1.442695
    %v1631 = vpow.pop %v1630
    %v1632 = vadd.f32 %v1631, 1.0
    %v1633 = vrcp.pop %v1632
    %v1634 = vmul.f32 1.0, %v1633
    %v1635 = vmul.f32 %v1627, 0.0
    %v1636 = vmul.f32 %v1621, %v1628
    %v1637 = vadd.f32 %v1635, %v1636
    %v1638 = vtanh.pop %v1637
    %v1639 = vmul.f32 %v1634, %v1638
    %v1640 = vadd.f32 %v1639, 0.0
    %v1641 = vpack.c.bf16 %v1639, %v1639
    %1642 = vmatprep.subr.bf16.mxu0 %v1467
    %1643 = vmatpush1.bf16.msra.mxu0 %v1466
    %1644 = vmatprep.subr.bf16.mxu0 %v1471
    %1645 = vmatpush1.bf16.msra.mxu0 %v1470
    %1646 = vmatprep.subr.bf16.mxu0 %v1475
    %1647 = vmatpush1.bf16.msra.mxu0 %v1474
    %1648 = vmatprep.subr.bf16.mxu0 %v1479
    %1649 = vmatpush1.bf16.msra.mxu0 %v1478
    %1650 = vmatprep.subr.bf16.mxu0 %v1483
    %1651 = vmatpush1.bf16.msra.mxu0 %v1482
    %1652 = vmatprep.subr.bf16.mxu0 %v1487
    %1653 = vmatpush1.bf16.msra.mxu0 %v1486
    %1654 = vmatprep.subr.bf16.mxu0 %v1491
    %1655 = vmatpush1.bf16.msra.mxu0 %v1490
    %1656 = vmatprep.subr.bf16.mxu0 %v1495
    %1657 = vmatpush1.bf16.msra.mxu0 %v1494
    %1658 = vmatprep.subr.bf16.mxu0 0
    %1659 = vmatpush1.bf16.msra.mxu0 0
    %1660 = vmatprep.subr.bf16.mxu0 0
    %1661 = vmatpush1.bf16.msra.mxu0 0
    %1662 = vmatprep.subr.bf16.mxu0 0
    %1663 = vmatpush1.bf16.msra.mxu0 0
    %1664 = vmatprep.subr.bf16.mxu0 0
    %1665 = vmatpush1.bf16.msra.mxu0 0
    %1666 = vmatprep.subr.bf16.mxu0 0
    %1667 = vmatpush1.bf16.msra.mxu0 0
    %1668 = vmatprep.subr.bf16.mxu0 0
    %1669 = vmatpush1.bf16.msra.mxu0 0
    %1670 = vmatprep.subr.bf16.mxu0 0
    %1671 = vmatpush1.bf16.msra.mxu0 0
    %1672 = vmatprep.subr.bf16.mxu0 0
    %1673 = vmatpush1.bf16.msra.mxu0 0
    %1674 = vmatprep.mubr.bf16.mxu0 0
    %1675 = vmatmul.mubr.bf16.gmra.mrb[0].mxu0 %v1641
    %v1676 = vpop.f32.mrb[0].mxu0
    %v1677 = vadd.f32 0.0, %v1676
    %v1678 = vpop.f32.mrb[0].mxu0
    %v1679 = vadd.f32 0.0, %v1678
    %v1680 = vpop.f32.mrb[0].mxu0
    %v1681 = vpop.f32.mrb[0].mxu0
    %1682 = vdwg.mxu0
    %1683 = vmatprep.subr.bf16.mxu0 %v1469
    %1684 = vmatpush1.bf16.msra.mxu0 %v1468
    %1685 = vmatprep.subr.bf16.mxu0 %v1473
    %1686 = vmatpush1.bf16.msra.mxu0 %v1472
    %1687 = vmatprep.subr.bf16.mxu0 %v1477
    %1688 = vmatpush1.bf16.msra.mxu0 %v1476
    %1689 = vmatprep.subr.bf16.mxu0 %v1481
    %1690 = vmatpush1.bf16.msra.mxu0 %v1480
    %1691 = vmatprep.subr.bf16.mxu0 %v1485
    %1692 = vmatpush1.bf16.msra.mxu0 %v1484
    %1693 = vmatprep.subr.bf16.mxu0 %v1489
    %1694 = vmatpush1.bf16.msra.mxu0 %v1488
    %1695 = vmatprep.subr.bf16.mxu0 %v1493
    %1696 = vmatpush1.bf16.msra.mxu0 %v1492
    %1697 = vmatprep.subr.bf16.mxu0 %v1497
    %1698 = vmatpush1.bf16.msra.mxu0 %v1496
    %1699 = vmatprep.subr.bf16.mxu0 0
    %1700 = vmatpush1.bf16.msra.mxu0 0
    %1701 = vmatprep.subr.bf16.mxu0 0
    %1702 = vmatpush1.bf16.msra.mxu0 0
    %1703 = vmatprep.subr.bf16.mxu0 0
    %1704 = vmatpush1.bf16.msra.mxu0 0
    %1705 = vmatprep.subr.bf16.mxu0 0
    %1706 = vmatpush1.bf16.msra.mxu0 0
    %1707 = vmatprep.subr.bf16.mxu0 0
    %1708 = vmatpush1.bf16.msra.mxu0 0
    %1709 = vmatprep.subr.bf16.mxu0 0
    %1710 = vmatpush1.bf16.msra.mxu0 0
    %1711 = vmatprep.subr.bf16.mxu0 0
    %1712 = vmatpush1.bf16.msra.mxu0 0
    %1713 = vmatprep.subr.bf16.mxu0 0
    %1714 = vmatpush1.bf16.msra.mxu0 0
    %1715 = vmatprep.mubr.bf16.mxu0 0
    %1716 = vmatmul.mubr.bf16.gmra.mrb[0].mxu0 %v1641
    %v1717 = vpop.f32.mrb[0].mxu0
    %v1718 = vadd.f32 0.0, %v1717
    %v1719 = vpop.f32.mrb[0].mxu0
    %v1720 = vadd.f32 0.0, %v1719
    %v1721 = vpop.f32.mrb[0].mxu0
    %v1722 = vpop.f32.mrb[0].mxu0
    %1723 = vdwg.mxu0
    %v1724 = vadd.f32 %v1303, %v1677
    %v1725 = vadd.f32 %v1305, %v1679
    %v1726 = vadd.f32 %v1356, %v1718
    %v1727 = vadd.f32 %v1358, %v1720
    %v1728 = vxor.u32 %v1724, 2147483648
    %v1729 = vmul.f32 %v1728, 1.442695
    %v1730 = vpow.pop %v1729
    %v1731 = vadd.f32 %v1730, 1.0
    %v1732 = vrcp.pop %v1731
    %v1733 = vmul.f32 1.0, %v1732
    %v1734 = vxor.u32 %v1725, 2147483648
    %v1735 = vmul.f32 %v1734, 1.442695
    %v1736 = vpow.pop %v1735
    %v1737 = vadd.f32 %v1736, 1.0
    %v1738 = vrcp.pop %v1737
    %v1739 = vmul.f32 1.0, %v1738
    %v1740 = vtanh.pop %v1726
    %v1741 = vxor.u32 %v1727, 2147483648
    %v1742 = vmul.f32 %v1741, 1.442695
    %v1743 = vpow.pop %v1742
    %v1744 = vadd.f32 %v1743, 1.0
    %v1745 = vrcp.pop %v1744
    %v1746 = vmul.f32 1.0, %v1745
    %v1747 = vmul.f32 %v1739, %v1637
    %v1748 = vmul.f32 %v1733, %v1740
    %v1749 = vadd.f32 %v1747, %v1748
    %v1750 = vtanh.pop %v1749
    %v1751 = vmul.f32 %v1746, %v1750
    %v1752 = vadd.f32 %v1640, %v1751
    %v1753 = vpack.c.bf16 %v1751, %v1751
    %1754 = vmatprep.subr.bf16.mxu0 %v1467
    %1755 = vmatpush1.bf16.msra.mxu0 %v1466
    %1756 = vmatprep.subr.bf16.mxu0 %v1471
    %1757 = vmatpush1.bf16.msra.mxu0 %v1470
    %1758 = vmatprep.subr.bf16.mxu0 %v1475
    %1759 = vmatpush1.bf16.msra.mxu0 %v1474
    %1760 = vmatprep.subr.bf16.mxu0 %v1479
    %1761 = vmatpush1.bf16.msra.mxu0 %v1478
    %1762 = vmatprep.subr.bf16.mxu0 %v1483
    %1763 = vmatpush1.bf16.msra.mxu0 %v1482
    %1764 = vmatprep.subr.bf16.mxu0 %v1487
    %1765 = vmatpush1.bf16.msra.mxu0 %v1486
    %1766 = vmatprep.subr.bf16.mxu0 %v1491
    %1767 = vmatpush1.bf16.msra.mxu0 %v1490
    %1768 = vmatprep.subr.bf16.mxu0 %v1495
    %1769 = vmatpush1.bf16.msra.mxu0 %v1494
    %1770 = vmatprep.subr.bf16.mxu0 0
    %1771 = vmatpush1.bf16.msra.mxu0 0
    %1772 = vmatprep.subr.bf16.mxu0 0
    %1773 = vmatpush1.bf16.msra.mxu0 0
    %1774 = vmatprep.subr.bf16.mxu0 0
    %1775 = vmatpush1.bf16.msra.mxu0 0
    %1776 = vmatprep.subr.bf16.mxu0 0
    %1777 = vmatpush1.bf16.msra.mxu0 0
    %1778 = vmatprep.subr.bf16.mxu0 0
    %1779 = vmatpush1.bf16.msra.mxu0 0
    %1780 = vmatprep.subr.bf16.mxu0 0
    %1781 = vmatpush1.bf16.msra.mxu0 0
    %1782 = vmatprep.subr.bf16.mxu0 0
    %1783 = vmatpush1.bf16.msra.mxu0 0
    %1784 = vmatprep.subr.bf16.mxu0 0
    %1785 = vmatpush1.bf16.msra.mxu0 0
    %1786 = vmatprep.mubr.bf16.mxu0 0
    %1787 = vmatmul.mubr.bf16.gmra.mrb[0].mxu0 %v1753
    %v1788 = vpop.f32.mrb[0].mxu0
    %v1789 = vadd.f32 0.0, %v1788
    %v1790 = vpop.f32.mrb[0].mxu0
    %v1791 = vadd.f32 0.0, %v1790
    %v1792 = vpop.f32.mrb[0].mxu0
    %v1793 = vpop.f32.mrb[0].mxu0
    %1794 = vdwg.mxu0
    %1795 = vmatprep.subr.bf16.mxu0 %v1469
    %1796 = vmatpush1.bf16.msra.mxu0 %v1468
    %1797 = vmatprep.subr.bf16.mxu0 %v1473
    %1798 = vmatpush1.bf16.msra.mxu0 %v1472
    %1799 = vmatprep.subr.bf16.mxu0 %v1477
    %1800 = vmatpush1.bf16.msra.mxu0 %v1476
    %1801 = vmatprep.subr.bf16.mxu0 %v1481
    %1802 = vmatpush1.bf16.msra.mxu0 %v1480
    %1803 = vmatprep.subr.bf16.mxu0 %v1485
    %1804 = vmatpush1.bf16.msra.mxu0 %v1484
    %1805 = vmatprep.subr.bf16.mxu0 %v1489
    %1806 = vmatpush1.bf16.msra.mxu0 %v1488
    %1807 = vmatprep.subr.bf16.mxu0 %v1493
    %1808 = vmatpush1.bf16.msra.mxu0 %v1492
    %1809 = vmatprep.subr.bf16.mxu0 %v1497
    %1810 = vmatpush1.bf16.msra.mxu0 %v1496
    %1811 = vmatprep.subr.bf16.mxu0 0
    %1812 = vmatpush1.bf16.msra.mxu0 0
    %1813 = vmatprep.subr.bf16.mxu0 0
    %1814 = vmatpush1.bf16.msra.mxu0 0
    %1815 = vmatprep.subr.bf16.mxu0 0
    %1816 = vmatpush1.bf16.msra.mxu0 0
    %1817 = vmatprep.subr.bf16.mxu0 0
    %1818 = vmatpush1.bf16.msra.mxu0 0
    %1819 = vmatprep.subr.bf16.mxu0 0
    %1820 = vmatpush1.bf16.msra.mxu0 0
    %1821 = vmatprep.subr.bf16.mxu0 0
    %1822 = vmatpush1.bf16.msra.mxu0 0
    %1823 = vmatprep.subr.bf16.mxu0 0
    %1824 = vmatpush1.bf16.msra.mxu0 0
    %1825 = vmatprep.subr.bf16.mxu0 0
    %1826 = vmatpush1.bf16.msra.mxu0 0
    %1827 = vmatprep.mubr.bf16.mxu0 0
    %1828 = vmatmul.mubr.bf16.gmra.mrb[0].mxu0 %v1753
    %v1829 = vpop.f32.mrb[0].mxu0
    %v1830 = vadd.f32 0.0, %v1829
    %v1831 = vpop.f32.mrb[0].mxu0
    %v1832 = vadd.f32 0.0, %v1831
    %v1833 = vpop.f32.mrb[0].mxu0
    %v1834 = vpop.f32.mrb[0].mxu0
    %1835 = vdwg.mxu0
    %v1836 = vadd.f32 %v1309, %v1789
    %v1837 = vadd.f32 %v1311, %v1791
    %v1838 = vadd.f32 %v1362, %v1830
    %v1839 = vadd.f32 %v1364, %v1832
    %v1840 = vxor.u32 %v1836, 2147483648
    %v1841 = vmul.f32 %v1840, 1.442695
    %v1842 = vpow.pop %v1841
    %v1843 = vadd.f32 %v1842, 1.0
    %v1844 = vrcp.pop %v1843
    %v1845 = vmul.f32 1.0, %v1844
    %v1846 = vxor.u32 %v1837, 2147483648
    %v1847 = vmul.f32 %v1846, 1.442695
    %v1848 = vpow.pop %v1847
    %v1849 = vadd.f32 %v1848, 1.0
    %v1850 = vrcp.pop %v1849
    %v1851 = vmul.f32 1.0, %v1850
    %v1852 = vtanh.pop %v1838
    %v1853 = vxor.u32 %v1839, 2147483648
    %v1854 = vmul.f32 %v1853, 1.442695
    %v1855 = vpow.pop %v1854
    %v1856 = vadd.f32 %v1855, 1.0
    %v1857 = vrcp.pop %v1856
    %v1858 = vmul.f32 1.0, %v1857
    %v1859 = vmul.f32 %v1851, %v1749
    %v1860 = vmul.f32 %v1845, %v1852
    %v1861 = vadd.f32 %v1859, %v1860
    %v1862 = vtanh.pop %v1861
    %v1863 = vmul.f32 %v1858, %v1862
    %v1864 = vadd.f32 %v1752, %v1863
    %v1865 = vpack.c.bf16 %v1863, %v1863
    %1866 = vmatprep.subr.bf16.mxu0 %v1467
    %1867 = vmatpush1.bf16.msra.mxu0 %v1466
    %1868 = vmatprep.subr.bf16.mxu0 %v1471
    %1869 = vmatpush1.bf16.msra.mxu0 %v1470
    %1870 = vmatprep.subr.bf16.mxu0 %v1475
    %1871 = vmatpush1.bf16.msra.mxu0 %v1474
    %1872 = vmatprep.subr.bf16.mxu0 %v1479
    %1873 = vmatpush1.bf16.msra.mxu0 %v1478
    %1874 = vmatprep.subr.bf16.mxu0 %v1483
    %1875 = vmatpush1.bf16.msra.mxu0 %v1482
    %1876 = vmatprep.subr.bf16.mxu0 %v1487
    %1877 = vmatpush1.bf16.msra.mxu0 %v1486
    %1878 = vmatprep.subr.bf16.mxu0 %v1491
    %1879 = vmatpush1.bf16.msra.mxu0 %v1490
    %1880 = vmatprep.subr.bf16.mxu0 %v1495
    %1881 = vmatpush1.bf16.msra.mxu0 %v1494
    %1882 = vmatprep.subr.bf16.mxu0 0
    %1883 = vmatpush1.bf16.msra.mxu0 0
    %1884 = vmatprep.subr.bf16.mxu0 0
    %1885 = vmatpush1.bf16.msra.mxu0 0
    %1886 = vmatprep.subr.bf16.mxu0 0
    %1887 = vmatpush1.bf16.msra.mxu0 0
    %1888 = vmatprep.subr.bf16.mxu0 0
    %1889 = vmatpush1.bf16.msra.mxu0 0
    %1890 = vmatprep.subr.bf16.mxu0 0
    %1891 = vmatpush1.bf16.msra.mxu0 0
    %1892 = vmatprep.subr.bf16.mxu0 0
    %1893 = vmatpush1.bf16.msra.mxu0 0
    %1894 = vmatprep.subr.bf16.mxu0 0
    %1895 = vmatpush1.bf16.msra.mxu0 0
    %1896 = vmatprep.subr.bf16.mxu0 0
    %1897 = vmatpush1.bf16.msra.mxu0 0
    %1898 = vmatprep.mubr.bf16.mxu0 0
    %1899 = vmatmul.mubr.bf16.gmra.mrb[0].mxu0 %v1865
    %v1900 = vpop.f32.mrb[0].mxu0
    %v1901 = vadd.f32 0.0, %v1900
    %v1902 = vpop.f32.mrb[0].mxu0
    %v1903 = vadd.f32 0.0, %v1902
    %v1904 = vpop.f32.mrb[0].mxu0
    %v1905 = vpop.f32.mrb[0].mxu0
    %1906 = vdwg.mxu0
    %1907 = vmatprep.subr.bf16.mxu0 %v1469
    %1908 = vmatpush1.bf16.msra.mxu0 %v1468
    %1909 = vmatprep.subr.bf16.mxu0 %v1473
    %1910 = vmatpush1.bf16.msra.mxu0 %v1472
    %1911 = vmatprep.subr.bf16.mxu0 %v1477
    %1912 = vmatpush1.bf16.msra.mxu0 %v1476
    %1913 = vmatprep.subr.bf16.mxu0 %v1481
    %1914 = vmatpush1.bf16.msra.mxu0 %v1480
    %1915 = vmatprep.subr.bf16.mxu0 %v1485
    %1916 = vmatpush1.bf16.msra.mxu0 %v1484
    %1917 = vmatprep.subr.bf16.mxu0 %v1489
    %1918 = vmatpush1.bf16.msra.mxu0 %v1488
    %1919 = vmatprep.subr.bf16.mxu0 %v1493
    %1920 = vmatpush1.bf16.msra.mxu0 %v1492
    %1921 = vmatprep.subr.bf16.mxu0 %v1497
    %1922 = vmatpush1.bf16.msra.mxu0 %v1496
    %1923 = vmatprep.subr.bf16.mxu0 0
    %1924 = vmatpush1.bf16.msra.mxu0 0
    %1925 = vmatprep.subr.bf16.mxu0 0
    %1926 = vmatpush1.bf16.msra.mxu0 0
    %1927 = vmatprep.subr.bf16.mxu0 0
    %1928 = vmatpush1.bf16.msra.mxu0 0
    %1929 = vmatprep.subr.bf16.mxu0 0
    %1930 = vmatpush1.bf16.msra.mxu0 0
    %1931 = vmatprep.subr.bf16.mxu0 0
    %1932 = vmatpush1.bf16.msra.mxu0 0
    %1933 = vmatprep.subr.bf16.mxu0 0
    %1934 = vmatpush1.bf16.msra.mxu0 0
    %1935 = vmatprep.subr.bf16.mxu0 0
    %1936 = vmatpush1.bf16.msra.mxu0 0
    %1937 = vmatprep.subr.bf16.mxu0 0
    %1938 = vmatpush1.bf16.msra.mxu0 0
    %1939 = vmatprep.mubr.bf16.mxu0 0
    %1940 = vmatmul.mubr.bf16.gmra.mrb[0].mxu0 %v1865
    %v1941 = vpop.f32.mrb[0].mxu0
    %v1942 = vadd.f32 0.0, %v1941
    %v1943 = vpop.f32.mrb[0].mxu0
    %v1944 = vadd.f32 0.0, %v1943
    %v1945 = vpop.f32.mrb[0].mxu0
    %v1946 = vpop.f32.mrb[0].mxu0
    %1947 = vdwg.mxu0
    %v1948 = vadd.f32 %v1313, %v1901
    %v1949 = vadd.f32 %v1315, %v1903
    %v1950 = vadd.f32 %v1366, %v1942
    %v1951 = vadd.f32 %v1368, %v1944
    %v1952 = vxor.u32 %v1948, 2147483648
    %v1953 = vmul.f32 %v1952, 1.442695
    %v1954 = vpow.pop %v1953
    %v1955 = vadd.f32 %v1954, 1.0
    %v1956 = vrcp.pop %v1955
    %v1957 = vmul.f32 1.0, %v1956
    %v1958 = vxor.u32 %v1949, 2147483648
    %v1959 = vmul.f32 %v1958, 1.442695
    %v1960 = vpow.pop %v1959
    %v1961 = vadd.f32 %v1960, 1.0
    %v1962 = vrcp.pop %v1961
    %v1963 = vmul.f32 1.0, %v1962
    %v1964 = vtanh.pop %v1950
    %v1965 = vxor.u32 %v1951, 2147483648
    %v1966 = vmul.f32 %v1965, 1.442695
    %v1967 = vpow.pop %v1966
    %v1968 = vadd.f32 %v1967, 1.0
    %v1969 = vrcp.pop %v1968
    %v1970 = vmul.f32 1.0, %v1969
    %v1971 = vmul.f32 %v1963, %v1861
    %v1972 = vmul.f32 %v1957, %v1964
    %v1973 = vadd.f32 %v1971, %v1972
    %v1974 = vtanh.pop %v1973
    %v1975 = vmul.f32 %v1970, %v1974
    %v1976 = vadd.f32 %v1864, %v1975
    %v1977 = vmul.f32 %v1976, 0.25
    %1978 = vst [vmem:[#allocation2] sm:$0xff] %v1977
    // Predicated region
    $region30: #{_lambda_.5} parent=1 // pred_check
      _
    $region31: #{_lambda_.5} parent=1 // pred_check_branch
      %1980 = sbr.rel (0) target = $region33
    $region32: #{_lambda_.5} parent=1 // pred_region
      %s1982 = ssub.s32 128, 128
      %1983 = vsyncadd [#allocation3], %s1982
      %s1985 = sshll.u32 [#allocation2], 4
      %s1986 = int_to_ptr.vmem [resolvable:$true] %s1985
      %1988 = dma.vmem_to_hbm [thread:$0]  %s1986, 128, %s7, [#allocation3]
    $region33: #{_lambda_.5} parent=1 // pred_fallthru
      _
    // Predicated region
    $region34: #{_lambda_.5} parent=1 // pred_check
      _
    $region35: #{_lambda_.5} parent=1 // pred_check_branch
      %1990 = sbr.rel (0) target = $region37
    $region36: #{_lambda_.5} parent=1 // pred_region
      %1991 = dma.done [#allocation3], 128
    $region37: #{_lambda_.5} parent=1 // pred_fallthru
      _
    %1992 = vsyncpa [#allocation3], 1

</llo_original>
